<compile_context>
chip_gen: v7x
topology: tpu7x:2x2x1
jax: 0.10.0
libtpu: 0.0.40
codegen_flags: <defaults>
</compile_context>

<pallas_src>
import jax
import jax.numpy as jnp
from jax import lax
from jax.experimental import pallas as pl
from jax.experimental.pallas import tpu as pltpu

_LANE = 128
_SUBLANE = 8
_MIN_PALLAS_TOKENS = 1024   # below this, the XLA gather fast path wins


def _round_up(x, m):
    return (x + m - 1) // m * m


def _split_f32_to_bf16_planes(x):
    """Exact 3-way bf16 split: hi + mid + lo == x for normal f32 values.

    bf16 carries 8 significand bits; 3 x 8 covers f32's 24, every residual
    (x - hi, etc.) is exactly representable in f32, and re-summing hi+mid+lo
    in f32 is exact.  Log-probs (magnitude ~1e-3..1e2) are nowhere near bf16
    subnormals, so the split is lossless here.
    """
    hi = x.astype(jnp.bfloat16)
    r1 = x - hi.astype(jnp.float32)
    mid = r1.astype(jnp.bfloat16)
    r2 = r1 - mid.astype(jnp.float32)
    lo = r2.astype(jnp.bfloat16)
    return jnp.stack([hi, mid, lo], axis=0)              # (3, Vp, Vp) bf16


def prepare_bigram_planes(logits):
    """One-time table prep (cache this, like the torch registered buffer):
    lane-pad the (V, V) f32 logits to (Vp, Vp) and split into 3 bf16 planes."""
    V = logits.shape[0]
    Vp = _round_up(V, _LANE)
    logits_p = jnp.pad(logits.astype(jnp.float32), ((0, Vp - V), (0, Vp - V)))
    return _split_f32_to_bf16_planes(logits_p)


def _bigram_gather_kernel(idx_ref, planes_ref, out_ref):
    # idx_ref:    (TBLK, 1)    int32     token ids for this block
    # planes_ref: (3, Vp, Vp)  bfloat16  hi/mid/lo bf16 planes of the f32 table
    # out_ref:    (TBLK, Vp)   float32   gathered (lane-padded) rows
    ids = idx_ref[...]                                        # (TBLK, 1)
    tblk, vp = out_ref.shape
    cols = lax.broadcasted_iota(jnp.int32, (tblk, vp), 1)     # (TBLK, Vp)
    onehot = (ids == cols).astype(jnp.bfloat16)               # 0/1, exact in bf16
    # One-hot row gather on the MXU: three DEFAULT-precision bf16 passes
    # (vs six for an f32 x f32 HIGHEST dot).  f32 accumulation + the exact
    # plane split make the summed result bit-identical to logits[idx].
    acc = jnp.dot(onehot, planes_ref[0], preferred_element_type=jnp.float32)
    acc = acc + jnp.dot(onehot, planes_ref[1], preferred_element_type=jnp.float32)
    acc = acc + jnp.dot(onehot, planes_ref[2], preferred_element_type=jnp.float32)
    out_ref[...] = acc


def bigram_forward(idx, logits, planes=None, *, token_block=1024):
    """idx: (B, T) int -> (B, T, V) float32 rows of `logits` ((V, V) float32).

    `planes` should be the cached result of prepare_bigram_planes(logits) so
    the table pad/split stays out of the per-call path.
    """
    B, T = idx.shape
    V = logits.shape[0]
    N = B * T

    # Small-N fast path: pallas_call fixed cost + padding ops dwarf the actual
    # gather on a 65x65 table, so just let XLA gather.
    if N < _MIN_PALLAS_TOKENS:
        return logits[idx].astype(jnp.float32)

    if planes is None:
        planes = prepare_bigram_planes(logits)    # prefer caching at init time
    Vp = planes.shape[-1]

    # Token block: large enough to amortize per-step overhead, but capped at
    # ceil(N/2) so the parallel token axis always has >=2 steps (keeps both
    # v7x TensorCores busy; harmless on single-TC v5e/v6e).
    tblk = min(_round_up(token_block, _SUBLANE),
               _round_up(pl.cdiv(N, 2), _SUBLANE))
    n_steps = pl.cdiv(N, tblk)
    n_pad = n_steps * tblk

    idx_flat = jnp.pad(idx.reshape(-1).astype(jnp.int32), (0, n_pad - N))
    idx_flat = idx_flat.reshape(n_pad, 1)
    # TODO(synk): ids >= V (or negative) silently gather a zero padded row
    #             here, whereas PyTorch advanced indexing would raise.

    cost = pl.CostEstimate(
        flops=3 * 2 * n_pad * Vp * Vp,
        transcendentals=0,
        bytes_accessed=n_pad * 4 + planes.size * 2 + n_pad * Vp * 4,
    )

    out_flat = pl.pallas_call(
        _bigram_gather_kernel,
        out_shape=jax.ShapeDtypeStruct((n_pad, Vp), jnp.float32),
        grid_spec=pltpu.PrefetchScalarGridSpec(
            num_scalar_prefetch=0,
            grid=(n_steps,),
            in_specs=[
                pl.BlockSpec((tblk, 1), lambda i: (i, 0)),        # token ids
                pl.BlockSpec((3, Vp, Vp), lambda i: (0, 0, 0)),   # VMEM-resident table planes
            ],
            out_specs=pl.BlockSpec((tblk, Vp), lambda i: (i, 0)),
        ),
        compiler_params=pltpu.CompilerParams(
            dimension_semantics=("parallel",),
            # At tblk=1024 / Vp=128 the double-buffered blocks + one-hot/iota
            # intermediates stay far below even v5e's 16 MiB scoped-VMEM
            # default; set vmem_limit_bytes if token_block is pushed past ~2048.
        ),
        cost_estimate=cost,
    )(idx_flat, planes)

    # TODO(synk): this slice is a second HBM pass over the output; if the
    #             consumer can take the lane-padded (B, T, Vp) block (or a bf16
    #             output), drop it and fuse downstream instead.
    return out_flat[:N, :V].reshape(B, T, V)


class BigramPallas:
    """Forward-only equivalent of the PyTorch BigramRef module."""

    def __init__(self, counts):
        counts = jnp.asarray(counts, jnp.float32)
        V = counts.shape[1]
        probs = (counts + 1.0) / (counts.sum(axis=1, keepdims=True) + V)
        self.logits = jnp.log(probs)                       # (V, V) f32 "buffer"
        self.planes = prepare_bigram_planes(self.logits)   # cached padded bf16 planes

    def __call__(self, idx):
        return bigram_forward(idx, self.logits, self.planes)


if __name__ == "__main__":
    key = jax.random.PRNGKey(0)
    V = 65          # char-level vocab, as in grpo_char
    k_counts, k_small, k_big = jax.random.split(key, 3)

    counts = jax.random.randint(k_counts, (V, V), 0, 50, dtype=jnp.int32)
    model = BigramPallas(counts)

    # Small shape (module's typical toy use): hits the XLA-gather fast path.
    B, T = 2, 8
    idx_small = jax.random.randint(k_small, (B, T), 0, V, dtype=jnp.int32)
    out_small = jax.block_until_ready(model(idx_small))
    ref_small = model.logits[idx_small]
    assert out_small.shape == (B, T, V), out_small.shape
    assert jnp.allclose(out_small, ref_small, atol=0.0), "mismatch (fast path)"

    # Moderate shape: N=2048 -> Pallas kernel with two 1024-token grid steps
    # (exercises the parallel token axis / both v7x TensorCores).
    B2, T2 = 4, 512
    idx_big = jax.random.randint(k_big, (B2, T2), 0, V, dtype=jnp.int32)
    out_big = jax.block_until_ready(model(idx_big))
    ref_big = model.logits[idx_big]
    assert out_big.shape == (B2, T2, V), out_big.shape
    assert jnp.allclose(out_big, ref_big, atol=1e-6), "mismatch (pallas path)"

    print("KERNEL_OK")
</pallas_src>

<mosaic_0001>
module attributes {stable_mosaic.version = 11 : i64} {
  func.func @_bigram_gather_kernel(%arg0: i32, %arg1: memref<1024x1xi32, #tpu.memory_space<vmem>>, %arg2: memref<3x128x128xbf16, #tpu.memory_space<vmem>>, %arg3: memref<1024x128xf32, #tpu.memory_space<vmem>>) attributes {dimension_semantics = [#tpu.dimension_semantics<parallel>], iteration_bounds = array<i64: 2>, scalar_prefetch = 0 : i64, scratch_operands = 0 : i64, tpu.core_type = #tpu.core_type<tc>, window_params = [{transform_indices = @transform_0, window_bounds = array<i64: 1024, 1>}, {pipeline_mode = #tpu.pipeline_mode<synchronous>, transform_indices = @transform_1, window_bounds = array<i64: 3, 128, 128>}, {transform_indices = @transform_2, window_bounds = array<i64: 1024, 128>}]} {
    %c0 = arith.constant 0 : index
    %c0_0 = arith.constant 0 : index
    %0 = vector.load %arg1[%c0, %c0_0] : memref<1024x1xi32, #tpu.memory_space<vmem>>, vector<1024x1xi32>
    %1 = tpu.iota {dimensions = array<i32: 1>} : vector<1024x128xi32>
    %2 = vector.broadcast %0 : vector<1024x1xi32> to vector<1024x128xi32>
    %3 = arith.cmpi eq, %2, %1 : vector<1024x128xi32>
    %4 = arith.extui %3 : vector<1024x128xi1> to vector<1024x128xi32>
    %5 = arith.sitofp %4 : vector<1024x128xi32> to vector<1024x128xf32>
    %6 = arith.truncf %5 : vector<1024x128xf32> to vector<1024x128xbf16>
    %c0_1 = arith.constant 0 : index
    %c0_2 = arith.constant 0 : index
    %c0_3 = arith.constant 0 : index
    %7 = vector.load %arg2[%c0_1, %c0_2, %c0_3] : memref<3x128x128xbf16, #tpu.memory_space<vmem>>, vector<1x128x128xbf16>
    %8 = vector.shape_cast %7 : vector<1x128x128xbf16> to vector<128x128xbf16>
    %cst = arith.constant dense<0.000000e+00> : vector<1024x128xf32>
    %9 = tpu.matmul %6, %8, %cst {dimension_numbers = #tpu.dot_dimension_numbers<[1], [0], [0], [1], [0, 0, 1, 1], [], []>} : vector<1024x128xbf16>, vector<128x128xbf16>, vector<1024x128xf32> -> vector<1024x128xf32>
    %c1 = arith.constant 1 : index
    %c0_4 = arith.constant 0 : index
    %c0_5 = arith.constant 0 : index
    %10 = vector.load %arg2[%c1, %c0_4, %c0_5] : memref<3x128x128xbf16, #tpu.memory_space<vmem>>, vector<1x128x128xbf16>
    %11 = vector.shape_cast %10 : vector<1x128x128xbf16> to vector<128x128xbf16>
    %cst_6 = arith.constant dense<0.000000e+00> : vector<1024x128xf32>
    %12 = tpu.matmul %6, %11, %cst_6 {dimension_numbers = #tpu.dot_dimension_numbers<[1], [0], [0], [1], [0, 0, 1, 1], [], []>} : vector<1024x128xbf16>, vector<128x128xbf16>, vector<1024x128xf32> -> vector<1024x128xf32>
    %13 = arith.addf %9, %12 : vector<1024x128xf32>
    %c2 = arith.constant 2 : index
    %c0_7 = arith.constant 0 : index
    %c0_8 = arith.constant 0 : index
    %14 = vector.load %arg2[%c2, %c0_7, %c0_8] : memref<3x128x128xbf16, #tpu.memory_space<vmem>>, vector<1x128x128xbf16>
    %15 = vector.shape_cast %14 : vector<1x128x128xbf16> to vector<128x128xbf16>
    %cst_9 = arith.constant dense<0.000000e+00> : vector<1024x128xf32>
    %16 = tpu.matmul %6, %15, %cst_9 {dimension_numbers = #tpu.dot_dimension_numbers<[1], [0], [0], [1], [0, 0, 1, 1], [], []>} : vector<1024x128xbf16>, vector<128x128xbf16>, vector<1024x128xf32> -> vector<1024x128xf32>
    %17 = arith.addf %13, %16 : vector<1024x128xf32>
    %c0_10 = arith.constant 0 : index
    %c0_11 = arith.constant 0 : index
    %18 = vector.load %arg3[%c0_10, %c0_11] : memref<1024x128xf32, #tpu.memory_space<vmem>>, vector<1024x128xf32>
    tpu.vector_store %arg3[%c0_10, %c0_11], %17 {strides = array<i32>} : memref<1024x128xf32, #tpu.memory_space<vmem>>, vector<1024x128xf32>,
    return
  }
  func.func @transform_0(%arg0: i32) -> (i32, i32) {
    %c0_i32 = arith.constant 0 : i32
    %c0_i32_0 = arith.constant 0 : i32
    return %arg0, %c0_i32 : i32, i32
  }
  func.func @transform_1(%arg0: i32) -> (i32, i32, i32) {
    %c0_i32 = arith.constant 0 : i32
    %c0_i32_0 = arith.constant 0 : i32
    %c0_i32_1 = arith.constant 0 : i32
    %c0_i32_2 = arith.constant 0 : i32
    return %c0_i32, %c0_i32_0, %c0_i32_1 : i32, i32, i32
  }
  func.func @transform_2(%arg0: i32) -> (i32, i32) {
    %c0_i32 = arith.constant 0 : i32
    %c0_i32_0 = arith.constant 0 : i32
    return %arg0, %c0_i32 : i32, i32
  }
}

</mosaic_0001>

<llo_original>
// kernel: tpu_custom_call.1
$region0: #{tpu_custom_call.1}
  #allocation0 [shape = 'u32[]', space=smem, size = 0x4, offset = 0x4, fixed_abs, tag = 'smem constant byte address 0x4 - core index']
  #allocation1 [shape = 'u32[144,128]{1,0:T(1,128)}', space=vmem, size = 0x12000, scoped, tag = 'internal scratch']
  %s0 = inlined_call_operand.vmem [shape: s32[2048,1], index: 0, kind: input, shape index: {}]
  %s1 = inlined_call_operand.vmem [shape: bf16[3,128,128], index: 1, kind: input, shape index: {}]
  %s2 = inlined_call_operand.hbm [shape: f32[2048,128], index: 2, kind: output, shape index: {}]
  %s3 = sld [smem:[#allocation0]]
  $region41: #{tpu_custom_call.1} parent=0
    _
  %s5 = ssub.s32 1, %s3
  %s6 = scalar_select 0, %s5, %s3
  $region1: #{tpu_custom_call.1} parent=0
    #allocation2 [shape = 'u8[1048576]{0}', space=vmem, size = 0x100000, scoped, tag = 'output window, operand 0']
    #allocation3 [shape = 's32[2]{0}', space=sflag, size = 0x8, scoped, tag = 'scoped memory for tpu_custom_call.1']
    %7 = vsyncpa [#allocation3], 0
    %s8 = scalar_lea.sflag [#allocation3], 1
    %9 = vsyncpa %s8, 0
    loop: start=0, step=1, limit=4
    $region2: #{tpu_custom_call.1} parent=1 // loop_pre_header
      _
    $region3: #{tpu_custom_call.1} parent=1 // loop_header
      %s11 = sphi 0, %s15
      %p12 = scmp.ge.s32.totalorder %s11, 4
      %s21 = sphi 0, %s23
      %s24 = sphi 0, %s21
      %s25 = sphi 0, %s24
      %s41 = sphi 0, %s25
      %s45 = sphi 0, %s45
      %s47 = sphi 0, %s45
      %s48 = sphi 0, %s47
      %s62 = sphi 0, %s48
      %s68 = sphi 0, %s70
      %s71 = sphi 0, %s68
      %s72 = sphi 0, %s71
      %s88 = sphi 0, %s72
    $region4: #{tpu_custom_call.1} parent=1 // loop_header_branch
      %14 = sbr.rel (%p12) target = $region8
    $region5: #{tpu_custom_call.1} parent=1 // loop_body
      %s16 = ssub.s32 %s11, 1
      %s17 = ssub.s32 %s11, 2
      %s18 = sadd.s32 %s11, 1
      %s19 = ssub.s32 %s11, %s18
      %p20 = scmp.eq.s32.totalorder %s19, 0
      %s22 = sadd.s32 %s21, 1
      %s23 = scalar_select %p20, %s21, %s22
      %p26 = pneg %p20
      %p27 = scmp.eq.s32.totalorder %s11, 1
      %p28 = por %p26, %p27
      %p29 = scmp.ne.s32.totalorder %s21, %s24
      %p30 = scmp.eq.s32.totalorder %s11, 0
      %p31 = por %p29, %p30
      %p32 = scmp.ne.s32.totalorder %s21, %s24
      %p33 = scmp.eq.s32.totalorder %s16, 1
      %p34 = por %p32, %p33
      %p35 = scmp.ne.s32.totalorder %s24, %s25
      %p36 = scmp.eq.s32.totalorder %s16, 0
      %p37 = por %p35, %p36
      %p38 = scmp.ne.s32.totalorder %s24, %s25
      %p39 = scmp.eq.s32.totalorder %s17, 1
      %p40 = por %p38, %p39
      %p42 = scmp.ne.s32.totalorder %s25, %s41
      %p43 = scmp.eq.s32.totalorder %s17, 0
      %p44 = por %p42, %p43
      %s46 = sadd.s32 %s45, 1
      %p49 = scmp.eq.s32.totalorder %s11, 1
      %p50 = scmp.ne.s32.totalorder %s45, %s47
      %p51 = scmp.eq.s32.totalorder %s11, 0
      %p52 = por %p50, %p51
      %p53 = scmp.ne.s32.totalorder %s45, %s47
      %p54 = scmp.eq.s32.totalorder %s16, 1
      %p55 = por %p53, %p54
      %p56 = scmp.ne.s32.totalorder %s47, %s48
      %p57 = scmp.eq.s32.totalorder %s16, 0
      %p58 = por %p56, %p57
      %p59 = scmp.ne.s32.totalorder %s47, %s48
      %p60 = scmp.eq.s32.totalorder %s17, 1
      %p61 = por %p59, %p60
      %p63 = scmp.ne.s32.totalorder %s48, %s62
      %p64 = scmp.eq.s32.totalorder %s17, 0
      %p65 = por %p63, %p64
      %s66 = ssub.s32 %s11, %s18
      %p67 = scmp.eq.s32.totalorder %s66, 0
      %s69 = sadd.s32 %s68, 1
      %s70 = scalar_select %p67, %s68, %s69
      %p73 = pneg %p67
      %p74 = scmp.eq.s32.totalorder %s11, 1
      %p75 = por %p73, %p74
      %p76 = scmp.ne.s32.totalorder %s68, %s71
      %p77 = scmp.eq.s32.totalorder %s11, 0
      %p78 = por %p76, %p77
      %p79 = scmp.ne.s32.totalorder %s68, %s71
      %p80 = scmp.eq.s32.totalorder %s16, 1
      %p81 = por %p79, %p80
      %p82 = scmp.ne.s32.totalorder %s71, %s72
      %p83 = scmp.eq.s32.totalorder %s16, 0
      %p84 = por %p82, %p83
      %p85 = scmp.ne.s32.totalorder %s71, %s72
      %p86 = scmp.eq.s32.totalorder %s17, 1
      %p87 = por %p85, %p86
      %p89 = scmp.ne.s32.totalorder %s72, %s88
      %p90 = scmp.eq.s32.totalorder %s17, 0
      %p91 = por %p89, %p90
      %p92 = scmp.le.s32.totalorder 1, %s11
      %p93 = scmp.lt.s32.totalorder %s11, 3
      %p94 = pnand %p92, %p93
      %p95 = pneg %p94
      // Predicated region
      $region9: #{tpu_custom_call.1} parent=5 // pred_check
        _
      $region10: #{tpu_custom_call.1} parent=5 // pred_check_branch
        %97 = sbr.rel (%p94) target = $region12
      $region11: #{tpu_custom_call.1} parent=5 // pred_region
        %s98 = ssub.s32 %s11, 1
        // Predicated region
        $region13: #{tpu_custom_call.1} parent=11 // pred_check
          %p99 = pneg %p58
        $region14: #{tpu_custom_call.1} parent=11 // pred_check_branch
          %101 = sbr.rel (%p99) target = $region16
        $region15: #{tpu_custom_call.1} parent=11 // pred_region
          _
        $region16: #{tpu_custom_call.1} parent=11 // pred_fallthru
          _
      $region12: #{tpu_custom_call.1} parent=5 // pred_fallthru
        _
      %p102 = scmp.lt.s32.totalorder %s11, 2
      // Predicated region
      $region17: #{tpu_custom_call.1} parent=5 // pred_check
        %p103 = pneg %p102
      $region18: #{tpu_custom_call.1} parent=5 // pred_check_branch
        %105 = sbr.rel (%p103) target = $region20
      $region19: #{tpu_custom_call.1} parent=5 // pred_region
        // Predicated region
        $region21: #{tpu_custom_call.1} parent=19 // pred_check
          %p106 = pneg %p31
        $region22: #{tpu_custom_call.1} parent=19 // pred_check_branch
          %108 = sbr.rel (%p106) target = $region24
        $region23: #{tpu_custom_call.1} parent=19 // pred_region
          %s109 = smul.u32 128, %s11
          %p110 = scmp.lt.s32.totalorder %s109, 255
          %s111 = scalar_select %p110, %s109, 255
          %s112 = smul.addr %s111, 8
          %s113 = scalar_lea.vmem %s0, %s112
          %s114 = smul.u32 128, %s11
        $region24: #{tpu_custom_call.1} parent=19 // pred_fallthru
          _
      $region20: #{tpu_custom_call.1} parent=5 // pred_fallthru
        _
      %p115 = scmp.le.s32.totalorder 1, %s11
      %p116 = scmp.lt.s32.totalorder %s11, 3
      %p117 = pnand %p115, %p116
      %p118 = pneg %p117
      // Predicated region
      $region25: #{tpu_custom_call.1} parent=5 // pred_check
        _
      $region26: #{tpu_custom_call.1} parent=5 // pred_check_branch
        %120 = sbr.rel (%p117) target = $region28
      $region27: #{tpu_custom_call.1} parent=5 // pred_region
        %s121 = ssub.s32 %s11, 1
        %s122 = smul.u32 128, %s16
        %p123 = scmp.lt.s32.totalorder %s122, 255
        %s124 = scalar_select %p123, %s122, 255
        %s125 = smul.addr %s124, 8
        %s126 = scalar_lea.vmem %s0, %s125
        %p127 = pneg %p37
        %p128 = pneg %p34
        %p129 = pneg %p58
        %p130 = pneg %p55
        %p131 = pneg %p84
        %p132 = pneg %p81
        %s133 = sand.u32 %s71, 1
        %s134 = scalar_lea.sflag [#allocation3], %s133
        %s135 = sand.u32 %s71, 1
        %s136 = smul.addr %s135, 1024
        %s137 = scalar_lea.vmem [#allocation2], %s136
        %s138 = smul.u32 128, %s16
        %p139 = scmp.lt.s32.totalorder %s138, 255
        %s140 = scalar_select %p139, %s138, 255
        %s141 = smul.addr %s140, 8
        %s142 = scalar_lea.vmem %s0, %s141
        %s143 = smul.u32 128, %s16
        %s144 = smul.u32 128, %s16
        %v146 = vld [vmem:[%s142] sm:$0xff]
        %v147 = vld [vmem:[%s142 + $0x8] sm:$0xff]
        %v148 = vld [vmem:[%s142 + $0x10] sm:$0xff]
        %v149 = vld [vmem:[%s142 + $0x18] sm:$0xff]
        %v150 = vld [vmem:[%s142 + $0x20] sm:$0xff]
        %v151 = vld [vmem:[%s142 + $0x28] sm:$0xff]
        %v152 = vld [vmem:[%s142 + $0x30] sm:$0xff]
        %v153 = vld [vmem:[%s142 + $0x38] sm:$0xff]
        %v154 = vld [vmem:[%s142 + $0x40] sm:$0xff]
        %v155 = vld [vmem:[%s142 + $0x48] sm:$0xff]
        %v156 = vld [vmem:[%s142 + $0x50] sm:$0xff]
        %v157 = vld [vmem:[%s142 + $0x58] sm:$0xff]
        %v158 = vld [vmem:[%s142 + $0x60] sm:$0xff]
        %v159 = vld [vmem:[%s142 + $0x68] sm:$0xff]
        %v160 = vld [vmem:[%s142 + $0x70] sm:$0xff]
        %v161 = vld [vmem:[%s142 + $0x78] sm:$0xff]
        %v162 = vld [vmem:[%s142 + $0x80] sm:$0xff]
        %v163 = vld [vmem:[%s142 + $0x88] sm:$0xff]
        %v164 = vld [vmem:[%s142 + $0x90] sm:$0xff]
        %v165 = vld [vmem:[%s142 + $0x98] sm:$0xff]
        %v166 = vld [vmem:[%s142 + $0xa0] sm:$0xff]
        %v167 = vld [vmem:[%s142 + $0xa8] sm:$0xff]
        %v168 = vld [vmem:[%s142 + $0xb0] sm:$0xff]
        %v169 = vld [vmem:[%s142 + $0xb8] sm:$0xff]
        %v170 = vld [vmem:[%s142 + $0xc0] sm:$0xff]
        %v171 = vld [vmem:[%s142 + $0xc8] sm:$0xff]
        %v172 = vld [vmem:[%s142 + $0xd0] sm:$0xff]
        %v173 = vld [vmem:[%s142 + $0xd8] sm:$0xff]
        %v174 = vld [vmem:[%s142 + $0xe0] sm:$0xff]
        %v175 = vld [vmem:[%s142 + $0xe8] sm:$0xff]
        %v176 = vld [vmem:[%s142 + $0xf0] sm:$0xff]
        %v177 = vld [vmem:[%s142 + $0xf8] sm:$0xff]
        %v178 = vld [vmem:[%s142 + $0x100] sm:$0xff]
        %v179 = vld [vmem:[%s142 + $0x108] sm:$0xff]
        %v180 = vld [vmem:[%s142 + $0x110] sm:$0xff]
        %v181 = vld [vmem:[%s142 + $0x118] sm:$0xff]
        %v182 = vld [vmem:[%s142 + $0x120] sm:$0xff]
        %v183 = vld [vmem:[%s142 + $0x128] sm:$0xff]
        %v184 = vld [vmem:[%s142 + $0x130] sm:$0xff]
        %v185 = vld [vmem:[%s142 + $0x138] sm:$0xff]
        %v186 = vld [vmem:[%s142 + $0x140] sm:$0xff]
        %v187 = vld [vmem:[%s142 + $0x148] sm:$0xff]
        %v188 = vld [vmem:[%s142 + $0x150] sm:$0xff]
        %v189 = vld [vmem:[%s142 + $0x158] sm:$0xff]
        %v190 = vld [vmem:[%s142 + $0x160] sm:$0xff]
        %v191 = vld [vmem:[%s142 + $0x168] sm:$0xff]
        %v192 = vld [vmem:[%s142 + $0x170] sm:$0xff]
        %v193 = vld [vmem:[%s142 + $0x178] sm:$0xff]
        %v194 = vld [vmem:[%s142 + $0x180] sm:$0xff]
        %v195 = vld [vmem:[%s142 + $0x188] sm:$0xff]
        %v196 = vld [vmem:[%s142 + $0x190] sm:$0xff]
        %v197 = vld [vmem:[%s142 + $0x198] sm:$0xff]
        %v198 = vld [vmem:[%s142 + $0x1a0] sm:$0xff]
        %v199 = vld [vmem:[%s142 + $0x1a8] sm:$0xff]
        %v200 = vld [vmem:[%s142 + $0x1b0] sm:$0xff]
        %v201 = vld [vmem:[%s142 + $0x1b8] sm:$0xff]
        %v202 = vld [vmem:[%s142 + $0x1c0] sm:$0xff]
        %v203 = vld [vmem:[%s142 + $0x1c8] sm:$0xff]
        %v204 = vld [vmem:[%s142 + $0x1d0] sm:$0xff]
        %v205 = vld [vmem:[%s142 + $0x1d8] sm:$0xff]
        %v206 = vld [vmem:[%s142 + $0x1e0] sm:$0xff]
        %v207 = vld [vmem:[%s142 + $0x1e8] sm:$0xff]
        %v208 = vld [vmem:[%s142 + $0x1f0] sm:$0xff]
        %v209 = vld [vmem:[%s142 + $0x1f8] sm:$0xff]
        %v210 = vld [vmem:[%s142 + $0x200] sm:$0xff]
        %v211 = vld [vmem:[%s142 + $0x208] sm:$0xff]
        %v212 = vld [vmem:[%s142 + $0x210] sm:$0xff]
        %v213 = vld [vmem:[%s142 + $0x218] sm:$0xff]
        %v214 = vld [vmem:[%s142 + $0x220] sm:$0xff]
        %v215 = vld [vmem:[%s142 + $0x228] sm:$0xff]
        %v216 = vld [vmem:[%s142 + $0x230] sm:$0xff]
        %v217 = vld [vmem:[%s142 + $0x238] sm:$0xff]
        %v218 = vld [vmem:[%s142 + $0x240] sm:$0xff]
        %v219 = vld [vmem:[%s142 + $0x248] sm:$0xff]
        %v220 = vld [vmem:[%s142 + $0x250] sm:$0xff]
        %v221 = vld [vmem:[%s142 + $0x258] sm:$0xff]
        %v222 = vld [vmem:[%s142 + $0x260] sm:$0xff]
        %v223 = vld [vmem:[%s142 + $0x268] sm:$0xff]
        %v224 = vld [vmem:[%s142 + $0x270] sm:$0xff]
        %v225 = vld [vmem:[%s142 + $0x278] sm:$0xff]
        %v226 = vld [vmem:[%s142 + $0x280] sm:$0xff]
        %v227 = vld [vmem:[%s142 + $0x288] sm:$0xff]
        %v228 = vld [vmem:[%s142 + $0x290] sm:$0xff]
        %v229 = vld [vmem:[%s142 + $0x298] sm:$0xff]
        %v230 = vld [vmem:[%s142 + $0x2a0] sm:$0xff]
        %v231 = vld [vmem:[%s142 + $0x2a8] sm:$0xff]
        %v232 = vld [vmem:[%s142 + $0x2b0] sm:$0xff]
        %v233 = vld [vmem:[%s142 + $0x2b8] sm:$0xff]
        %v234 = vld [vmem:[%s142 + $0x2c0] sm:$0xff]
        %v235 = vld [vmem:[%s142 + $0x2c8] sm:$0xff]
        %v236 = vld [vmem:[%s142 + $0x2d0] sm:$0xff]
        %v237 = vld [vmem:[%s142 + $0x2d8] sm:$0xff]
        %v238 = vld [vmem:[%s142 + $0x2e0] sm:$0xff]
        %v239 = vld [vmem:[%s142 + $0x2e8] sm:$0xff]
        %v240 = vld [vmem:[%s142 + $0x2f0] sm:$0xff]
        %v241 = vld [vmem:[%s142 + $0x2f8] sm:$0xff]
        %v242 = vld [vmem:[%s142 + $0x300] sm:$0xff]
        %v243 = vld [vmem:[%s142 + $0x308] sm:$0xff]
        %v244 = vld [vmem:[%s142 + $0x310] sm:$0xff]
        %v245 = vld [vmem:[%s142 + $0x318] sm:$0xff]
        %v246 = vld [vmem:[%s142 + $0x320] sm:$0xff]
        %v247 = vld [vmem:[%s142 + $0x328] sm:$0xff]
        %v248 = vld [vmem:[%s142 + $0x330] sm:$0xff]
        %v249 = vld [vmem:[%s142 + $0x338] sm:$0xff]
        %v250 = vld [vmem:[%s142 + $0x340] sm:$0xff]
        %v251 = vld [vmem:[%s142 + $0x348] sm:$0xff]
        %v252 = vld [vmem:[%s142 + $0x350] sm:$0xff]
        %v253 = vld [vmem:[%s142 + $0x358] sm:$0xff]
        %v254 = vld [vmem:[%s142 + $0x360] sm:$0xff]
        %v255 = vld [vmem:[%s142 + $0x368] sm:$0xff]
        %v256 = vld [vmem:[%s142 + $0x370] sm:$0xff]
        %v257 = vld [vmem:[%s142 + $0x378] sm:$0xff]
        %v258 = vld [vmem:[%s142 + $0x380] sm:$0xff]
        %v259 = vld [vmem:[%s142 + $0x388] sm:$0xff]
        %v260 = vld [vmem:[%s142 + $0x390] sm:$0xff]
        %v261 = vld [vmem:[%s142 + $0x398] sm:$0xff]
        %v262 = vld [vmem:[%s142 + $0x3a0] sm:$0xff]
        %v263 = vld [vmem:[%s142 + $0x3a8] sm:$0xff]
        %v264 = vld [vmem:[%s142 + $0x3b0] sm:$0xff]
        %v265 = vld [vmem:[%s142 + $0x3b8] sm:$0xff]
        %v266 = vld [vmem:[%s142 + $0x3c0] sm:$0xff]
        %v267 = vld [vmem:[%s142 + $0x3c8] sm:$0xff]
        %v268 = vld [vmem:[%s142 + $0x3d0] sm:$0xff]
        %v269 = vld [vmem:[%s142 + $0x3d8] sm:$0xff]
        %v270 = vld [vmem:[%s142 + $0x3e0] sm:$0xff]
        %v271 = vld [vmem:[%s142 + $0x3e8] sm:$0xff]
        %v272 = vld [vmem:[%s142 + $0x3f0] sm:$0xff]
        %v273 = vld [vmem:[%s142 + $0x3f8] sm:$0xff]
        %v274 = vlaneseq
        %v275 = vand.u32 %v274, 127
        %276 = vset.pattern.permute.xlu0 0
        %277 = vperm.xlu0 %276, %v146
        %v278 = vpop.permute.xlu0 %277
        %279 = vset.pattern.permute.xlu0 0
        %280 = vperm.xlu0 %279, %v147
        %v281 = vpop.permute.xlu0 %280
        %282 = vset.pattern.permute.xlu0 0
        %283 = vperm.xlu0 %282, %v148
        %v284 = vpop.permute.xlu0 %283
        %285 = vset.pattern.permute.xlu0 0
        %286 = vperm.xlu0 %285, %v149
        %v287 = vpop.permute.xlu0 %286
        %288 = vset.pattern.permute.xlu0 0
        %289 = vperm.xlu0 %288, %v150
        %v290 = vpop.permute.xlu0 %289
        %291 = vset.pattern.permute.xlu0 0
        %292 = vperm.xlu0 %291, %v151
        %v293 = vpop.permute.xlu0 %292
        %294 = vset.pattern.permute.xlu0 0
        %295 = vperm.xlu0 %294, %v152
        %v296 = vpop.permute.xlu0 %295
        %297 = vset.pattern.permute.xlu0 0
        %298 = vperm.xlu0 %297, %v153
        %v299 = vpop.permute.xlu0 %298
        %300 = vset.pattern.permute.xlu0 0
        %301 = vperm.xlu0 %300, %v154
        %v302 = vpop.permute.xlu0 %301
        %303 = vset.pattern.permute.xlu0 0
        %304 = vperm.xlu0 %303, %v155
        %v305 = vpop.permute.xlu0 %304
        %306 = vset.pattern.permute.xlu0 0
        %307 = vperm.xlu0 %306, %v156
        %v308 = vpop.permute.xlu0 %307
        %309 = vset.pattern.permute.xlu0 0
        %310 = vperm.xlu0 %309, %v157
        %v311 = vpop.permute.xlu0 %310
        %312 = vset.pattern.permute.xlu0 0
        %313 = vperm.xlu0 %312, %v158
        %v314 = vpop.permute.xlu0 %313
        %315 = vset.pattern.permute.xlu0 0
        %316 = vperm.xlu0 %315, %v159
        %v317 = vpop.permute.xlu0 %316
        %318 = vset.pattern.permute.xlu0 0
        %319 = vperm.xlu0 %318, %v160
        %v320 = vpop.permute.xlu0 %319
        %321 = vset.pattern.permute.xlu0 0
        %322 = vperm.xlu0 %321, %v161
        %v323 = vpop.permute.xlu0 %322
        %324 = vset.pattern.permute.xlu0 0
        %325 = vperm.xlu0 %324, %v162
        %v326 = vpop.permute.xlu0 %325
        %327 = vset.pattern.permute.xlu0 0
        %328 = vperm.xlu0 %327, %v163
        %v329 = vpop.permute.xlu0 %328
        %330 = vset.pattern.permute.xlu0 0
        %331 = vperm.xlu0 %330, %v164
        %v332 = vpop.permute.xlu0 %331
        %333 = vset.pattern.permute.xlu0 0
        %334 = vperm.xlu0 %333, %v165
        %v335 = vpop.permute.xlu0 %334
        %336 = vset.pattern.permute.xlu0 0
        %337 = vperm.xlu0 %336, %v166
        %v338 = vpop.permute.xlu0 %337
        %339 = vset.pattern.permute.xlu0 0
        %340 = vperm.xlu0 %339, %v167
        %v341 = vpop.permute.xlu0 %340
        %342 = vset.pattern.permute.xlu0 0
        %343 = vperm.xlu0 %342, %v168
        %v344 = vpop.permute.xlu0 %343
        %345 = vset.pattern.permute.xlu0 0
        %346 = vperm.xlu0 %345, %v169
        %v347 = vpop.permute.xlu0 %346
        %348 = vset.pattern.permute.xlu0 0
        %349 = vperm.xlu0 %348, %v170
        %v350 = vpop.permute.xlu0 %349
        %351 = vset.pattern.permute.xlu0 0
        %352 = vperm.xlu0 %351, %v171
        %v353 = vpop.permute.xlu0 %352
        %354 = vset.pattern.permute.xlu0 0
        %355 = vperm.xlu0 %354, %v172
        %v356 = vpop.permute.xlu0 %355
        %357 = vset.pattern.permute.xlu0 0
        %358 = vperm.xlu0 %357, %v173
        %v359 = vpop.permute.xlu0 %358
        %360 = vset.pattern.permute.xlu0 0
        %361 = vperm.xlu0 %360, %v174
        %v362 = vpop.permute.xlu0 %361
        %363 = vset.pattern.permute.xlu0 0
        %364 = vperm.xlu0 %363, %v175
        %v365 = vpop.permute.xlu0 %364
        %366 = vset.pattern.permute.xlu0 0
        %367 = vperm.xlu0 %366, %v176
        %v368 = vpop.permute.xlu0 %367
        %369 = vset.pattern.permute.xlu0 0
        %370 = vperm.xlu0 %369, %v177
        %v371 = vpop.permute.xlu0 %370
        %372 = vset.pattern.permute.xlu0 0
        %373 = vperm.xlu0 %372, %v178
        %v374 = vpop.permute.xlu0 %373
        %375 = vset.pattern.permute.xlu0 0
        %376 = vperm.xlu0 %375, %v179
        %v377 = vpop.permute.xlu0 %376
        %378 = vset.pattern.permute.xlu0 0
        %379 = vperm.xlu0 %378, %v180
        %v380 = vpop.permute.xlu0 %379
        %381 = vset.pattern.permute.xlu0 0
        %382 = vperm.xlu0 %381, %v181
        %v383 = vpop.permute.xlu0 %382
        %384 = vset.pattern.permute.xlu0 0
        %385 = vperm.xlu0 %384, %v182
        %v386 = vpop.permute.xlu0 %385
        %387 = vset.pattern.permute.xlu0 0
        %388 = vperm.xlu0 %387, %v183
        %v389 = vpop.permute.xlu0 %388
        %390 = vset.pattern.permute.xlu0 0
        %391 = vperm.xlu0 %390, %v184
        %v392 = vpop.permute.xlu0 %391
        %393 = vset.pattern.permute.xlu0 0
        %394 = vperm.xlu0 %393, %v185
        %v395 = vpop.permute.xlu0 %394
        %396 = vset.pattern.permute.xlu0 0
        %397 = vperm.xlu0 %396, %v186
        %v398 = vpop.permute.xlu0 %397
        %399 = vset.pattern.permute.xlu0 0
        %400 = vperm.xlu0 %399, %v187
        %v401 = vpop.permute.xlu0 %400
        %402 = vset.pattern.permute.xlu0 0
        %403 = vperm.xlu0 %402, %v188
        %v404 = vpop.permute.xlu0 %403
        %405 = vset.pattern.permute.xlu0 0
        %406 = vperm.xlu0 %405, %v189
        %v407 = vpop.permute.xlu0 %406
        %408 = vset.pattern.permute.xlu0 0
        %409 = vperm.xlu0 %408, %v190
        %v410 = vpop.permute.xlu0 %409
        %411 = vset.pattern.permute.xlu0 0
        %412 = vperm.xlu0 %411, %v191
        %v413 = vpop.permute.xlu0 %412
        %414 = vset.pattern.permute.xlu0 0
        %415 = vperm.xlu0 %414, %v192
        %v416 = vpop.permute.xlu0 %415
        %417 = vset.pattern.permute.xlu0 0
        %418 = vperm.xlu0 %417, %v193
        %v419 = vpop.permute.xlu0 %418
        %420 = vset.pattern.permute.xlu0 0
        %421 = vperm.xlu0 %420, %v194
        %v422 = vpop.permute.xlu0 %421
        %423 = vset.pattern.permute.xlu0 0
        %424 = vperm.xlu0 %423, %v195
        %v425 = vpop.permute.xlu0 %424
        %426 = vset.pattern.permute.xlu0 0
        %427 = vperm.xlu0 %426, %v196
        %v428 = vpop.permute.xlu0 %427
        %429 = vset.pattern.permute.xlu0 0
        %430 = vperm.xlu0 %429, %v197
        %v431 = vpop.permute.xlu0 %430
        %432 = vset.pattern.permute.xlu0 0
        %433 = vperm.xlu0 %432, %v198
        %v434 = vpop.permute.xlu0 %433
        %435 = vset.pattern.permute.xlu0 0
        %436 = vperm.xlu0 %435, %v199
        %v437 = vpop.permute.xlu0 %436
        %438 = vset.pattern.permute.xlu0 0
        %439 = vperm.xlu0 %438, %v200
        %v440 = vpop.permute.xlu0 %439
        %441 = vset.pattern.permute.xlu0 0
        %442 = vperm.xlu0 %441, %v201
        %v443 = vpop.permute.xlu0 %442
        %444 = vset.pattern.permute.xlu0 0
        %445 = vperm.xlu0 %444, %v202
        %v446 = vpop.permute.xlu0 %445
        %447 = vset.pattern.permute.xlu0 0
        %448 = vperm.xlu0 %447, %v203
        %v449 = vpop.permute.xlu0 %448
        %450 = vset.pattern.permute.xlu0 0
        %451 = vperm.xlu0 %450, %v204
        %v452 = vpop.permute.xlu0 %451
        %453 = vset.pattern.permute.xlu0 0
        %454 = vperm.xlu0 %453, %v205
        %v455 = vpop.permute.xlu0 %454
        %456 = vset.pattern.permute.xlu0 0
        %457 = vperm.xlu0 %456, %v206
        %v458 = vpop.permute.xlu0 %457
        %459 = vset.pattern.permute.xlu0 0
        %460 = vperm.xlu0 %459, %v207
        %v461 = vpop.permute.xlu0 %460
        %462 = vset.pattern.permute.xlu0 0
        %463 = vperm.xlu0 %462, %v208
        %v464 = vpop.permute.xlu0 %463
        %465 = vset.pattern.permute.xlu0 0
        %466 = vperm.xlu0 %465, %v209
        %v467 = vpop.permute.xlu0 %466
        %468 = vset.pattern.permute.xlu0 0
        %469 = vperm.xlu0 %468, %v210
        %v470 = vpop.permute.xlu0 %469
        %471 = vset.pattern.permute.xlu0 0
        %472 = vperm.xlu0 %471, %v211
        %v473 = vpop.permute.xlu0 %472
        %474 = vset.pattern.permute.xlu0 0
        %475 = vperm.xlu0 %474, %v212
        %v476 = vpop.permute.xlu0 %475
        %477 = vset.pattern.permute.xlu0 0
        %478 = vperm.xlu0 %477, %v213
        %v479 = vpop.permute.xlu0 %478
        %480 = vset.pattern.permute.xlu0 0
        %481 = vperm.xlu0 %480, %v214
        %v482 = vpop.permute.xlu0 %481
        %483 = vset.pattern.permute.xlu0 0
        %484 = vperm.xlu0 %483, %v215
        %v485 = vpop.permute.xlu0 %484
        %486 = vset.pattern.permute.xlu0 0
        %487 = vperm.xlu0 %486, %v216
        %v488 = vpop.permute.xlu0 %487
        %489 = vset.pattern.permute.xlu0 0
        %490 = vperm.xlu0 %489, %v217
        %v491 = vpop.permute.xlu0 %490
        %492 = vset.pattern.permute.xlu0 0
        %493 = vperm.xlu0 %492, %v218
        %v494 = vpop.permute.xlu0 %493
        %495 = vset.pattern.permute.xlu0 0
        %496 = vperm.xlu0 %495, %v219
        %v497 = vpop.permute.xlu0 %496
        %498 = vset.pattern.permute.xlu0 0
        %499 = vperm.xlu0 %498, %v220
        %v500 = vpop.permute.xlu0 %499
        %501 = vset.pattern.permute.xlu0 0
        %502 = vperm.xlu0 %501, %v221
        %v503 = vpop.permute.xlu0 %502
        %504 = vset.pattern.permute.xlu0 0
        %505 = vperm.xlu0 %504, %v222
        %v506 = vpop.permute.xlu0 %505
        %507 = vset.pattern.permute.xlu0 0
        %508 = vperm.xlu0 %507, %v223
        %v509 = vpop.permute.xlu0 %508
        %510 = vset.pattern.permute.xlu0 0
        %511 = vperm.xlu0 %510, %v224
        %v512 = vpop.permute.xlu0 %511
        %513 = vset.pattern.permute.xlu0 0
        %514 = vperm.xlu0 %513, %v225
        %v515 = vpop.permute.xlu0 %514
        %516 = vset.pattern.permute.xlu0 0
        %517 = vperm.xlu0 %516, %v226
        %v518 = vpop.permute.xlu0 %517
        %519 = vset.pattern.permute.xlu0 0
        %520 = vperm.xlu0 %519, %v227
        %v521 = vpop.permute.xlu0 %520
        %522 = vset.pattern.permute.xlu0 0
        %523 = vperm.xlu0 %522, %v228
        %v524 = vpop.permute.xlu0 %523
        %525 = vset.pattern.permute.xlu0 0
        %526 = vperm.xlu0 %525, %v229
        %v527 = vpop.permute.xlu0 %526
        %528 = vset.pattern.permute.xlu0 0
        %529 = vperm.xlu0 %528, %v230
        %v530 = vpop.permute.xlu0 %529
        %531 = vset.pattern.permute.xlu0 0
        %532 = vperm.xlu0 %531, %v231
        %v533 = vpop.permute.xlu0 %532
        %534 = vset.pattern.permute.xlu0 0
        %535 = vperm.xlu0 %534, %v232
        %v536 = vpop.permute.xlu0 %535
        %537 = vset.pattern.permute.xlu0 0
        %538 = vperm.xlu0 %537, %v233
        %v539 = vpop.permute.xlu0 %538
        %540 = vset.pattern.permute.xlu0 0
        %541 = vperm.xlu0 %540, %v234
        %v542 = vpop.permute.xlu0 %541
        %543 = vset.pattern.permute.xlu0 0
        %544 = vperm.xlu0 %543, %v235
        %v545 = vpop.permute.xlu0 %544
        %546 = vset.pattern.permute.xlu0 0
        %547 = vperm.xlu0 %546, %v236
        %v548 = vpop.permute.xlu0 %547
        %549 = vset.pattern.permute.xlu0 0
        %550 = vperm.xlu0 %549, %v237
        %v551 = vpop.permute.xlu0 %550
        %552 = vset.pattern.permute.xlu0 0
        %553 = vperm.xlu0 %552, %v238
        %v554 = vpop.permute.xlu0 %553
        %555 = vset.pattern.permute.xlu0 0
        %556 = vperm.xlu0 %555, %v239
        %v557 = vpop.permute.xlu0 %556
        %558 = vset.pattern.permute.xlu0 0
        %559 = vperm.xlu0 %558, %v240
        %v560 = vpop.permute.xlu0 %559
        %561 = vset.pattern.permute.xlu0 0
        %562 = vperm.xlu0 %561, %v241
        %v563 = vpop.permute.xlu0 %562
        %564 = vset.pattern.permute.xlu0 0
        %565 = vperm.xlu0 %564, %v242
        %v566 = vpop.permute.xlu0 %565
        %567 = vset.pattern.permute.xlu0 0
        %568 = vperm.xlu0 %567, %v243
        %v569 = vpop.permute.xlu0 %568
        %570 = vset.pattern.permute.xlu0 0
        %571 = vperm.xlu0 %570, %v244
        %v572 = vpop.permute.xlu0 %571
        %573 = vset.pattern.permute.xlu0 0
        %574 = vperm.xlu0 %573, %v245
        %v575 = vpop.permute.xlu0 %574
        %576 = vset.pattern.permute.xlu0 0
        %577 = vperm.xlu0 %576, %v246
        %v578 = vpop.permute.xlu0 %577
        %579 = vset.pattern.permute.xlu0 0
        %580 = vperm.xlu0 %579, %v247
        %v581 = vpop.permute.xlu0 %580
        %582 = vset.pattern.permute.xlu0 0
        %583 = vperm.xlu0 %582, %v248
        %v584 = vpop.permute.xlu0 %583
        %585 = vset.pattern.permute.xlu0 0
        %586 = vperm.xlu0 %585, %v249
        %v587 = vpop.permute.xlu0 %586
        %588 = vset.pattern.permute.xlu0 0
        %589 = vperm.xlu0 %588, %v250
        %v590 = vpop.permute.xlu0 %589
        %591 = vset.pattern.permute.xlu0 0
        %592 = vperm.xlu0 %591, %v251
        %v593 = vpop.permute.xlu0 %592
        %594 = vset.pattern.permute.xlu0 0
        %595 = vperm.xlu0 %594, %v252
        %v596 = vpop.permute.xlu0 %595
        %597 = vset.pattern.permute.xlu0 0
        %598 = vperm.xlu0 %597, %v253
        %v599 = vpop.permute.xlu0 %598
        %600 = vset.pattern.permute.xlu0 0
        %601 = vperm.xlu0 %600, %v254
        %v602 = vpop.permute.xlu0 %601
        %603 = vset.pattern.permute.xlu0 0
        %604 = vperm.xlu0 %603, %v255
        %v605 = vpop.permute.xlu0 %604
        %606 = vset.pattern.permute.xlu0 0
        %607 = vperm.xlu0 %606, %v256
        %v608 = vpop.permute.xlu0 %607
        %609 = vset.pattern.permute.xlu0 0
        %610 = vperm.xlu0 %609, %v257
        %v611 = vpop.permute.xlu0 %610
        %612 = vset.pattern.permute.xlu0 0
        %613 = vperm.xlu0 %612, %v258
        %v614 = vpop.permute.xlu0 %613
        %615 = vset.pattern.permute.xlu0 0
        %616 = vperm.xlu0 %615, %v259
        %v617 = vpop.permute.xlu0 %616
        %618 = vset.pattern.permute.xlu0 0
        %619 = vperm.xlu0 %618, %v260
        %v620 = vpop.permute.xlu0 %619
        %621 = vset.pattern.permute.xlu0 0
        %622 = vperm.xlu0 %621, %v261
        %v623 = vpop.permute.xlu0 %622
        %624 = vset.pattern.permute.xlu0 0
        %625 = vperm.xlu0 %624, %v262
        %v626 = vpop.permute.xlu0 %625
        %627 = vset.pattern.permute.xlu0 0
        %628 = vperm.xlu0 %627, %v263
        %v629 = vpop.permute.xlu0 %628
        %630 = vset.pattern.permute.xlu0 0
        %631 = vperm.xlu0 %630, %v264
        %v632 = vpop.permute.xlu0 %631
        %633 = vset.pattern.permute.xlu0 0
        %634 = vperm.xlu0 %633, %v265
        %v635 = vpop.permute.xlu0 %634
        %636 = vset.pattern.permute.xlu0 0
        %637 = vperm.xlu0 %636, %v266
        %v638 = vpop.permute.xlu0 %637
        %639 = vset.pattern.permute.xlu0 0
        %640 = vperm.xlu0 %639, %v267
        %v641 = vpop.permute.xlu0 %640
        %642 = vset.pattern.permute.xlu0 0
        %643 = vperm.xlu0 %642, %v268
        %v644 = vpop.permute.xlu0 %643
        %645 = vset.pattern.permute.xlu0 0
        %646 = vperm.xlu0 %645, %v269
        %v647 = vpop.permute.xlu0 %646
        %648 = vset.pattern.permute.xlu0 0
        %649 = vperm.xlu0 %648, %v270
        %v650 = vpop.permute.xlu0 %649
        %651 = vset.pattern.permute.xlu0 0
        %652 = vperm.xlu0 %651, %v271
        %v653 = vpop.permute.xlu0 %652
        %654 = vset.pattern.permute.xlu0 0
        %655 = vperm.xlu0 %654, %v272
        %v656 = vpop.permute.xlu0 %655
        %657 = vset.pattern.permute.xlu0 0
        %658 = vperm.xlu0 %657, %v273
        %v659 = vpop.permute.xlu0 %658
        %vm660 = vcmp.eq.s32.totalorder %v278, %v275
        %vm661 = vcmp.eq.s32.totalorder %v281, %v275
        %vm662 = vcmp.eq.s32.totalorder %v284, %v275
        %vm663 = vcmp.eq.s32.totalorder %v287, %v275
        %vm664 = vcmp.eq.s32.totalorder %v290, %v275
        %vm665 = vcmp.eq.s32.totalorder %v293, %v275
        %vm666 = vcmp.eq.s32.totalorder %v296, %v275
        %vm667 = vcmp.eq.s32.totalorder %v299, %v275
        %vm668 = vcmp.eq.s32.totalorder %v302, %v275
        %vm669 = vcmp.eq.s32.totalorder %v305, %v275
        %vm670 = vcmp.eq.s32.totalorder %v308, %v275
        %vm671 = vcmp.eq.s32.totalorder %v311, %v275
        %vm672 = vcmp.eq.s32.totalorder %v314, %v275
        %vm673 = vcmp.eq.s32.totalorder %v317, %v275
        %vm674 = vcmp.eq.s32.totalorder %v320, %v275
        %vm675 = vcmp.eq.s32.totalorder %v323, %v275
        %vm676 = vcmp.eq.s32.totalorder %v326, %v275
        %vm677 = vcmp.eq.s32.totalorder %v329, %v275
        %vm678 = vcmp.eq.s32.totalorder %v332, %v275
        %vm679 = vcmp.eq.s32.totalorder %v335, %v275
        %vm680 = vcmp.eq.s32.totalorder %v338, %v275
        %vm681 = vcmp.eq.s32.totalorder %v341, %v275
        %vm682 = vcmp.eq.s32.totalorder %v344, %v275
        %vm683 = vcmp.eq.s32.totalorder %v347, %v275
        %vm684 = vcmp.eq.s32.totalorder %v350, %v275
        %vm685 = vcmp.eq.s32.totalorder %v353, %v275
        %vm686 = vcmp.eq.s32.totalorder %v356, %v275
        %vm687 = vcmp.eq.s32.totalorder %v359, %v275
        %vm688 = vcmp.eq.s32.totalorder %v362, %v275
        %vm689 = vcmp.eq.s32.totalorder %v365, %v275
        %vm690 = vcmp.eq.s32.totalorder %v368, %v275
        %vm691 = vcmp.eq.s32.totalorder %v371, %v275
        %vm692 = vcmp.eq.s32.totalorder %v374, %v275
        %vm693 = vcmp.eq.s32.totalorder %v377, %v275
        %vm694 = vcmp.eq.s32.totalorder %v380, %v275
        %vm695 = vcmp.eq.s32.totalorder %v383, %v275
        %vm696 = vcmp.eq.s32.totalorder %v386, %v275
        %vm697 = vcmp.eq.s32.totalorder %v389, %v275
        %vm698 = vcmp.eq.s32.totalorder %v392, %v275
        %vm699 = vcmp.eq.s32.totalorder %v395, %v275
        %vm700 = vcmp.eq.s32.totalorder %v398, %v275
        %vm701 = vcmp.eq.s32.totalorder %v401, %v275
        %vm702 = vcmp.eq.s32.totalorder %v404, %v275
        %vm703 = vcmp.eq.s32.totalorder %v407, %v275
        %vm704 = vcmp.eq.s32.totalorder %v410, %v275
        %vm705 = vcmp.eq.s32.totalorder %v413, %v275
        %vm706 = vcmp.eq.s32.totalorder %v416, %v275
        %vm707 = vcmp.eq.s32.totalorder %v419, %v275
        %vm708 = vcmp.eq.s32.totalorder %v422, %v275
        %vm709 = vcmp.eq.s32.totalorder %v425, %v275
        %vm710 = vcmp.eq.s32.totalorder %v428, %v275
        %vm711 = vcmp.eq.s32.totalorder %v431, %v275
        %vm712 = vcmp.eq.s32.totalorder %v434, %v275
        %vm713 = vcmp.eq.s32.totalorder %v437, %v275
        %vm714 = vcmp.eq.s32.totalorder %v440, %v275
        %vm715 = vcmp.eq.s32.totalorder %v443, %v275
        %vm716 = vcmp.eq.s32.totalorder %v446, %v275
        %vm717 = vcmp.eq.s32.totalorder %v449, %v275
        %vm718 = vcmp.eq.s32.totalorder %v452, %v275
        %vm719 = vcmp.eq.s32.totalorder %v455, %v275
        %vm720 = vcmp.eq.s32.totalorder %v458, %v275
        %vm721 = vcmp.eq.s32.totalorder %v461, %v275
        %vm722 = vcmp.eq.s32.totalorder %v464, %v275
        %vm723 = vcmp.eq.s32.totalorder %v467, %v275
        %vm724 = vcmp.eq.s32.totalorder %v470, %v275
        %vm725 = vcmp.eq.s32.totalorder %v473, %v275
        %vm726 = vcmp.eq.s32.totalorder %v476, %v275
        %vm727 = vcmp.eq.s32.totalorder %v479, %v275
        %vm728 = vcmp.eq.s32.totalorder %v482, %v275
        %vm729 = vcmp.eq.s32.totalorder %v485, %v275
        %vm730 = vcmp.eq.s32.totalorder %v488, %v275
        %vm731 = vcmp.eq.s32.totalorder %v491, %v275
        %vm732 = vcmp.eq.s32.totalorder %v494, %v275
        %vm733 = vcmp.eq.s32.totalorder %v497, %v275
        %vm734 = vcmp.eq.s32.totalorder %v500, %v275
        %vm735 = vcmp.eq.s32.totalorder %v503, %v275
        %vm736 = vcmp.eq.s32.totalorder %v506, %v275
        %vm737 = vcmp.eq.s32.totalorder %v509, %v275
        %vm738 = vcmp.eq.s32.totalorder %v512, %v275
        %vm739 = vcmp.eq.s32.totalorder %v515, %v275
        %vm740 = vcmp.eq.s32.totalorder %v518, %v275
        %vm741 = vcmp.eq.s32.totalorder %v521, %v275
        %vm742 = vcmp.eq.s32.totalorder %v524, %v275
        %vm743 = vcmp.eq.s32.totalorder %v527, %v275
        %vm744 = vcmp.eq.s32.totalorder %v530, %v275
        %vm745 = vcmp.eq.s32.totalorder %v533, %v275
        %vm746 = vcmp.eq.s32.totalorder %v536, %v275
        %vm747 = vcmp.eq.s32.totalorder %v539, %v275
        %vm748 = vcmp.eq.s32.totalorder %v542, %v275
        %vm749 = vcmp.eq.s32.totalorder %v545, %v275
        %vm750 = vcmp.eq.s32.totalorder %v548, %v275
        %vm751 = vcmp.eq.s32.totalorder %v551, %v275
        %vm752 = vcmp.eq.s32.totalorder %v554, %v275
        %vm753 = vcmp.eq.s32.totalorder %v557, %v275
        %vm754 = vcmp.eq.s32.totalorder %v560, %v275
        %vm755 = vcmp.eq.s32.totalorder %v563, %v275
        %vm756 = vcmp.eq.s32.totalorder %v566, %v275
        %vm757 = vcmp.eq.s32.totalorder %v569, %v275
        %vm758 = vcmp.eq.s32.totalorder %v572, %v275
        %vm759 = vcmp.eq.s32.totalorder %v575, %v275
        %vm760 = vcmp.eq.s32.totalorder %v578, %v275
        %vm761 = vcmp.eq.s32.totalorder %v581, %v275
        %vm762 = vcmp.eq.s32.totalorder %v584, %v275
        %vm763 = vcmp.eq.s32.totalorder %v587, %v275
        %vm764 = vcmp.eq.s32.totalorder %v590, %v275
        %vm765 = vcmp.eq.s32.totalorder %v593, %v275
        %vm766 = vcmp.eq.s32.totalorder %v596, %v275
        %vm767 = vcmp.eq.s32.totalorder %v599, %v275
        %vm768 = vcmp.eq.s32.totalorder %v602, %v275
        %vm769 = vcmp.eq.s32.totalorder %v605, %v275
        %vm770 = vcmp.eq.s32.totalorder %v608, %v275
        %vm771 = vcmp.eq.s32.totalorder %v611, %v275
        %vm772 = vcmp.eq.s32.totalorder %v614, %v275
        %vm773 = vcmp.eq.s32.totalorder %v617, %v275
        %vm774 = vcmp.eq.s32.totalorder %v620, %v275
        %vm775 = vcmp.eq.s32.totalorder %v623, %v275
        %vm776 = vcmp.eq.s32.totalorder %v626, %v275
        %vm777 = vcmp.eq.s32.totalorder %v629, %v275
        %vm778 = vcmp.eq.s32.totalorder %v632, %v275
        %vm779 = vcmp.eq.s32.totalorder %v635, %v275
        %vm780 = vcmp.eq.s32.totalorder %v638, %v275
        %vm781 = vcmp.eq.s32.totalorder %v641, %v275
        %vm782 = vcmp.eq.s32.totalorder %v644, %v275
        %vm783 = vcmp.eq.s32.totalorder %v647, %v275
        %vm784 = vcmp.eq.s32.totalorder %v650, %v275
        %vm785 = vcmp.eq.s32.totalorder %v653, %v275
        %vm786 = vcmp.eq.s32.totalorder %v656, %v275
        %vm787 = vcmp.eq.s32.totalorder %v659, %v275
        %v788 = vsel %vm660, 1, 0
        %v789 = vsel %vm661, 1, 0
        %v790 = vsel %vm662, 1, 0
        %v791 = vsel %vm663, 1, 0
        %v792 = vsel %vm664, 1, 0
        %v793 = vsel %vm665, 1, 0
        %v794 = vsel %vm666, 1, 0
        %v795 = vsel %vm667, 1, 0
        %v796 = vsel %vm668, 1, 0
        %v797 = vsel %vm669, 1, 0
        %v798 = vsel %vm670, 1, 0
        %v799 = vsel %vm671, 1, 0
        %v800 = vsel %vm672, 1, 0
        %v801 = vsel %vm673, 1, 0
        %v802 = vsel %vm674, 1, 0
        %v803 = vsel %vm675, 1, 0
        %v804 = vsel %vm676, 1, 0
        %v805 = vsel %vm677, 1, 0
        %v806 = vsel %vm678, 1, 0
        %v807 = vsel %vm679, 1, 0
        %v808 = vsel %vm680, 1, 0
        %v809 = vsel %vm681, 1, 0
        %v810 = vsel %vm682, 1, 0
        %v811 = vsel %vm683, 1, 0
        %v812 = vsel %vm684, 1, 0
        %v813 = vsel %vm685, 1, 0
        %v814 = vsel %vm686, 1, 0
        %v815 = vsel %vm687, 1, 0
        %v816 = vsel %vm688, 1, 0
        %v817 = vsel %vm689, 1, 0
        %v818 = vsel %vm690, 1, 0
        %v819 = vsel %vm691, 1, 0
        %v820 = vsel %vm692, 1, 0
        %v821 = vsel %vm693, 1, 0
        %v822 = vsel %vm694, 1, 0
        %v823 = vsel %vm695, 1, 0
        %v824 = vsel %vm696, 1, 0
        %v825 = vsel %vm697, 1, 0
        %v826 = vsel %vm698, 1, 0
        %v827 = vsel %vm699, 1, 0
        %v828 = vsel %vm700, 1, 0
        %v829 = vsel %vm701, 1, 0
        %v830 = vsel %vm702, 1, 0
        %v831 = vsel %vm703, 1, 0
        %v832 = vsel %vm704, 1, 0
        %v833 = vsel %vm705, 1, 0
        %v834 = vsel %vm706, 1, 0
        %v835 = vsel %vm707, 1, 0
        %v836 = vsel %vm708, 1, 0
        %v837 = vsel %vm709, 1, 0
        %v838 = vsel %vm710, 1, 0
        %v839 = vsel %vm711, 1, 0
        %v840 = vsel %vm712, 1, 0
        %v841 = vsel %vm713, 1, 0
        %v842 = vsel %vm714, 1, 0
        %v843 = vsel %vm715, 1, 0
        %v844 = vsel %vm716, 1, 0
        %v845 = vsel %vm717, 1, 0
        %v846 = vsel %vm718, 1, 0
        %v847 = vsel %vm719, 1, 0
        %v848 = vsel %vm720, 1, 0
        %v849 = vsel %vm721, 1, 0
        %v850 = vsel %vm722, 1, 0
        %v851 = vsel %vm723, 1, 0
        %v852 = vsel %vm724, 1, 0
        %v853 = vsel %vm725, 1, 0
        %v854 = vsel %vm726, 1, 0
        %v855 = vsel %vm727, 1, 0
        %v856 = vsel %vm728, 1, 0
        %v857 = vsel %vm729, 1, 0
        %v858 = vsel %vm730, 1, 0
        %v859 = vsel %vm731, 1, 0
        %v860 = vsel %vm732, 1, 0
        %v861 = vsel %vm733, 1, 0
        %v862 = vsel %vm734, 1, 0
        %v863 = vsel %vm735, 1, 0
        %v864 = vsel %vm736, 1, 0
        %v865 = vsel %vm737, 1, 0
        %v866 = vsel %vm738, 1, 0
        %v867 = vsel %vm739, 1, 0
        %v868 = vsel %vm740, 1, 0
        %v869 = vsel %vm741, 1, 0
        %v870 = vsel %vm742, 1, 0
        %v871 = vsel %vm743, 1, 0
        %v872 = vsel %vm744, 1, 0
        %v873 = vsel %vm745, 1, 0
        %v874 = vsel %vm746, 1, 0
        %v875 = vsel %vm747, 1, 0
        %v876 = vsel %vm748, 1, 0
        %v877 = vsel %vm749, 1, 0
        %v878 = vsel %vm750, 1, 0
        %v879 = vsel %vm751, 1, 0
        %v880 = vsel %vm752, 1, 0
        %v881 = vsel %vm753, 1, 0
        %v882 = vsel %vm754, 1, 0
        %v883 = vsel %vm755, 1, 0
        %v884 = vsel %vm756, 1, 0
        %v885 = vsel %vm757, 1, 0
        %v886 = vsel %vm758, 1, 0
        %v887 = vsel %vm759, 1, 0
        %v888 = vsel %vm760, 1, 0
        %v889 = vsel %vm761, 1, 0
        %v890 = vsel %vm762, 1, 0
        %v891 = vsel %vm763, 1, 0
        %v892 = vsel %vm764, 1, 0
        %v893 = vsel %vm765, 1, 0
        %v894 = vsel %vm766, 1, 0
        %v895 = vsel %vm767, 1, 0
        %v896 = vsel %vm768, 1, 0
        %v897 = vsel %vm769, 1, 0
        %v898 = vsel %vm770, 1, 0
        %v899 = vsel %vm771, 1, 0
        %v900 = vsel %vm772, 1, 0
        %v901 = vsel %vm773, 1, 0
        %v902 = vsel %vm774, 1, 0
        %v903 = vsel %vm775, 1, 0
        %v904 = vsel %vm776, 1, 0
        %v905 = vsel %vm777, 1, 0
        %v906 = vsel %vm778, 1, 0
        %v907 = vsel %vm779, 1, 0
        %v908 = vsel %vm780, 1, 0
        %v909 = vsel %vm781, 1, 0
        %v910 = vsel %vm782, 1, 0
        %v911 = vsel %vm783, 1, 0
        %v912 = vsel %vm784, 1, 0
        %v913 = vsel %vm785, 1, 0
        %v914 = vsel %vm786, 1, 0
        %v915 = vsel %vm787, 1, 0
        %v916 = vcvt.s32.f32 %v788
        %v917 = vcvt.s32.f32 %v789
        %v918 = vcvt.s32.f32 %v790
        %v919 = vcvt.s32.f32 %v791
        %v920 = vcvt.s32.f32 %v792
        %v921 = vcvt.s32.f32 %v793
        %v922 = vcvt.s32.f32 %v794
        %v923 = vcvt.s32.f32 %v795
        %v924 = vcvt.s32.f32 %v796
        %v925 = vcvt.s32.f32 %v797
        %v926 = vcvt.s32.f32 %v798
        %v927 = vcvt.s32.f32 %v799
        %v928 = vcvt.s32.f32 %v800
        %v929 = vcvt.s32.f32 %v801
        %v930 = vcvt.s32.f32 %v802
        %v931 = vcvt.s32.f32 %v803
        %v932 = vcvt.s32.f32 %v804
        %v933 = vcvt.s32.f32 %v805
        %v934 = vcvt.s32.f32 %v806
        %v935 = vcvt.s32.f32 %v807
        %v936 = vcvt.s32.f32 %v808
        %v937 = vcvt.s32.f32 %v809
        %v938 = vcvt.s32.f32 %v810
        %v939 = vcvt.s32.f32 %v811
        %v940 = vcvt.s32.f32 %v812
        %v941 = vcvt.s32.f32 %v813
        %v942 = vcvt.s32.f32 %v814
        %v943 = vcvt.s32.f32 %v815
        %v944 = vcvt.s32.f32 %v816
        %v945 = vcvt.s32.f32 %v817
        %v946 = vcvt.s32.f32 %v818
        %v947 = vcvt.s32.f32 %v819
        %v948 = vcvt.s32.f32 %v820
        %v949 = vcvt.s32.f32 %v821
        %v950 = vcvt.s32.f32 %v822
        %v951 = vcvt.s32.f32 %v823
        %v952 = vcvt.s32.f32 %v824
        %v953 = vcvt.s32.f32 %v825
        %v954 = vcvt.s32.f32 %v826
        %v955 = vcvt.s32.f32 %v827
        %v956 = vcvt.s32.f32 %v828
        %v957 = vcvt.s32.f32 %v829
        %v958 = vcvt.s32.f32 %v830
        %v959 = vcvt.s32.f32 %v831
        %v960 = vcvt.s32.f32 %v832
        %v961 = vcvt.s32.f32 %v833
        %v962 = vcvt.s32.f32 %v834
        %v963 = vcvt.s32.f32 %v835
        %v964 = vcvt.s32.f32 %v836
        %v965 = vcvt.s32.f32 %v837
        %v966 = vcvt.s32.f32 %v838
        %v967 = vcvt.s32.f32 %v839
        %v968 = vcvt.s32.f32 %v840
        %v969 = vcvt.s32.f32 %v841
        %v970 = vcvt.s32.f32 %v842
        %v971 = vcvt.s32.f32 %v843
        %v972 = vcvt.s32.f32 %v844
        %v973 = vcvt.s32.f32 %v845
        %v974 = vcvt.s32.f32 %v846
        %v975 = vcvt.s32.f32 %v847
        %v976 = vcvt.s32.f32 %v848
        %v977 = vcvt.s32.f32 %v849
        %v978 = vcvt.s32.f32 %v850
        %v979 = vcvt.s32.f32 %v851
        %v980 = vcvt.s32.f32 %v852
        %v981 = vcvt.s32.f32 %v853
        %v982 = vcvt.s32.f32 %v854
        %v983 = vcvt.s32.f32 %v855
        %v984 = vcvt.s32.f32 %v856
        %v985 = vcvt.s32.f32 %v857
        %v986 = vcvt.s32.f32 %v858
        %v987 = vcvt.s32.f32 %v859
        %v988 = vcvt.s32.f32 %v860
        %v989 = vcvt.s32.f32 %v861
        %v990 = vcvt.s32.f32 %v862
        %v991 = vcvt.s32.f32 %v863
        %v992 = vcvt.s32.f32 %v864
        %v993 = vcvt.s32.f32 %v865
        %v994 = vcvt.s32.f32 %v866
        %v995 = vcvt.s32.f32 %v867
        %v996 = vcvt.s32.f32 %v868
        %v997 = vcvt.s32.f32 %v869
        %v998 = vcvt.s32.f32 %v870
        %v999 = vcvt.s32.f32 %v871
        %v1000 = vcvt.s32.f32 %v872
        %v1001 = vcvt.s32.f32 %v873
        %v1002 = vcvt.s32.f32 %v874
        %v1003 = vcvt.s32.f32 %v875
        %v1004 = vcvt.s32.f32 %v876
        %v1005 = vcvt.s32.f32 %v877
        %v1006 = vcvt.s32.f32 %v878
        %v1007 = vcvt.s32.f32 %v879
        %v1008 = vcvt.s32.f32 %v880
        %v1009 = vcvt.s32.f32 %v881
        %v1010 = vcvt.s32.f32 %v882
        %v1011 = vcvt.s32.f32 %v883
        %v1012 = vcvt.s32.f32 %v884
        %v1013 = vcvt.s32.f32 %v885
        %v1014 = vcvt.s32.f32 %v886
        %v1015 = vcvt.s32.f32 %v887
        %v1016 = vcvt.s32.f32 %v888
        %v1017 = vcvt.s32.f32 %v889
        %v1018 = vcvt.s32.f32 %v890
        %v1019 = vcvt.s32.f32 %v891
        %v1020 = vcvt.s32.f32 %v892
        %v1021 = vcvt.s32.f32 %v893
        %v1022 = vcvt.s32.f32 %v894
        %v1023 = vcvt.s32.f32 %v895
        %v1024 = vcvt.s32.f32 %v896
        %v1025 = vcvt.s32.f32 %v897
        %v1026 = vcvt.s32.f32 %v898
        %v1027 = vcvt.s32.f32 %v899
        %v1028 = vcvt.s32.f32 %v900
        %v1029 = vcvt.s32.f32 %v901
        %v1030 = vcvt.s32.f32 %v902
        %v1031 = vcvt.s32.f32 %v903
        %v1032 = vcvt.s32.f32 %v904
        %v1033 = vcvt.s32.f32 %v905
        %v1034 = vcvt.s32.f32 %v906
        %v1035 = vcvt.s32.f32 %v907
        %v1036 = vcvt.s32.f32 %v908
        %v1037 = vcvt.s32.f32 %v909
        %v1038 = vcvt.s32.f32 %v910
        %v1039 = vcvt.s32.f32 %v911
        %v1040 = vcvt.s32.f32 %v912
        %v1041 = vcvt.s32.f32 %v913
        %v1042 = vcvt.s32.f32 %v914
        %v1043 = vcvt.s32.f32 %v915
        %v1044 = vpack.c.bf16 %v917, %v916
        %v1045 = vpack.c.bf16 %v919, %v918
        %v1046 = vpack.c.bf16 %v921, %v920
        %v1047 = vpack.c.bf16 %v923, %v922
        %v1048 = vpack.c.bf16 %v925, %v924
        %v1049 = vpack.c.bf16 %v927, %v926
        %v1050 = vpack.c.bf16 %v929, %v928
        %v1051 = vpack.c.bf16 %v931, %v930
        %v1052 = vpack.c.bf16 %v933, %v932
        %v1053 = vpack.c.bf16 %v935, %v934
        %v1054 = vpack.c.bf16 %v937, %v936
        %v1055 = vpack.c.bf16 %v939, %v938
        %v1056 = vpack.c.bf16 %v941, %v940
        %v1057 = vpack.c.bf16 %v943, %v942
        %v1058 = vpack.c.bf16 %v945, %v944
        %v1059 = vpack.c.bf16 %v947, %v946
        %v1060 = vpack.c.bf16 %v949, %v948
        %v1061 = vpack.c.bf16 %v951, %v950
        %v1062 = vpack.c.bf16 %v953, %v952
        %v1063 = vpack.c.bf16 %v955, %v954
        %v1064 = vpack.c.bf16 %v957, %v956
        %v1065 = vpack.c.bf16 %v959, %v958
        %v1066 = vpack.c.bf16 %v961, %v960
        %v1067 = vpack.c.bf16 %v963, %v962
        %v1068 = vpack.c.bf16 %v965, %v964
        %v1069 = vpack.c.bf16 %v967, %v966
        %v1070 = vpack.c.bf16 %v969, %v968
        %v1071 = vpack.c.bf16 %v971, %v970
        %v1072 = vpack.c.bf16 %v973, %v972
        %v1073 = vpack.c.bf16 %v975, %v974
        %v1074 = vpack.c.bf16 %v977, %v976
        %v1075 = vpack.c.bf16 %v979, %v978
        %v1076 = vpack.c.bf16 %v981, %v980
        %v1077 = vpack.c.bf16 %v983, %v982
        %v1078 = vpack.c.bf16 %v985, %v984
        %v1079 = vpack.c.bf16 %v987, %v986
        %v1080 = vpack.c.bf16 %v989, %v988
        %v1081 = vpack.c.bf16 %v991, %v990
        %v1082 = vpack.c.bf16 %v993, %v992
        %v1083 = vpack.c.bf16 %v995, %v994
        %v1084 = vpack.c.bf16 %v997, %v996
        %v1085 = vpack.c.bf16 %v999, %v998
        %v1086 = vpack.c.bf16 %v1001, %v1000
        %v1087 = vpack.c.bf16 %v1003, %v1002
        %v1088 = vpack.c.bf16 %v1005, %v1004
        %v1089 = vpack.c.bf16 %v1007, %v1006
        %v1090 = vpack.c.bf16 %v1009, %v1008
        %v1091 = vpack.c.bf16 %v1011, %v1010
        %v1092 = vpack.c.bf16 %v1013, %v1012
        %v1093 = vpack.c.bf16 %v1015, %v1014
        %v1094 = vpack.c.bf16 %v1017, %v1016
        %v1095 = vpack.c.bf16 %v1019, %v1018
        %v1096 = vpack.c.bf16 %v1021, %v1020
        %v1097 = vpack.c.bf16 %v1023, %v1022
        %v1098 = vpack.c.bf16 %v1025, %v1024
        %v1099 = vpack.c.bf16 %v1027, %v1026
        %v1100 = vpack.c.bf16 %v1029, %v1028
        %v1101 = vpack.c.bf16 %v1031, %v1030
        %v1102 = vpack.c.bf16 %v1033, %v1032
        %v1103 = vpack.c.bf16 %v1035, %v1034
        %v1104 = vpack.c.bf16 %v1037, %v1036
        %v1105 = vpack.c.bf16 %v1039, %v1038
        %v1106 = vpack.c.bf16 %v1041, %v1040
        %v1107 = vpack.c.bf16 %v1043, %v1042
        %v1108 = vld [vmem:[%s1] sm:$0xf]
        %v1109 = vld [vmem:[%s1 + $0x4] sm:$0xf]
        %v1110 = vld [vmem:[%s1 + $0x8] sm:$0xf]
        %v1111 = vld [vmem:[%s1 + $0xc] sm:$0xf]
        %v1112 = vld [vmem:[%s1 + $0x10] sm:$0xf]
        %v1113 = vld [vmem:[%s1 + $0x14] sm:$0xf]
        %v1114 = vld [vmem:[%s1 + $0x18] sm:$0xf]
        %v1115 = vld [vmem:[%s1 + $0x1c] sm:$0xf]
        %v1116 = vld [vmem:[%s1 + $0x20] sm:$0xf]
        %v1117 = vld [vmem:[%s1 + $0x24] sm:$0xf]
        %v1118 = vld [vmem:[%s1 + $0x28] sm:$0xf]
        %v1119 = vld [vmem:[%s1 + $0x2c] sm:$0xf]
        %v1120 = vld [vmem:[%s1 + $0x30] sm:$0xf]
        %v1121 = vld [vmem:[%s1 + $0x34] sm:$0xf]
        %v1122 = vld [vmem:[%s1 + $0x38] sm:$0xf]
        %v1123 = vld [vmem:[%s1 + $0x3c] sm:$0xf]
        %s1124 = scalar_lea.vmem %s1, 64
        %v1125 = vld [vmem:[%s1124] sm:$0xf]
        %v1126 = vld [vmem:[%s1124 + $0x4] sm:$0xf]
        %v1127 = vld [vmem:[%s1124 + $0x8] sm:$0xf]
        %v1128 = vld [vmem:[%s1124 + $0xc] sm:$0xf]
        %v1129 = vld [vmem:[%s1124 + $0x10] sm:$0xf]
        %v1130 = vld [vmem:[%s1124 + $0x14] sm:$0xf]
        %v1131 = vld [vmem:[%s1124 + $0x18] sm:$0xf]
        %v1132 = vld [vmem:[%s1124 + $0x1c] sm:$0xf]
        %v1133 = vld [vmem:[%s1124 + $0x20] sm:$0xf]
        %v1134 = vld [vmem:[%s1124 + $0x24] sm:$0xf]
        %v1135 = vld [vmem:[%s1124 + $0x28] sm:$0xf]
        %v1136 = vld [vmem:[%s1124 + $0x2c] sm:$0xf]
        %v1137 = vld [vmem:[%s1124 + $0x30] sm:$0xf]
        %v1138 = vld [vmem:[%s1124 + $0x34] sm:$0xf]
        %v1139 = vld [vmem:[%s1124 + $0x38] sm:$0xf]
        %v1140 = vld [vmem:[%s1124 + $0x3c] sm:$0xf]
        %v1157 = vunpack.c.l.b16 %v1125
        %v1158 = vunpack.c.l.b16 %v1126
        %v1159 = vunpack.c.l.b16 %v1127
        %v1160 = vunpack.c.l.b16 %v1128
        %v1161 = vunpack.c.l.b16 %v1129
        %v1162 = vunpack.c.l.b16 %v1130
        %v1163 = vunpack.c.l.b16 %v1131
        %v1164 = vunpack.c.l.b16 %v1132
        %v1165 = vunpack.c.l.b16 %v1133
        %v1166 = vunpack.c.l.b16 %v1134
        %v1167 = vunpack.c.l.b16 %v1135
        %v1168 = vunpack.c.l.b16 %v1136
        %v1169 = vunpack.c.l.b16 %v1137
        %v1170 = vunpack.c.l.b16 %v1138
        %v1171 = vunpack.c.l.b16 %v1139
        %v1172 = vunpack.c.l.b16 %v1140
        %v1173 = vpack.c.b16 %v1158, %v1157
        %v1174 = vpack.c.b16 %v1160, %v1159
        %v1175 = vpack.c.b16 %v1162, %v1161
        %v1176 = vpack.c.b16 %v1164, %v1163
        %v1177 = vpack.c.b16 %v1166, %v1165
        %v1178 = vpack.c.b16 %v1168, %v1167
        %v1179 = vpack.c.b16 %v1170, %v1169
        %v1180 = vpack.c.b16 %v1172, %v1171
        %1189 = vmatprep.subr.bf16.mxu0 0
        %1190 = vmatpush1.bf16.msra.mxu0 %v1173
        %1191 = vmatprep.subr.bf16.mxu0 0
        %1192 = vmatpush1.bf16.msra.mxu0 %v1174
        %1193 = vmatprep.subr.bf16.mxu0 0
        %1194 = vmatpush1.bf16.msra.mxu0 %v1175
        %1195 = vmatprep.subr.bf16.mxu0 0
        %1196 = vmatpush1.bf16.msra.mxu0 %v1176
        %1197 = vmatprep.subr.bf16.mxu0 0
        %1198 = vmatpush1.bf16.msra.mxu0 %v1177
        %1199 = vmatprep.subr.bf16.mxu0 0
        %1200 = vmatpush1.bf16.msra.mxu0 %v1178
        %1201 = vmatprep.subr.bf16.mxu0 0
        %1202 = vmatpush1.bf16.msra.mxu0 %v1179
        %1203 = vmatprep.subr.bf16.mxu0 0
        %1204 = vmatpush1.bf16.msra.mxu0 %v1180
        %1205 = vmatprep.subr.bf16.mxu0 0
        %1206 = vmatpush1.bf16.msra.mxu0 0
        %1207 = vmatprep.subr.bf16.mxu0 0
        %1208 = vmatpush1.bf16.msra.mxu0 0
        %1209 = vmatprep.subr.bf16.mxu0 0
        %1210 = vmatpush1.bf16.msra.mxu0 0
        %1211 = vmatprep.subr.bf16.mxu0 0
        %1212 = vmatpush1.bf16.msra.mxu0 0
        %1213 = vmatprep.subr.bf16.mxu0 0
        %1214 = vmatpush1.bf16.msra.mxu0 0
        %1215 = vmatprep.subr.bf16.mxu0 0
        %1216 = vmatpush1.bf16.msra.mxu0 0
        %1217 = vmatprep.subr.bf16.mxu0 0
        %1218 = vmatpush1.bf16.msra.mxu0 0
        %1219 = vmatprep.subr.bf16.mxu0 0
        %1220 = vmatpush1.bf16.msra.mxu0 0
        %1221 = vmatprep.mubr.bf16.mxu0 0
        %1222 = vmatmul.mubr.bf16.gmra.mrb[0].mxu0 %v1044
        %v1223 = vpop.f32.mrb[0].mxu0
        %v1224 = vadd.f32 0.0, %v1223
        %v1225 = vpop.f32.mrb[0].mxu0
        %v1226 = vpop.f32.mrb[0].mxu0
        %v1227 = vadd.f32 0.0, %v1226
        %v1228 = vpop.f32.mrb[0].mxu0
        %1229 = vmatprep.mubr.bf16.mxu0 0
        %1230 = vmatmul.mubr.bf16.gmra.mrb[0].mxu0 %v1045
        %v1231 = vpop.f32.mrb[0].mxu0
        %v1232 = vadd.f32 0.0, %v1231
        %v1233 = vpop.f32.mrb[0].mxu0
        %v1234 = vpop.f32.mrb[0].mxu0
        %v1235 = vadd.f32 0.0, %v1234
        %v1236 = vpop.f32.mrb[0].mxu0
        %1237 = vmatprep.mubr.bf16.mxu0 0
        %1238 = vmatmul.mubr.bf16.gmra.mrb[0].mxu0 %v1046
        %v1239 = vpop.f32.mrb[0].mxu0
        %v1240 = vadd.f32 0.0, %v1239
        %v1241 = vpop.f32.mrb[0].mxu0
        %v1242 = vpop.f32.mrb[0].mxu0
        %v1243 = vadd.f32 0.0, %v1242
        %v1244 = vpop.f32.mrb[0].mxu0
        %1245 = vmatprep.mubr.bf16.mxu0 0
        %1246 = vmatmul.mubr.bf16.gmra.mrb[0].mxu0 %v1047
        %v1247 = vpop.f32.mrb[0].mxu0
        %v1248 = vadd.f32 0.0, %v1247
        %v1249 = vpop.f32.mrb[0].mxu0
        %v1250 = vpop.f32.mrb[0].mxu0
        %v1251 = vadd.f32 0.0, %v1250
        %v1252 = vpop.f32.mrb[0].mxu0
        %1253 = vmatprep.mubr.bf16.mxu0 0
        %1254 = vmatmul.mubr.bf16.gmra.mrb[0].mxu0 %v1048
        %v1255 = vpop.f32.mrb[0].mxu0
        %v1256 = vadd.f32 0.0, %v1255
        %v1257 = vpop.f32.mrb[0].mxu0
        %v1258 = vpop.f32.mrb[0].mxu0
        %v1259 = vadd.f32 0.0, %v1258
        %v1260 = vpop.f32.mrb[0].mxu0
        %1261 = vmatprep.mubr.bf16.mxu0 0
        %1262 = vmatmul.mubr.bf16.gmra.mrb[0].mxu0 %v1049
        %v1263 = vpop.f32.mrb[0].mxu0
        %v1264 = vadd.f32 0.0, %v1263
        %v1265 = vpop.f32.mrb[0].mxu0
        %v1266 = vpop.f32.mrb[0].mxu0
        %v1267 = vadd.f32 0.0, %v1266
        %v1268 = vpop.f32.mrb[0].mxu0
        %1269 = vmatprep.mubr.bf16.mxu0 0
        %1270 = vmatmul.mubr.bf16.gmra.mrb[0].mxu0 %v1050
        %v1271 = vpop.f32.mrb[0].mxu0
        %v1272 = vadd.f32 0.0, %v1271
        %v1273 = vpop.f32.mrb[0].mxu0
        %v1274 = vpop.f32.mrb[0].mxu0
        %v1275 = vadd.f32 0.0, %v1274
        %v1276 = vpop.f32.mrb[0].mxu0
        %1277 = vmatprep.mubr.bf16.mxu0 0
        %1278 = vmatmul.mubr.bf16.gmra.mrb[0].mxu0 %v1051
        %v1279 = vpop.f32.mrb[0].mxu0
        %v1280 = vadd.f32 0.0, %v1279
        %v1281 = vpop.f32.mrb[0].mxu0
        %v1282 = vpop.f32.mrb[0].mxu0
        %v1283 = vadd.f32 0.0, %v1282
        %v1284 = vpop.f32.mrb[0].mxu0
        %1285 = vmatprep.mubr.bf16.mxu0 0
        %1286 = vmatmul.mubr.bf16.gmra.mrb[0].mxu0 %v1052
        %v1287 = vpop.f32.mrb[0].mxu0
        %v1288 = vadd.f32 0.0, %v1287
        %v1289 = vpop.f32.mrb[0].mxu0
        %v1290 = vpop.f32.mrb[0].mxu0
        %v1291 = vadd.f32 0.0, %v1290
        %v1292 = vpop.f32.mrb[0].mxu0
        %1293 = vmatprep.mubr.bf16.mxu0 0
        %1294 = vmatmul.mubr.bf16.gmra.mrb[0].mxu0 %v1053
        %v1295 = vpop.f32.mrb[0].mxu0
        %v1296 = vadd.f32 0.0, %v1295
        %v1297 = vpop.f32.mrb[0].mxu0
        %v1298 = vpop.f32.mrb[0].mxu0
        %v1299 = vadd.f32 0.0, %v1298
        %v1300 = vpop.f32.mrb[0].mxu0
        %1301 = vmatprep.mubr.bf16.mxu0 0
        %1302 = vmatmul.mubr.bf16.gmra.mrb[0].mxu0 %v1054
        %v1303 = vpop.f32.mrb[0].mxu0
        %v1304 = vadd.f32 0.0, %v1303
        %v1305 = vpop.f32.mrb[0].mxu0
        %v1306 = vpop.f32.mrb[0].mxu0
        %v1307 = vadd.f32 0.0, %v1306
        %v1308 = vpop.f32.mrb[0].mxu0
        %1309 = vmatprep.mubr.bf16.mxu0 0
        %1310 = vmatmul.mubr.bf16.gmra.mrb[0].mxu0 %v1055
        %v1311 = vpop.f32.mrb[0].mxu0
        %v1312 = vadd.f32 0.0, %v1311
        %v1313 = vpop.f32.mrb[0].mxu0
        %v1314 = vpop.f32.mrb[0].mxu0
        %v1315 = vadd.f32 0.0, %v1314
        %v1316 = vpop.f32.mrb[0].mxu0
        %1317 = vmatprep.mubr.bf16.mxu0 0
        %1318 = vmatmul.mubr.bf16.gmra.mrb[0].mxu0 %v1056
        %v1319 = vpop.f32.mrb[0].mxu0
        %v1320 = vadd.f32 0.0, %v1319
        %v1321 = vpop.f32.mrb[0].mxu0
        %v1322 = vpop.f32.mrb[0].mxu0
        %v1323 = vadd.f32 0.0, %v1322
        %v1324 = vpop.f32.mrb[0].mxu0
        %1325 = vmatprep.mubr.bf16.mxu0 0
        %1326 = vmatmul.mubr.bf16.gmra.mrb[0].mxu0 %v1057
        %v1327 = vpop.f32.mrb[0].mxu0
        %v1328 = vadd.f32 0.0, %v1327
        %v1329 = vpop.f32.mrb[0].mxu0
        %v1330 = vpop.f32.mrb[0].mxu0
        %v1331 = vadd.f32 0.0, %v1330
        %v1332 = vpop.f32.mrb[0].mxu0
        %1333 = vmatprep.mubr.bf16.mxu0 0
        %1334 = vmatmul.mubr.bf16.gmra.mrb[0].mxu0 %v1058
        %v1335 = vpop.f32.mrb[0].mxu0
        %v1336 = vadd.f32 0.0, %v1335
        %v1337 = vpop.f32.mrb[0].mxu0
        %v1338 = vpop.f32.mrb[0].mxu0
        %v1339 = vadd.f32 0.0, %v1338
        %v1340 = vpop.f32.mrb[0].mxu0
        %1341 = vmatprep.mubr.bf16.mxu0 0
        %1342 = vmatmul.mubr.bf16.gmra.mrb[0].mxu0 %v1059
        %v1343 = vpop.f32.mrb[0].mxu0
        %v1344 = vadd.f32 0.0, %v1343
        %v1345 = vpop.f32.mrb[0].mxu0
        %v1346 = vpop.f32.mrb[0].mxu0
        %v1347 = vadd.f32 0.0, %v1346
        %v1348 = vpop.f32.mrb[0].mxu0
        %1349 = vmatprep.mubr.bf16.mxu0 0
        %1350 = vmatmul.mubr.bf16.gmra.mrb[0].mxu0 %v1060
        %v1351 = vpop.f32.mrb[0].mxu0
        %v1352 = vadd.f32 0.0, %v1351
        %v1353 = vpop.f32.mrb[0].mxu0
        %v1354 = vpop.f32.mrb[0].mxu0
        %v1355 = vadd.f32 0.0, %v1354
        %v1356 = vpop.f32.mrb[0].mxu0
        %1357 = vmatprep.mubr.bf16.mxu0 0
        %1358 = vmatmul.mubr.bf16.gmra.mrb[0].mxu0 %v1061
        %v1359 = vpop.f32.mrb[0].mxu0
        %v1360 = vadd.f32 0.0, %v1359
        %v1361 = vpop.f32.mrb[0].mxu0
        %v1362 = vpop.f32.mrb[0].mxu0
        %v1363 = vadd.f32 0.0, %v1362
        %v1364 = vpop.f32.mrb[0].mxu0
        %1365 = vmatprep.mubr.bf16.mxu0 0
        %1366 = vmatmul.mubr.bf16.gmra.mrb[0].mxu0 %v1062
        %v1367 = vpop.f32.mrb[0].mxu0
        %v1368 = vadd.f32 0.0, %v1367
        %v1369 = vpop.f32.mrb[0].mxu0
        %v1370 = vpop.f32.mrb[0].mxu0
        %v1371 = vadd.f32 0.0, %v1370
        %v1372 = vpop.f32.mrb[0].mxu0
        %1373 = vmatprep.mubr.bf16.mxu0 0
        %1374 = vmatmul.mubr.bf16.gmra.mrb[0].mxu0 %v1063
        %v1375 = vpop.f32.mrb[0].mxu0
        %v1376 = vadd.f32 0.0, %v1375
        %v1377 = vpop.f32.mrb[0].mxu0
        %v1378 = vpop.f32.mrb[0].mxu0
        %v1379 = vadd.f32 0.0, %v1378
        %v1380 = vpop.f32.mrb[0].mxu0
        %1381 = vmatprep.mubr.bf16.mxu0 0
        %1382 = vmatmul.mubr.bf16.gmra.mrb[0].mxu0 %v1064
        %v1383 = vpop.f32.mrb[0].mxu0
        %v1384 = vadd.f32 0.0, %v1383
        %v1385 = vpop.f32.mrb[0].mxu0
        %v1386 = vpop.f32.mrb[0].mxu0
        %v1387 = vadd.f32 0.0, %v1386
        %v1388 = vpop.f32.mrb[0].mxu0
        %1389 = vmatprep.mubr.bf16.mxu0 0
        %1390 = vmatmul.mubr.bf16.gmra.mrb[0].mxu0 %v1065
        %v1391 = vpop.f32.mrb[0].mxu0
        %v1392 = vadd.f32 0.0, %v1391
        %v1393 = vpop.f32.mrb[0].mxu0
        %v1394 = vpop.f32.mrb[0].mxu0
        %v1395 = vadd.f32 0.0, %v1394
        %v1396 = vpop.f32.mrb[0].mxu0
        %1397 = vmatprep.mubr.bf16.mxu0 0
        %1398 = vmatmul.mubr.bf16.gmra.mrb[0].mxu0 %v1066
        %v1399 = vpop.f32.mrb[0].mxu0
        %v1400 = vadd.f32 0.0, %v1399
        %v1401 = vpop.f32.mrb[0].mxu0
        %v1402 = vpop.f32.mrb[0].mxu0
        %v1403 = vadd.f32 0.0, %v1402
        %v1404 = vpop.f32.mrb[0].mxu0
        %1405 = vmatprep.mubr.bf16.mxu0 0
        %1406 = vmatmul.mubr.bf16.gmra.mrb[0].mxu0 %v1067
        %v1407 = vpop.f32.mrb[0].mxu0
        %v1408 = vadd.f32 0.0, %v1407
        %v1409 = vpop.f32.mrb[0].mxu0
        %v1410 = vpop.f32.mrb[0].mxu0
        %v1411 = vadd.f32 0.0, %v1410
        %v1412 = vpop.f32.mrb[0].mxu0
        %1413 = vmatprep.mubr.bf16.mxu0 0
        %1414 = vmatmul.mubr.bf16.gmra.mrb[0].mxu0 %v1068
        %v1415 = vpop.f32.mrb[0].mxu0
        %v1416 = vadd.f32 0.0, %v1415
        %v1417 = vpop.f32.mrb[0].mxu0
        %v1418 = vpop.f32.mrb[0].mxu0
        %v1419 = vadd.f32 0.0, %v1418
        %v1420 = vpop.f32.mrb[0].mxu0
        %1421 = vmatprep.mubr.bf16.mxu0 0
        %1422 = vmatmul.mubr.bf16.gmra.mrb[0].mxu0 %v1069
        %v1423 = vpop.f32.mrb[0].mxu0
        %v1424 = vadd.f32 0.0, %v1423
        %v1425 = vpop.f32.mrb[0].mxu0
        %v1426 = vpop.f32.mrb[0].mxu0
        %v1427 = vadd.f32 0.0, %v1426
        %v1428 = vpop.f32.mrb[0].mxu0
        %1429 = vmatprep.mubr.bf16.mxu0 0
        %1430 = vmatmul.mubr.bf16.gmra.mrb[0].mxu0 %v1070
        %v1431 = vpop.f32.mrb[0].mxu0
        %v1432 = vadd.f32 0.0, %v1431
        %v1433 = vpop.f32.mrb[0].mxu0
        %v1434 = vpop.f32.mrb[0].mxu0
        %v1435 = vadd.f32 0.0, %v1434
        %v1436 = vpop.f32.mrb[0].mxu0
        %1437 = vmatprep.mubr.bf16.mxu0 0
        %1438 = vmatmul.mubr.bf16.gmra.mrb[0].mxu0 %v1071
        %v1439 = vpop.f32.mrb[0].mxu0
        %v1440 = vadd.f32 0.0, %v1439
        %v1441 = vpop.f32.mrb[0].mxu0
        %v1442 = vpop.f32.mrb[0].mxu0
        %v1443 = vadd.f32 0.0, %v1442
        %v1444 = vpop.f32.mrb[0].mxu0
        %1445 = vmatprep.mubr.bf16.mxu0 0
        %1446 = vmatmul.mubr.bf16.gmra.mrb[0].mxu0 %v1072
        %v1447 = vpop.f32.mrb[0].mxu0
        %v1448 = vadd.f32 0.0, %v1447
        %v1449 = vpop.f32.mrb[0].mxu0
        %v1450 = vpop.f32.mrb[0].mxu0
        %v1451 = vadd.f32 0.0, %v1450
        %v1452 = vpop.f32.mrb[0].mxu0
        %1453 = vmatprep.mubr.bf16.mxu0 0
        %1454 = vmatmul.mubr.bf16.gmra.mrb[0].mxu0 %v1073
        %v1455 = vpop.f32.mrb[0].mxu0
        %v1456 = vadd.f32 0.0, %v1455
        %v1457 = vpop.f32.mrb[0].mxu0
        %v1458 = vpop.f32.mrb[0].mxu0
        %v1459 = vadd.f32 0.0, %v1458
        %v1460 = vpop.f32.mrb[0].mxu0
        %1461 = vmatprep.mubr.bf16.mxu0 0
        %1462 = vmatmul.mubr.bf16.gmra.mrb[0].mxu0 %v1074
        %v1463 = vpop.f32.mrb[0].mxu0
        %v1464 = vadd.f32 0.0, %v1463
        %v1465 = vpop.f32.mrb[0].mxu0
        %v1466 = vpop.f32.mrb[0].mxu0
        %v1467 = vadd.f32 0.0, %v1466
        %v1468 = vpop.f32.mrb[0].mxu0
        %1469 = vmatprep.mubr.bf16.mxu0 0
        %1470 = vmatmul.mubr.bf16.gmra.mrb[0].mxu0 %v1075
        %v1471 = vpop.f32.mrb[0].mxu0
        %v1472 = vadd.f32 0.0, %v1471
        %v1473 = vpop.f32.mrb[0].mxu0
        %v1474 = vpop.f32.mrb[0].mxu0
        %v1475 = vadd.f32 0.0, %v1474
        %v1476 = vpop.f32.mrb[0].mxu0
        %1477 = vmatprep.mubr.bf16.mxu0 0
        %1478 = vmatmul.mubr.bf16.gmra.mrb[0].mxu0 %v1076
        %v1479 = vpop.f32.mrb[0].mxu0
        %v1480 = vadd.f32 0.0, %v1479
        %v1481 = vpop.f32.mrb[0].mxu0
        %v1482 = vpop.f32.mrb[0].mxu0
        %v1483 = vadd.f32 0.0, %v1482
        %v1484 = vpop.f32.mrb[0].mxu0
        %1485 = vmatprep.mubr.bf16.mxu0 0
        %1486 = vmatmul.mubr.bf16.gmra.mrb[0].mxu0 %v1077
        %v1487 = vpop.f32.mrb[0].mxu0
        %v1488 = vadd.f32 0.0, %v1487
        %v1489 = vpop.f32.mrb[0].mxu0
        %v1490 = vpop.f32.mrb[0].mxu0
        %v1491 = vadd.f32 0.0, %v1490
        %v1492 = vpop.f32.mrb[0].mxu0
        %1493 = vmatprep.mubr.bf16.mxu0 0
        %1494 = vmatmul.mubr.bf16.gmra.mrb[0].mxu0 %v1078
        %v1495 = vpop.f32.mrb[0].mxu0
        %v1496 = vadd.f32 0.0, %v1495
        %v1497 = vpop.f32.mrb[0].mxu0
        %v1498 = vpop.f32.mrb[0].mxu0
        %v1499 = vadd.f32 0.0, %v1498
        %v1500 = vpop.f32.mrb[0].mxu0
        %1501 = vmatprep.mubr.bf16.mxu0 0
        %1502 = vmatmul.mubr.bf16.gmra.mrb[0].mxu0 %v1079
        %v1503 = vpop.f32.mrb[0].mxu0
        %v1504 = vadd.f32 0.0, %v1503
        %v1505 = vpop.f32.mrb[0].mxu0
        %v1506 = vpop.f32.mrb[0].mxu0
        %v1507 = vadd.f32 0.0, %v1506
        %v1508 = vpop.f32.mrb[0].mxu0
        %1509 = vmatprep.mubr.bf16.mxu0 0
        %1510 = vmatmul.mubr.bf16.gmra.mrb[0].mxu0 %v1080
        %v1511 = vpop.f32.mrb[0].mxu0
        %v1512 = vadd.f32 0.0, %v1511
        %v1513 = vpop.f32.mrb[0].mxu0
        %v1514 = vpop.f32.mrb[0].mxu0
        %v1515 = vadd.f32 0.0, %v1514
        %v1516 = vpop.f32.mrb[0].mxu0
        %1517 = vmatprep.mubr.bf16.mxu0 0
        %1518 = vmatmul.mubr.bf16.gmra.mrb[0].mxu0 %v1081
        %v1519 = vpop.f32.mrb[0].mxu0
        %v1520 = vadd.f32 0.0, %v1519
        %v1521 = vpop.f32.mrb[0].mxu0
        %v1522 = vpop.f32.mrb[0].mxu0
        %v1523 = vadd.f32 0.0, %v1522
        %v1524 = vpop.f32.mrb[0].mxu0
        %1525 = vmatprep.mubr.bf16.mxu0 0
        %1526 = vmatmul.mubr.bf16.gmra.mrb[0].mxu0 %v1082
        %v1527 = vpop.f32.mrb[0].mxu0
        %v1528 = vadd.f32 0.0, %v1527
        %v1529 = vpop.f32.mrb[0].mxu0
        %v1530 = vpop.f32.mrb[0].mxu0
        %v1531 = vadd.f32 0.0, %v1530
        %v1532 = vpop.f32.mrb[0].mxu0
        %1533 = vmatprep.mubr.bf16.mxu0 0
        %1534 = vmatmul.mubr.bf16.gmra.mrb[0].mxu0 %v1083
        %v1535 = vpop.f32.mrb[0].mxu0
        %v1536 = vadd.f32 0.0, %v1535
        %v1537 = vpop.f32.mrb[0].mxu0
        %v1538 = vpop.f32.mrb[0].mxu0
        %v1539 = vadd.f32 0.0, %v1538
        %v1540 = vpop.f32.mrb[0].mxu0
        %1541 = vmatprep.mubr.bf16.mxu0 0
        %1542 = vmatmul.mubr.bf16.gmra.mrb[0].mxu0 %v1084
        %v1543 = vpop.f32.mrb[0].mxu0
        %v1544 = vadd.f32 0.0, %v1543
        %v1545 = vpop.f32.mrb[0].mxu0
        %v1546 = vpop.f32.mrb[0].mxu0
        %v1547 = vadd.f32 0.0, %v1546
        %v1548 = vpop.f32.mrb[0].mxu0
        %1549 = vmatprep.mubr.bf16.mxu0 0
        %1550 = vmatmul.mubr.bf16.gmra.mrb[0].mxu0 %v1085
        %v1551 = vpop.f32.mrb[0].mxu0
        %v1552 = vadd.f32 0.0, %v1551
        %v1553 = vpop.f32.mrb[0].mxu0
        %v1554 = vpop.f32.mrb[0].mxu0
        %v1555 = vadd.f32 0.0, %v1554
        %v1556 = vpop.f32.mrb[0].mxu0
        %1557 = vmatprep.mubr.bf16.mxu0 0
        %1558 = vmatmul.mubr.bf16.gmra.mrb[0].mxu0 %v1086
        %v1559 = vpop.f32.mrb[0].mxu0
        %v1560 = vadd.f32 0.0, %v1559
        %v1561 = vpop.f32.mrb[0].mxu0
        %v1562 = vpop.f32.mrb[0].mxu0
        %v1563 = vadd.f32 0.0, %v1562
        %v1564 = vpop.f32.mrb[0].mxu0
        %1565 = vmatprep.mubr.bf16.mxu0 0
        %1566 = vmatmul.mubr.bf16.gmra.mrb[0].mxu0 %v1087
        %v1567 = vpop.f32.mrb[0].mxu0
        %v1568 = vadd.f32 0.0, %v1567
        %v1569 = vpop.f32.mrb[0].mxu0
        %v1570 = vpop.f32.mrb[0].mxu0
        %v1571 = vadd.f32 0.0, %v1570
        %v1572 = vpop.f32.mrb[0].mxu0
        %1573 = vmatprep.mubr.bf16.mxu0 0
        %1574 = vmatmul.mubr.bf16.gmra.mrb[0].mxu0 %v1088
        %v1575 = vpop.f32.mrb[0].mxu0
        %v1576 = vadd.f32 0.0, %v1575
        %v1577 = vpop.f32.mrb[0].mxu0
        %v1578 = vpop.f32.mrb[0].mxu0
        %v1579 = vadd.f32 0.0, %v1578
        %v1580 = vpop.f32.mrb[0].mxu0
        %1581 = vmatprep.mubr.bf16.mxu0 0
        %1582 = vmatmul.mubr.bf16.gmra.mrb[0].mxu0 %v1089
        %v1583 = vpop.f32.mrb[0].mxu0
        %v1584 = vadd.f32 0.0, %v1583
        %v1585 = vpop.f32.mrb[0].mxu0
        %v1586 = vpop.f32.mrb[0].mxu0
        %v1587 = vadd.f32 0.0, %v1586
        %v1588 = vpop.f32.mrb[0].mxu0
        %1589 = vmatprep.mubr.bf16.mxu0 0
        %1590 = vmatmul.mubr.bf16.gmra.mrb[0].mxu0 %v1090
        %v1591 = vpop.f32.mrb[0].mxu0
        %v1592 = vadd.f32 0.0, %v1591
        %v1593 = vpop.f32.mrb[0].mxu0
        %v1594 = vpop.f32.mrb[0].mxu0
        %v1595 = vadd.f32 0.0, %v1594
        %v1596 = vpop.f32.mrb[0].mxu0
        %1597 = vmatprep.mubr.bf16.mxu0 0
        %1598 = vmatmul.mubr.bf16.gmra.mrb[0].mxu0 %v1091
        %v1599 = vpop.f32.mrb[0].mxu0
        %v1600 = vadd.f32 0.0, %v1599
        %v1601 = vpop.f32.mrb[0].mxu0
        %v1602 = vpop.f32.mrb[0].mxu0
        %v1603 = vadd.f32 0.0, %v1602
        %v1604 = vpop.f32.mrb[0].mxu0
        %1605 = vmatprep.mubr.bf16.mxu0 0
        %1606 = vmatmul.mubr.bf16.gmra.mrb[0].mxu0 %v1092
        %v1607 = vpop.f32.mrb[0].mxu0
        %v1608 = vadd.f32 0.0, %v1607
        %v1609 = vpop.f32.mrb[0].mxu0
        %v1610 = vpop.f32.mrb[0].mxu0
        %v1611 = vadd.f32 0.0, %v1610
        %v1612 = vpop.f32.mrb[0].mxu0
        %1613 = vmatprep.mubr.bf16.mxu0 0
        %1614 = vmatmul.mubr.bf16.gmra.mrb[0].mxu0 %v1093
        %v1615 = vpop.f32.mrb[0].mxu0
        %v1616 = vadd.f32 0.0, %v1615
        %v1617 = vpop.f32.mrb[0].mxu0
        %v1618 = vpop.f32.mrb[0].mxu0
        %v1619 = vadd.f32 0.0, %v1618
        %v1620 = vpop.f32.mrb[0].mxu0
        %1621 = vmatprep.mubr.bf16.mxu0 0
        %1622 = vmatmul.mubr.bf16.gmra.mrb[0].mxu0 %v1094
        %v1623 = vpop.f32.mrb[0].mxu0
        %v1624 = vadd.f32 0.0, %v1623
        %v1625 = vpop.f32.mrb[0].mxu0
        %v1626 = vpop.f32.mrb[0].mxu0
        %v1627 = vadd.f32 0.0, %v1626
        %v1628 = vpop.f32.mrb[0].mxu0
        %1629 = vmatprep.mubr.bf16.mxu0 0
        %1630 = vmatmul.mubr.bf16.gmra.mrb[0].mxu0 %v1095
        %v1631 = vpop.f32.mrb[0].mxu0
        %v1632 = vadd.f32 0.0, %v1631
        %v1633 = vpop.f32.mrb[0].mxu0
        %v1634 = vpop.f32.mrb[0].mxu0
        %v1635 = vadd.f32 0.0, %v1634
        %v1636 = vpop.f32.mrb[0].mxu0
        %1637 = vmatprep.mubr.bf16.mxu0 0
        %1638 = vmatmul.mubr.bf16.gmra.mrb[0].mxu0 %v1096
        %v1639 = vpop.f32.mrb[0].mxu0
        %v1640 = vadd.f32 0.0, %v1639
        %v1641 = vpop.f32.mrb[0].mxu0
        %v1642 = vpop.f32.mrb[0].mxu0
        %v1643 = vadd.f32 0.0, %v1642
        %v1644 = vpop.f32.mrb[0].mxu0
        %1645 = vmatprep.mubr.bf16.mxu0 0
        %1646 = vmatmul.mubr.bf16.gmra.mrb[0].mxu0 %v1097
        %v1647 = vpop.f32.mrb[0].mxu0
        %v1648 = vadd.f32 0.0, %v1647
        %v1649 = vpop.f32.mrb[0].mxu0
        %v1650 = vpop.f32.mrb[0].mxu0
        %v1651 = vadd.f32 0.0, %v1650
        %v1652 = vpop.f32.mrb[0].mxu0
        %1653 = vmatprep.mubr.bf16.mxu0 0
        %1654 = vmatmul.mubr.bf16.gmra.mrb[0].mxu0 %v1098
        %v1655 = vpop.f32.mrb[0].mxu0
        %v1656 = vadd.f32 0.0, %v1655
        %v1657 = vpop.f32.mrb[0].mxu0
        %v1658 = vpop.f32.mrb[0].mxu0
        %v1659 = vadd.f32 0.0, %v1658
        %v1660 = vpop.f32.mrb[0].mxu0
        %1661 = vmatprep.mubr.bf16.mxu0 0
        %1662 = vmatmul.mubr.bf16.gmra.mrb[0].mxu0 %v1099
        %v1663 = vpop.f32.mrb[0].mxu0
        %v1664 = vadd.f32 0.0, %v1663
        %v1665 = vpop.f32.mrb[0].mxu0
        %v1666 = vpop.f32.mrb[0].mxu0
        %v1667 = vadd.f32 0.0, %v1666
        %v1668 = vpop.f32.mrb[0].mxu0
        %1669 = vmatprep.mubr.bf16.mxu0 0
        %1670 = vmatmul.mubr.bf16.gmra.mrb[0].mxu0 %v1100
        %v1671 = vpop.f32.mrb[0].mxu0
        %v1672 = vadd.f32 0.0, %v1671
        %v1673 = vpop.f32.mrb[0].mxu0
        %v1674 = vpop.f32.mrb[0].mxu0
        %v1675 = vadd.f32 0.0, %v1674
        %v1676 = vpop.f32.mrb[0].mxu0
        %1677 = vmatprep.mubr.bf16.mxu0 0
        %1678 = vmatmul.mubr.bf16.gmra.mrb[0].mxu0 %v1101
        %v1679 = vpop.f32.mrb[0].mxu0
        %v1680 = vadd.f32 0.0, %v1679
        %v1681 = vpop.f32.mrb[0].mxu0
        %v1682 = vpop.f32.mrb[0].mxu0
        %v1683 = vadd.f32 0.0, %v1682
        %v1684 = vpop.f32.mrb[0].mxu0
        %1685 = vmatprep.mubr.bf16.mxu0 0
        %1686 = vmatmul.mubr.bf16.gmra.mrb[0].mxu0 %v1102
        %v1687 = vpop.f32.mrb[0].mxu0
        %v1688 = vadd.f32 0.0, %v1687
        %v1689 = vpop.f32.mrb[0].mxu0
        %v1690 = vpop.f32.mrb[0].mxu0
        %v1691 = vadd.f32 0.0, %v1690
        %v1692 = vpop.f32.mrb[0].mxu0
        %1693 = vmatprep.mubr.bf16.mxu0 0
        %1694 = vmatmul.mubr.bf16.gmra.mrb[0].mxu0 %v1103
        %v1695 = vpop.f32.mrb[0].mxu0
        %v1696 = vadd.f32 0.0, %v1695
        %v1697 = vpop.f32.mrb[0].mxu0
        %v1698 = vpop.f32.mrb[0].mxu0
        %v1699 = vadd.f32 0.0, %v1698
        %v1700 = vpop.f32.mrb[0].mxu0
        %1701 = vmatprep.mubr.bf16.mxu0 0
        %1702 = vmatmul.mubr.bf16.gmra.mrb[0].mxu0 %v1104
        %v1703 = vpop.f32.mrb[0].mxu0
        %v1704 = vadd.f32 0.0, %v1703
        %v1705 = vpop.f32.mrb[0].mxu0
        %v1706 = vpop.f32.mrb[0].mxu0
        %v1707 = vadd.f32 0.0, %v1706
        %v1708 = vpop.f32.mrb[0].mxu0
        %1709 = vmatprep.mubr.bf16.mxu0 0
        %1710 = vmatmul.mubr.bf16.gmra.mrb[0].mxu0 %v1105
        %v1711 = vpop.f32.mrb[0].mxu0
        %v1712 = vadd.f32 0.0, %v1711
        %v1713 = vpop.f32.mrb[0].mxu0
        %v1714 = vpop.f32.mrb[0].mxu0
        %v1715 = vadd.f32 0.0, %v1714
        %v1716 = vpop.f32.mrb[0].mxu0
        %1717 = vmatprep.mubr.bf16.mxu0 0
        %1718 = vmatmul.mubr.bf16.gmra.mrb[0].mxu0 %v1106
        %v1719 = vpop.f32.mrb[0].mxu0
        %v1720 = vadd.f32 0.0, %v1719
        %v1721 = vpop.f32.mrb[0].mxu0
        %v1722 = vpop.f32.mrb[0].mxu0
        %v1723 = vadd.f32 0.0, %v1722
        %v1724 = vpop.f32.mrb[0].mxu0
        %1725 = vmatprep.mubr.bf16.mxu0 0
        %1726 = vmatmul.mubr.bf16.gmra.mrb[0].mxu0 %v1107
        %v1727 = vpop.f32.mrb[0].mxu0
        %v1728 = vadd.f32 0.0, %v1727
        %v1729 = vpop.f32.mrb[0].mxu0
        %v1730 = vpop.f32.mrb[0].mxu0
        %v1731 = vadd.f32 0.0, %v1730
        %v1732 = vpop.f32.mrb[0].mxu0
        %1733 = vdwg.mxu0
        %v1750 = vunpack.c.l.b16 %v1108
        %v1751 = vunpack.c.l.b16 %v1109
        %v1752 = vunpack.c.l.b16 %v1110
        %v1753 = vunpack.c.l.b16 %v1111
        %v1754 = vunpack.c.l.b16 %v1112
        %v1755 = vunpack.c.l.b16 %v1113
        %v1756 = vunpack.c.l.b16 %v1114
        %v1757 = vunpack.c.l.b16 %v1115
        %v1758 = vunpack.c.l.b16 %v1116
        %v1759 = vunpack.c.l.b16 %v1117
        %v1760 = vunpack.c.l.b16 %v1118
        %v1761 = vunpack.c.l.b16 %v1119
        %v1762 = vunpack.c.l.b16 %v1120
        %v1763 = vunpack.c.l.b16 %v1121
        %v1764 = vunpack.c.l.b16 %v1122
        %v1765 = vunpack.c.l.b16 %v1123
        %v1766 = vpack.c.b16 %v1751, %v1750
        %v1767 = vpack.c.b16 %v1753, %v1752
        %v1768 = vpack.c.b16 %v1755, %v1754
        %v1769 = vpack.c.b16 %v1757, %v1756
        %v1770 = vpack.c.b16 %v1759, %v1758
        %v1771 = vpack.c.b16 %v1761, %v1760
        %v1772 = vpack.c.b16 %v1763, %v1762
        %v1773 = vpack.c.b16 %v1765, %v1764
        %1782 = vmatprep.subr.bf16.mxu0 0
        %1783 = vmatpush1.bf16.msra.mxu0 %v1766
        %1784 = vmatprep.subr.bf16.mxu0 0
        %1785 = vmatpush1.bf16.msra.mxu0 %v1767
        %1786 = vmatprep.subr.bf16.mxu0 0
        %1787 = vmatpush1.bf16.msra.mxu0 %v1768
        %1788 = vmatprep.subr.bf16.mxu0 0
        %1789 = vmatpush1.bf16.msra.mxu0 %v1769
        %1790 = vmatprep.subr.bf16.mxu0 0
        %1791 = vmatpush1.bf16.msra.mxu0 %v1770
        %1792 = vmatprep.subr.bf16.mxu0 0
        %1793 = vmatpush1.bf16.msra.mxu0 %v1771
        %1794 = vmatprep.subr.bf16.mxu0 0
        %1795 = vmatpush1.bf16.msra.mxu0 %v1772
        %1796 = vmatprep.subr.bf16.mxu0 0
        %1797 = vmatpush1.bf16.msra.mxu0 %v1773
        %1798 = vmatprep.subr.bf16.mxu0 0
        %1799 = vmatpush1.bf16.msra.mxu0 0
        %1800 = vmatprep.subr.bf16.mxu0 0
        %1801 = vmatpush1.bf16.msra.mxu0 0
        %1802 = vmatprep.subr.bf16.mxu0 0
        %1803 = vmatpush1.bf16.msra.mxu0 0
        %1804 = vmatprep.subr.bf16.mxu0 0
        %1805 = vmatpush1.bf16.msra.mxu0 0
        %1806 = vmatprep.subr.bf16.mxu0 0
        %1807 = vmatpush1.bf16.msra.mxu0 0
        %1808 = vmatprep.subr.bf16.mxu0 0
        %1809 = vmatpush1.bf16.msra.mxu0 0
        %1810 = vmatprep.subr.bf16.mxu0 0
        %1811 = vmatpush1.bf16.msra.mxu0 0
        %1812 = vmatprep.subr.bf16.mxu0 0
        %1813 = vmatpush1.bf16.msra.mxu0 0
        %1814 = vmatprep.mubr.bf16.mxu0 0
        %1815 = vmatmul.mubr.bf16.gmra.mrb[0].mxu0 %v1044
        %v1816 = vpop.f32.mrb[0].mxu0
        %v1817 = vadd.f32 %v1224, %v1816
        %v1818 = vpop.f32.mrb[0].mxu0
        %v1819 = vpop.f32.mrb[0].mxu0
        %v1820 = vadd.f32 %v1227, %v1819
        %v1821 = vpop.f32.mrb[0].mxu0
        %1822 = vmatprep.mubr.bf16.mxu0 0
        %1823 = vmatmul.mubr.bf16.gmra.mrb[0].mxu0 %v1045
        %v1824 = vpop.f32.mrb[0].mxu0
        %v1825 = vadd.f32 %v1232, %v1824
        %v1826 = vpop.f32.mrb[0].mxu0
        %v1827 = vpop.f32.mrb[0].mxu0
        %v1828 = vadd.f32 %v1235, %v1827
        %v1829 = vpop.f32.mrb[0].mxu0
        %1830 = vmatprep.mubr.bf16.mxu0 0
        %1831 = vmatmul.mubr.bf16.gmra.mrb[0].mxu0 %v1046
        %v1832 = vpop.f32.mrb[0].mxu0
        %v1833 = vadd.f32 %v1240, %v1832
        %v1834 = vpop.f32.mrb[0].mxu0
        %v1835 = vpop.f32.mrb[0].mxu0
        %v1836 = vadd.f32 %v1243, %v1835
        %v1837 = vpop.f32.mrb[0].mxu0
        %1838 = vmatprep.mubr.bf16.mxu0 0
        %1839 = vmatmul.mubr.bf16.gmra.mrb[0].mxu0 %v1047
        %v1840 = vpop.f32.mrb[0].mxu0
        %v1841 = vadd.f32 %v1248, %v1840
        %v1842 = vpop.f32.mrb[0].mxu0
        %v1843 = vpop.f32.mrb[0].mxu0
        %v1844 = vadd.f32 %v1251, %v1843
        %v1845 = vpop.f32.mrb[0].mxu0
        %1846 = vmatprep.mubr.bf16.mxu0 0
        %1847 = vmatmul.mubr.bf16.gmra.mrb[0].mxu0 %v1048
        %v1848 = vpop.f32.mrb[0].mxu0
        %v1849 = vadd.f32 %v1256, %v1848
        %v1850 = vpop.f32.mrb[0].mxu0
        %v1851 = vpop.f32.mrb[0].mxu0
        %v1852 = vadd.f32 %v1259, %v1851
        %v1853 = vpop.f32.mrb[0].mxu0
        %1854 = vmatprep.mubr.bf16.mxu0 0
        %1855 = vmatmul.mubr.bf16.gmra.mrb[0].mxu0 %v1049
        %v1856 = vpop.f32.mrb[0].mxu0
        %v1857 = vadd.f32 %v1264, %v1856
        %v1858 = vpop.f32.mrb[0].mxu0
        %v1859 = vpop.f32.mrb[0].mxu0
        %v1860 = vadd.f32 %v1267, %v1859
        %v1861 = vpop.f32.mrb[0].mxu0
        %1862 = vmatprep.mubr.bf16.mxu0 0
        %1863 = vmatmul.mubr.bf16.gmra.mrb[0].mxu0 %v1050
        %v1864 = vpop.f32.mrb[0].mxu0
        %v1865 = vadd.f32 %v1272, %v1864
        %v1866 = vpop.f32.mrb[0].mxu0
        %v1867 = vpop.f32.mrb[0].mxu0
        %v1868 = vadd.f32 %v1275, %v1867
        %v1869 = vpop.f32.mrb[0].mxu0
        %1870 = vmatprep.mubr.bf16.mxu0 0
        %1871 = vmatmul.mubr.bf16.gmra.mrb[0].mxu0 %v1051
        %v1872 = vpop.f32.mrb[0].mxu0
        %v1873 = vadd.f32 %v1280, %v1872
        %v1874 = vpop.f32.mrb[0].mxu0
        %v1875 = vpop.f32.mrb[0].mxu0
        %v1876 = vadd.f32 %v1283, %v1875
        %v1877 = vpop.f32.mrb[0].mxu0
        %1878 = vmatprep.mubr.bf16.mxu0 0
        %1879 = vmatmul.mubr.bf16.gmra.mrb[0].mxu0 %v1052
        %v1880 = vpop.f32.mrb[0].mxu0
        %v1881 = vadd.f32 %v1288, %v1880
        %v1882 = vpop.f32.mrb[0].mxu0
        %v1883 = vpop.f32.mrb[0].mxu0
        %v1884 = vadd.f32 %v1291, %v1883
        %v1885 = vpop.f32.mrb[0].mxu0
        %1886 = vmatprep.mubr.bf16.mxu0 0
        %1887 = vmatmul.mubr.bf16.gmra.mrb[0].mxu0 %v1053
        %v1888 = vpop.f32.mrb[0].mxu0
        %v1889 = vadd.f32 %v1296, %v1888
        %v1890 = vpop.f32.mrb[0].mxu0
        %v1891 = vpop.f32.mrb[0].mxu0
        %v1892 = vadd.f32 %v1299, %v1891
        %v1893 = vpop.f32.mrb[0].mxu0
        %1894 = vmatprep.mubr.bf16.mxu0 0
        %1895 = vmatmul.mubr.bf16.gmra.mrb[0].mxu0 %v1054
        %v1896 = vpop.f32.mrb[0].mxu0
        %v1897 = vadd.f32 %v1304, %v1896
        %v1898 = vpop.f32.mrb[0].mxu0
        %v1899 = vpop.f32.mrb[0].mxu0
        %v1900 = vadd.f32 %v1307, %v1899
        %v1901 = vpop.f32.mrb[0].mxu0
        %1902 = vmatprep.mubr.bf16.mxu0 0
        %1903 = vmatmul.mubr.bf16.gmra.mrb[0].mxu0 %v1055
        %v1904 = vpop.f32.mrb[0].mxu0
        %v1905 = vadd.f32 %v1312, %v1904
        %v1906 = vpop.f32.mrb[0].mxu0
        %v1907 = vpop.f32.mrb[0].mxu0
        %v1908 = vadd.f32 %v1315, %v1907
        %v1909 = vpop.f32.mrb[0].mxu0
        %1910 = vmatprep.mubr.bf16.mxu0 0
        %1911 = vmatmul.mubr.bf16.gmra.mrb[0].mxu0 %v1056
        %v1912 = vpop.f32.mrb[0].mxu0
        %v1913 = vadd.f32 %v1320, %v1912
        %v1914 = vpop.f32.mrb[0].mxu0
        %v1915 = vpop.f32.mrb[0].mxu0
        %v1916 = vadd.f32 %v1323, %v1915
        %v1917 = vpop.f32.mrb[0].mxu0
        %1918 = vmatprep.mubr.bf16.mxu0 0
        %1919 = vmatmul.mubr.bf16.gmra.mrb[0].mxu0 %v1057
        %v1920 = vpop.f32.mrb[0].mxu0
        %v1921 = vadd.f32 %v1328, %v1920
        %v1922 = vpop.f32.mrb[0].mxu0
        %v1923 = vpop.f32.mrb[0].mxu0
        %v1924 = vadd.f32 %v1331, %v1923
        %v1925 = vpop.f32.mrb[0].mxu0
        %1926 = vmatprep.mubr.bf16.mxu0 0
        %1927 = vmatmul.mubr.bf16.gmra.mrb[0].mxu0 %v1058
        %v1928 = vpop.f32.mrb[0].mxu0
        %v1929 = vadd.f32 %v1336, %v1928
        %v1930 = vpop.f32.mrb[0].mxu0
        %v1931 = vpop.f32.mrb[0].mxu0
        %v1932 = vadd.f32 %v1339, %v1931
        %v1933 = vpop.f32.mrb[0].mxu0
        %1934 = vmatprep.mubr.bf16.mxu0 0
        %1935 = vmatmul.mubr.bf16.gmra.mrb[0].mxu0 %v1059
        %v1936 = vpop.f32.mrb[0].mxu0
        %v1937 = vadd.f32 %v1344, %v1936
        %v1938 = vpop.f32.mrb[0].mxu0
        %v1939 = vpop.f32.mrb[0].mxu0
        %v1940 = vadd.f32 %v1347, %v1939
        %v1941 = vpop.f32.mrb[0].mxu0
        %1942 = vmatprep.mubr.bf16.mxu0 0
        %1943 = vmatmul.mubr.bf16.gmra.mrb[0].mxu0 %v1060
        %v1944 = vpop.f32.mrb[0].mxu0
        %v1945 = vadd.f32 %v1352, %v1944
        %v1946 = vpop.f32.mrb[0].mxu0
        %v1947 = vpop.f32.mrb[0].mxu0
        %v1948 = vadd.f32 %v1355, %v1947
        %v1949 = vpop.f32.mrb[0].mxu0
        %1950 = vmatprep.mubr.bf16.mxu0 0
        %1951 = vmatmul.mubr.bf16.gmra.mrb[0].mxu0 %v1061
        %v1952 = vpop.f32.mrb[0].mxu0
        %v1953 = vadd.f32 %v1360, %v1952
        %v1954 = vpop.f32.mrb[0].mxu0
        %v1955 = vpop.f32.mrb[0].mxu0
        %v1956 = vadd.f32 %v1363, %v1955
        %v1957 = vpop.f32.mrb[0].mxu0
        %1958 = vmatprep.mubr.bf16.mxu0 0
        %1959 = vmatmul.mubr.bf16.gmra.mrb[0].mxu0 %v1062
        %v1960 = vpop.f32.mrb[0].mxu0
        %v1961 = vadd.f32 %v1368, %v1960
        %v1962 = vpop.f32.mrb[0].mxu0
        %v1963 = vpop.f32.mrb[0].mxu0
        %v1964 = vadd.f32 %v1371, %v1963
        %v1965 = vpop.f32.mrb[0].mxu0
        %1966 = vmatprep.mubr.bf16.mxu0 0
        %1967 = vmatmul.mubr.bf16.gmra.mrb[0].mxu0 %v1063
        %v1968 = vpop.f32.mrb[0].mxu0
        %v1969 = vadd.f32 %v1376, %v1968
        %v1970 = vpop.f32.mrb[0].mxu0
        %v1971 = vpop.f32.mrb[0].mxu0
        %v1972 = vadd.f32 %v1379, %v1971
        %v1973 = vpop.f32.mrb[0].mxu0
        %1974 = vmatprep.mubr.bf16.mxu0 0
        %1975 = vmatmul.mubr.bf16.gmra.mrb[0].mxu0 %v1064
        %v1976 = vpop.f32.mrb[0].mxu0
        %v1977 = vadd.f32 %v1384, %v1976
        %v1978 = vpop.f32.mrb[0].mxu0
        %v1979 = vpop.f32.mrb[0].mxu0
        %v1980 = vadd.f32 %v1387, %v1979
        %v1981 = vpop.f32.mrb[0].mxu0
        %1982 = vmatprep.mubr.bf16.mxu0 0
        %1983 = vmatmul.mubr.bf16.gmra.mrb[0].mxu0 %v1065
        %v1984 = vpop.f32.mrb[0].mxu0
        %v1985 = vadd.f32 %v1392, %v1984
        %v1986 = vpop.f32.mrb[0].mxu0
        %v1987 = vpop.f32.mrb[0].mxu0
        %v1988 = vadd.f32 %v1395, %v1987
        %v1989 = vpop.f32.mrb[0].mxu0
        %1990 = vmatprep.mubr.bf16.mxu0 0
        %1991 = vmatmul.mubr.bf16.gmra.mrb[0].mxu0 %v1066
        %v1992 = vpop.f32.mrb[0].mxu0
        %v1993 = vadd.f32 %v1400, %v1992
        %v1994 = vpop.f32.mrb[0].mxu0
        %v1995 = vpop.f32.mrb[0].mxu0
        %v1996 = vadd.f32 %v1403, %v1995
        %v1997 = vpop.f32.mrb[0].mxu0
        %1998 = vmatprep.mubr.bf16.mxu0 0
        %1999 = vmatmul.mubr.bf16.gmra.mrb[0].mxu0 %v1067
        %v2000 = vpop.f32.mrb[0].mxu0
        %v2001 = vadd.f32 %v1408, %v2000
        %v2002 = vpop.f32.mrb[0].mxu0
        %v2003 = vpop.f32.mrb[0].mxu0
        %v2004 = vadd.f32 %v1411, %v2003
        %v2005 = vpop.f32.mrb[0].mxu0
        %2006 = vmatprep.mubr.bf16.mxu0 0
        %2007 = vmatmul.mubr.bf16.gmra.mrb[0].mxu0 %v1068
        %v2008 = vpop.f32.mrb[0].mxu0
        %v2009 = vadd.f32 %v1416, %v2008
        %v2010 = vpop.f32.mrb[0].mxu0
        %v2011 = vpop.f32.mrb[0].mxu0
        %v2012 = vadd.f32 %v1419, %v2011
        %v2013 = vpop.f32.mrb[0].mxu0
        %2014 = vmatprep.mubr.bf16.mxu0 0
        %2015 = vmatmul.mubr.bf16.gmra.mrb[0].mxu0 %v1069
        %v2016 = vpop.f32.mrb[0].mxu0
        %v2017 = vadd.f32 %v1424, %v2016
        %v2018 = vpop.f32.mrb[0].mxu0
        %v2019 = vpop.f32.mrb[0].mxu0
        %v2020 = vadd.f32 %v1427, %v2019
        %v2021 = vpop.f32.mrb[0].mxu0
        %2022 = vmatprep.mubr.bf16.mxu0 0
        %2023 = vmatmul.mubr.bf16.gmra.mrb[0].mxu0 %v1070
        %v2024 = vpop.f32.mrb[0].mxu0
        %v2025 = vadd.f32 %v1432, %v2024
        %v2026 = vpop.f32.mrb[0].mxu0
        %v2027 = vpop.f32.mrb[0].mxu0
        %v2028 = vadd.f32 %v1435, %v2027
        %v2029 = vpop.f32.mrb[0].mxu0
        %2030 = vmatprep.mubr.bf16.mxu0 0
        %2031 = vmatmul.mubr.bf16.gmra.mrb[0].mxu0 %v1071
        %v2032 = vpop.f32.mrb[0].mxu0
        %v2033 = vadd.f32 %v1440, %v2032
        %v2034 = vpop.f32.mrb[0].mxu0
        %v2035 = vpop.f32.mrb[0].mxu0
        %v2036 = vadd.f32 %v1443, %v2035
        %v2037 = vpop.f32.mrb[0].mxu0
        %2038 = vmatprep.mubr.bf16.mxu0 0
        %2039 = vmatmul.mubr.bf16.gmra.mrb[0].mxu0 %v1072
        %v2040 = vpop.f32.mrb[0].mxu0
        %v2041 = vadd.f32 %v1448, %v2040
        %v2042 = vpop.f32.mrb[0].mxu0
        %v2043 = vpop.f32.mrb[0].mxu0
        %v2044 = vadd.f32 %v1451, %v2043
        %v2045 = vpop.f32.mrb[0].mxu0
        %2046 = vmatprep.mubr.bf16.mxu0 0
        %2047 = vmatmul.mubr.bf16.gmra.mrb[0].mxu0 %v1073
        %v2048 = vpop.f32.mrb[0].mxu0
        %v2049 = vadd.f32 %v1456, %v2048
        %v2050 = vpop.f32.mrb[0].mxu0
        %v2051 = vpop.f32.mrb[0].mxu0
        %v2052 = vadd.f32 %v1459, %v2051
        %v2053 = vpop.f32.mrb[0].mxu0
        %2054 = vmatprep.mubr.bf16.mxu0 0
        %2055 = vmatmul.mubr.bf16.gmra.mrb[0].mxu0 %v1074
        %v2056 = vpop.f32.mrb[0].mxu0
        %v2057 = vadd.f32 %v1464, %v2056
        %v2058 = vpop.f32.mrb[0].mxu0
        %v2059 = vpop.f32.mrb[0].mxu0
        %v2060 = vadd.f32 %v1467, %v2059
        %v2061 = vpop.f32.mrb[0].mxu0
        %2062 = vmatprep.mubr.bf16.mxu0 0
        %2063 = vmatmul.mubr.bf16.gmra.mrb[0].mxu0 %v1075
        %v2064 = vpop.f32.mrb[0].mxu0
        %v2065 = vadd.f32 %v1472, %v2064
        %v2066 = vpop.f32.mrb[0].mxu0
        %v2067 = vpop.f32.mrb[0].mxu0
        %v2068 = vadd.f32 %v1475, %v2067
        %v2069 = vpop.f32.mrb[0].mxu0
        %2070 = vmatprep.mubr.bf16.mxu0 0
        %2071 = vmatmul.mubr.bf16.gmra.mrb[0].mxu0 %v1076
        %v2072 = vpop.f32.mrb[0].mxu0
        %v2073 = vadd.f32 %v1480, %v2072
        %v2074 = vpop.f32.mrb[0].mxu0
        %v2075 = vpop.f32.mrb[0].mxu0
        %v2076 = vadd.f32 %v1483, %v2075
        %v2077 = vpop.f32.mrb[0].mxu0
        %2078 = vmatprep.mubr.bf16.mxu0 0
        %2079 = vmatmul.mubr.bf16.gmra.mrb[0].mxu0 %v1077
        %v2080 = vpop.f32.mrb[0].mxu0
        %v2081 = vadd.f32 %v1488, %v2080
        %v2082 = vpop.f32.mrb[0].mxu0
        %v2083 = vpop.f32.mrb[0].mxu0
        %v2084 = vadd.f32 %v1491, %v2083
        %v2085 = vpop.f32.mrb[0].mxu0
        %2086 = vmatprep.mubr.bf16.mxu0 0
        %2087 = vmatmul.mubr.bf16.gmra.mrb[0].mxu0 %v1078
        %v2088 = vpop.f32.mrb[0].mxu0
        %v2089 = vadd.f32 %v1496, %v2088
        %v2090 = vpop.f32.mrb[0].mxu0
        %v2091 = vpop.f32.mrb[0].mxu0
        %v2092 = vadd.f32 %v1499, %v2091
        %v2093 = vpop.f32.mrb[0].mxu0
        %2094 = vmatprep.mubr.bf16.mxu0 0
        %2095 = vmatmul.mubr.bf16.gmra.mrb[0].mxu0 %v1079
        %v2096 = vpop.f32.mrb[0].mxu0
        %v2097 = vadd.f32 %v1504, %v2096
        %v2098 = vpop.f32.mrb[0].mxu0
        %v2099 = vpop.f32.mrb[0].mxu0
        %v2100 = vadd.f32 %v1507, %v2099
        %v2101 = vpop.f32.mrb[0].mxu0
        %2102 = vmatprep.mubr.bf16.mxu0 0
        %2103 = vmatmul.mubr.bf16.gmra.mrb[0].mxu0 %v1080
        %v2104 = vpop.f32.mrb[0].mxu0
        %v2105 = vadd.f32 %v1512, %v2104
        %v2106 = vpop.f32.mrb[0].mxu0
        %v2107 = vpop.f32.mrb[0].mxu0
        %v2108 = vadd.f32 %v1515, %v2107
        %v2109 = vpop.f32.mrb[0].mxu0
        %2110 = vmatprep.mubr.bf16.mxu0 0
        %2111 = vmatmul.mubr.bf16.gmra.mrb[0].mxu0 %v1081
        %v2112 = vpop.f32.mrb[0].mxu0
        %v2113 = vadd.f32 %v1520, %v2112
        %v2114 = vpop.f32.mrb[0].mxu0
        %v2115 = vpop.f32.mrb[0].mxu0
        %v2116 = vadd.f32 %v1523, %v2115
        %v2117 = vpop.f32.mrb[0].mxu0
        %2118 = vmatprep.mubr.bf16.mxu0 0
        %2119 = vmatmul.mubr.bf16.gmra.mrb[0].mxu0 %v1082
        %v2120 = vpop.f32.mrb[0].mxu0
        %v2121 = vadd.f32 %v1528, %v2120
        %v2122 = vpop.f32.mrb[0].mxu0
        %v2123 = vpop.f32.mrb[0].mxu0
        %v2124 = vadd.f32 %v1531, %v2123
        %v2125 = vpop.f32.mrb[0].mxu0
        %2126 = vmatprep.mubr.bf16.mxu0 0
        %2127 = vmatmul.mubr.bf16.gmra.mrb[0].mxu0 %v1083
        %v2128 = vpop.f32.mrb[0].mxu0
        %v2129 = vadd.f32 %v1536, %v2128
        %v2130 = vpop.f32.mrb[0].mxu0
        %v2131 = vpop.f32.mrb[0].mxu0
        %v2132 = vadd.f32 %v1539, %v2131
        %v2133 = vpop.f32.mrb[0].mxu0
        %2134 = vmatprep.mubr.bf16.mxu0 0
        %2135 = vmatmul.mubr.bf16.gmra.mrb[0].mxu0 %v1084
        %v2136 = vpop.f32.mrb[0].mxu0
        %v2137 = vadd.f32 %v1544, %v2136
        %v2138 = vpop.f32.mrb[0].mxu0
        %v2139 = vpop.f32.mrb[0].mxu0
        %v2140 = vadd.f32 %v1547, %v2139
        %v2141 = vpop.f32.mrb[0].mxu0
        %2142 = vmatprep.mubr.bf16.mxu0 0
        %2143 = vmatmul.mubr.bf16.gmra.mrb[0].mxu0 %v1085
        %v2144 = vpop.f32.mrb[0].mxu0
        %v2145 = vadd.f32 %v1552, %v2144
        %v2146 = vpop.f32.mrb[0].mxu0
        %v2147 = vpop.f32.mrb[0].mxu0
        %v2148 = vadd.f32 %v1555, %v2147
        %v2149 = vpop.f32.mrb[0].mxu0
        %2150 = vmatprep.mubr.bf16.mxu0 0
        %2151 = vmatmul.mubr.bf16.gmra.mrb[0].mxu0 %v1086
        %v2152 = vpop.f32.mrb[0].mxu0
        %v2153 = vadd.f32 %v1560, %v2152
        %v2154 = vpop.f32.mrb[0].mxu0
        %v2155 = vpop.f32.mrb[0].mxu0
        %v2156 = vadd.f32 %v1563, %v2155
        %v2157 = vpop.f32.mrb[0].mxu0
        %2158 = vmatprep.mubr.bf16.mxu0 0
        %2159 = vmatmul.mubr.bf16.gmra.mrb[0].mxu0 %v1087
        %v2160 = vpop.f32.mrb[0].mxu0
        %v2161 = vadd.f32 %v1568, %v2160
        %v2162 = vpop.f32.mrb[0].mxu0
        %v2163 = vpop.f32.mrb[0].mxu0
        %v2164 = vadd.f32 %v1571, %v2163
        %v2165 = vpop.f32.mrb[0].mxu0
        %2166 = vmatprep.mubr.bf16.mxu0 0
        %2167 = vmatmul.mubr.bf16.gmra.mrb[0].mxu0 %v1088
        %v2168 = vpop.f32.mrb[0].mxu0
        %v2169 = vadd.f32 %v1576, %v2168
        %v2170 = vpop.f32.mrb[0].mxu0
        %v2171 = vpop.f32.mrb[0].mxu0
        %v2172 = vadd.f32 %v1579, %v2171
        %v2173 = vpop.f32.mrb[0].mxu0
        %2174 = vmatprep.mubr.bf16.mxu0 0
        %2175 = vmatmul.mubr.bf16.gmra.mrb[0].mxu0 %v1089
        %v2176 = vpop.f32.mrb[0].mxu0
        %v2177 = vadd.f32 %v1584, %v2176
        %v2178 = vpop.f32.mrb[0].mxu0
        %v2179 = vpop.f32.mrb[0].mxu0
        %v2180 = vadd.f32 %v1587, %v2179
        %v2181 = vpop.f32.mrb[0].mxu0
        %2182 = vmatprep.mubr.bf16.mxu0 0
        %2183 = vmatmul.mubr.bf16.gmra.mrb[0].mxu0 %v1090
        %v2184 = vpop.f32.mrb[0].mxu0
        %v2185 = vadd.f32 %v1592, %v2184
        %v2186 = vpop.f32.mrb[0].mxu0
        %v2187 = vpop.f32.mrb[0].mxu0
        %v2188 = vadd.f32 %v1595, %v2187
        %v2189 = vpop.f32.mrb[0].mxu0
        %2190 = vmatprep.mubr.bf16.mxu0 0
        %2191 = vmatmul.mubr.bf16.gmra.mrb[0].mxu0 %v1091
        %v2192 = vpop.f32.mrb[0].mxu0
        %v2193 = vadd.f32 %v1600, %v2192
        %v2194 = vpop.f32.mrb[0].mxu0
        %v2195 = vpop.f32.mrb[0].mxu0
        %v2196 = vadd.f32 %v1603, %v2195
        %v2197 = vpop.f32.mrb[0].mxu0
        %2198 = vmatprep.mubr.bf16.mxu0 0
        %2199 = vmatmul.mubr.bf16.gmra.mrb[0].mxu0 %v1092
        %v2200 = vpop.f32.mrb[0].mxu0
        %v2201 = vadd.f32 %v1608, %v2200
        %v2202 = vpop.f32.mrb[0].mxu0
        %v2203 = vpop.f32.mrb[0].mxu0
        %v2204 = vadd.f32 %v1611, %v2203
        %v2205 = vpop.f32.mrb[0].mxu0
        %2206 = vmatprep.mubr.bf16.mxu0 0
        %2207 = vmatmul.mubr.bf16.gmra.mrb[0].mxu0 %v1093
        %v2208 = vpop.f32.mrb[0].mxu0
        %v2209 = vadd.f32 %v1616, %v2208
        %v2210 = vpop.f32.mrb[0].mxu0
        %v2211 = vpop.f32.mrb[0].mxu0
        %v2212 = vadd.f32 %v1619, %v2211
        %v2213 = vpop.f32.mrb[0].mxu0
        %2214 = vmatprep.mubr.bf16.mxu0 0
        %2215 = vmatmul.mubr.bf16.gmra.mrb[0].mxu0 %v1094
        %v2216 = vpop.f32.mrb[0].mxu0
        %v2217 = vadd.f32 %v1624, %v2216
        %v2218 = vpop.f32.mrb[0].mxu0
        %v2219 = vpop.f32.mrb[0].mxu0
        %v2220 = vadd.f32 %v1627, %v2219
        %v2221 = vpop.f32.mrb[0].mxu0
        %2222 = vmatprep.mubr.bf16.mxu0 0
        %2223 = vmatmul.mubr.bf16.gmra.mrb[0].mxu0 %v1095
        %v2224 = vpop.f32.mrb[0].mxu0
        %v2225 = vadd.f32 %v1632, %v2224
        %v2226 = vpop.f32.mrb[0].mxu0
        %v2227 = vpop.f32.mrb[0].mxu0
        %v2228 = vadd.f32 %v1635, %v2227
        %v2229 = vpop.f32.mrb[0].mxu0
        %2230 = vmatprep.mubr.bf16.mxu0 0
        %2231 = vmatmul.mubr.bf16.gmra.mrb[0].mxu0 %v1096
        %v2232 = vpop.f32.mrb[0].mxu0
        %v2233 = vadd.f32 %v1640, %v2232
        %v2234 = vpop.f32.mrb[0].mxu0
        %v2235 = vpop.f32.mrb[0].mxu0
        %v2236 = vadd.f32 %v1643, %v2235
        %v2237 = vpop.f32.mrb[0].mxu0
        %2238 = vmatprep.mubr.bf16.mxu0 0
        %2239 = vmatmul.mubr.bf16.gmra.mrb[0].mxu0 %v1097
        %v2240 = vpop.f32.mrb[0].mxu0
        %v2241 = vadd.f32 %v1648, %v2240
        %v2242 = vpop.f32.mrb[0].mxu0
        %v2243 = vpop.f32.mrb[0].mxu0
        %v2244 = vadd.f32 %v1651, %v2243
        %v2245 = vpop.f32.mrb[0].mxu0
        %2246 = vmatprep.mubr.bf16.mxu0 0
        %2247 = vmatmul.mubr.bf16.gmra.mrb[0].mxu0 %v1098
        %v2248 = vpop.f32.mrb[0].mxu0
        %v2249 = vadd.f32 %v1656, %v2248
        %v2250 = vpop.f32.mrb[0].mxu0
        %v2251 = vpop.f32.mrb[0].mxu0
        %v2252 = vadd.f32 %v1659, %v2251
        %v2253 = vpop.f32.mrb[0].mxu0
        %2254 = vmatprep.mubr.bf16.mxu0 0
        %2255 = vmatmul.mubr.bf16.gmra.mrb[0].mxu0 %v1099
        %v2256 = vpop.f32.mrb[0].mxu0
        %v2257 = vadd.f32 %v1664, %v2256
        %v2258 = vpop.f32.mrb[0].mxu0
        %v2259 = vpop.f32.mrb[0].mxu0
        %v2260 = vadd.f32 %v1667, %v2259
        %v2261 = vpop.f32.mrb[0].mxu0
        %2262 = vmatprep.mubr.bf16.mxu0 0
        %2263 = vmatmul.mubr.bf16.gmra.mrb[0].mxu0 %v1100
        %v2264 = vpop.f32.mrb[0].mxu0
        %v2265 = vadd.f32 %v1672, %v2264
        %v2266 = vpop.f32.mrb[0].mxu0
        %v2267 = vpop.f32.mrb[0].mxu0
        %v2268 = vadd.f32 %v1675, %v2267
        %v2269 = vpop.f32.mrb[0].mxu0
        %2270 = vmatprep.mubr.bf16.mxu0 0
        %2271 = vmatmul.mubr.bf16.gmra.mrb[0].mxu0 %v1101
        %v2272 = vpop.f32.mrb[0].mxu0
        %v2273 = vadd.f32 %v1680, %v2272
        %v2274 = vpop.f32.mrb[0].mxu0
        %v2275 = vpop.f32.mrb[0].mxu0
        %v2276 = vadd.f32 %v1683, %v2275
        %v2277 = vpop.f32.mrb[0].mxu0
        %2278 = vmatprep.mubr.bf16.mxu0 0
        %2279 = vmatmul.mubr.bf16.gmra.mrb[0].mxu0 %v1102
        %v2280 = vpop.f32.mrb[0].mxu0
        %v2281 = vadd.f32 %v1688, %v2280
        %v2282 = vpop.f32.mrb[0].mxu0
        %v2283 = vpop.f32.mrb[0].mxu0
        %v2284 = vadd.f32 %v1691, %v2283
        %v2285 = vpop.f32.mrb[0].mxu0
        %2286 = vmatprep.mubr.bf16.mxu0 0
        %2287 = vmatmul.mubr.bf16.gmra.mrb[0].mxu0 %v1103
        %v2288 = vpop.f32.mrb[0].mxu0
        %v2289 = vadd.f32 %v1696, %v2288
        %v2290 = vpop.f32.mrb[0].mxu0
        %v2291 = vpop.f32.mrb[0].mxu0
        %v2292 = vadd.f32 %v1699, %v2291
        %v2293 = vpop.f32.mrb[0].mxu0
        %2294 = vmatprep.mubr.bf16.mxu0 0
        %2295 = vmatmul.mubr.bf16.gmra.mrb[0].mxu0 %v1104
        %v2296 = vpop.f32.mrb[0].mxu0
        %v2297 = vadd.f32 %v1704, %v2296
        %v2298 = vpop.f32.mrb[0].mxu0
        %v2299 = vpop.f32.mrb[0].mxu0
        %v2300 = vadd.f32 %v1707, %v2299
        %v2301 = vpop.f32.mrb[0].mxu0
        %2302 = vmatprep.mubr.bf16.mxu0 0
        %2303 = vmatmul.mubr.bf16.gmra.mrb[0].mxu0 %v1105
        %v2304 = vpop.f32.mrb[0].mxu0
        %v2305 = vadd.f32 %v1712, %v2304
        %v2306 = vpop.f32.mrb[0].mxu0
        %v2307 = vpop.f32.mrb[0].mxu0
        %v2308 = vadd.f32 %v1715, %v2307
        %v2309 = vpop.f32.mrb[0].mxu0
        %2310 = vmatprep.mubr.bf16.mxu0 0
        %2311 = vmatmul.mubr.bf16.gmra.mrb[0].mxu0 %v1106
        %v2312 = vpop.f32.mrb[0].mxu0
        %v2313 = vadd.f32 %v1720, %v2312
        %v2314 = vpop.f32.mrb[0].mxu0
        %v2315 = vpop.f32.mrb[0].mxu0
        %v2316 = vadd.f32 %v1723, %v2315
        %v2317 = vpop.f32.mrb[0].mxu0
        %2318 = vmatprep.mubr.bf16.mxu0 0
        %2319 = vmatmul.mubr.bf16.gmra.mrb[0].mxu0 %v1107
        %v2320 = vpop.f32.mrb[0].mxu0
        %v2321 = vadd.f32 %v1728, %v2320
        %v2322 = vpop.f32.mrb[0].mxu0
        %v2323 = vpop.f32.mrb[0].mxu0
        %v2324 = vadd.f32 %v1731, %v2323
        %v2325 = vpop.f32.mrb[0].mxu0
        %2326 = vdwg.mxu0
        %s2327 = scalar_lea.vmem %s1, 128
        %v2328 = vld [vmem:[%s2327] sm:$0xf]
        %v2329 = vld [vmem:[%s2327 + $0x4] sm:$0xf]
        %v2330 = vld [vmem:[%s2327 + $0x8] sm:$0xf]
        %v2331 = vld [vmem:[%s2327 + $0xc] sm:$0xf]
        %v2332 = vld [vmem:[%s2327 + $0x10] sm:$0xf]
        %v2333 = vld [vmem:[%s2327 + $0x14] sm:$0xf]
        %v2334 = vld [vmem:[%s2327 + $0x18] sm:$0xf]
        %v2335 = vld [vmem:[%s2327 + $0x1c] sm:$0xf]
        %v2336 = vld [vmem:[%s2327 + $0x20] sm:$0xf]
        %v2337 = vld [vmem:[%s2327 + $0x24] sm:$0xf]
        %v2338 = vld [vmem:[%s2327 + $0x28] sm:$0xf]
        %v2339 = vld [vmem:[%s2327 + $0x2c] sm:$0xf]
        %v2340 = vld [vmem:[%s2327 + $0x30] sm:$0xf]
        %v2341 = vld [vmem:[%s2327 + $0x34] sm:$0xf]
        %v2342 = vld [vmem:[%s2327 + $0x38] sm:$0xf]
        %v2343 = vld [vmem:[%s2327 + $0x3c] sm:$0xf]
        %v2360 = vunpack.c.l.b16 %v2328
        %v2361 = vunpack.c.l.b16 %v2329
        %v2362 = vunpack.c.l.b16 %v2330
        %v2363 = vunpack.c.l.b16 %v2331
        %v2364 = vunpack.c.l.b16 %v2332
        %v2365 = vunpack.c.l.b16 %v2333
        %v2366 = vunpack.c.l.b16 %v2334
        %v2367 = vunpack.c.l.b16 %v2335
        %v2368 = vunpack.c.l.b16 %v2336
        %v2369 = vunpack.c.l.b16 %v2337
        %v2370 = vunpack.c.l.b16 %v2338
        %v2371 = vunpack.c.l.b16 %v2339
        %v2372 = vunpack.c.l.b16 %v2340
        %v2373 = vunpack.c.l.b16 %v2341
        %v2374 = vunpack.c.l.b16 %v2342
        %v2375 = vunpack.c.l.b16 %v2343
        %v2376 = vpack.c.b16 %v2361, %v2360
        %v2377 = vpack.c.b16 %v2363, %v2362
        %v2378 = vpack.c.b16 %v2365, %v2364
        %v2379 = vpack.c.b16 %v2367, %v2366
        %v2380 = vpack.c.b16 %v2369, %v2368
        %v2381 = vpack.c.b16 %v2371, %v2370
        %v2382 = vpack.c.b16 %v2373, %v2372
        %v2383 = vpack.c.b16 %v2375, %v2374
        %2392 = vmatprep.subr.bf16.mxu0 0
        %2393 = vmatpush1.bf16.msra.mxu0 %v2376
        %2394 = vmatprep.subr.bf16.mxu0 0
        %2395 = vmatpush1.bf16.msra.mxu0 %v2377
        %2396 = vmatprep.subr.bf16.mxu0 0
        %2397 = vmatpush1.bf16.msra.mxu0 %v2378
        %2398 = vmatprep.subr.bf16.mxu0 0
        %2399 = vmatpush1.bf16.msra.mxu0 %v2379
        %2400 = vmatprep.subr.bf16.mxu0 0
        %2401 = vmatpush1.bf16.msra.mxu0 %v2380
        %2402 = vmatprep.subr.bf16.mxu0 0
        %2403 = vmatpush1.bf16.msra.mxu0 %v2381
        %2404 = vmatprep.subr.bf16.mxu0 0
        %2405 = vmatpush1.bf16.msra.mxu0 %v2382
        %2406 = vmatprep.subr.bf16.mxu0 0
        %2407 = vmatpush1.bf16.msra.mxu0 %v2383
        %2408 = vmatprep.subr.bf16.mxu0 0
        %2409 = vmatpush1.bf16.msra.mxu0 0
        %2410 = vmatprep.subr.bf16.mxu0 0
        %2411 = vmatpush1.bf16.msra.mxu0 0
        %2412 = vmatprep.subr.bf16.mxu0 0
        %2413 = vmatpush1.bf16.msra.mxu0 0
        %2414 = vmatprep.subr.bf16.mxu0 0
        %2415 = vmatpush1.bf16.msra.mxu0 0
        %2416 = vmatprep.subr.bf16.mxu0 0
        %2417 = vmatpush1.bf16.msra.mxu0 0
        %2418 = vmatprep.subr.bf16.mxu0 0
        %2419 = vmatpush1.bf16.msra.mxu0 0
        %2420 = vmatprep.subr.bf16.mxu0 0
        %2421 = vmatpush1.bf16.msra.mxu0 0
        %2422 = vmatprep.subr.bf16.mxu0 0
        %2423 = vmatpush1.bf16.msra.mxu0 0
        %2424 = vmatprep.mubr.bf16.mxu0 0
        %2425 = vmatmul.mubr.bf16.gmra.mrb[0].mxu0 %v1044
        %v2426 = vpop.f32.mrb[0].mxu0
        %v2427 = vadd.f32 0.0, %v2426
        %v2428 = vpop.f32.mrb[0].mxu0
        %v2429 = vpop.f32.mrb[0].mxu0
        %v2430 = vadd.f32 0.0, %v2429
        %v2431 = vpop.f32.mrb[0].mxu0
        %2432 = vmatprep.mubr.bf16.mxu0 0
        %2433 = vmatmul.mubr.bf16.gmra.mrb[0].mxu0 %v1045
        %v2434 = vpop.f32.mrb[0].mxu0
        %v2435 = vadd.f32 0.0, %v2434
        %v2436 = vpop.f32.mrb[0].mxu0
        %v2437 = vpop.f32.mrb[0].mxu0
        %v2438 = vadd.f32 0.0, %v2437
        %v2439 = vpop.f32.mrb[0].mxu0
        %2440 = vmatprep.mubr.bf16.mxu0 0
        %2441 = vmatmul.mubr.bf16.gmra.mrb[0].mxu0 %v1046
        %v2442 = vpop.f32.mrb[0].mxu0
        %v2443 = vadd.f32 0.0, %v2442
        %v2444 = vpop.f32.mrb[0].mxu0
        %v2445 = vpop.f32.mrb[0].mxu0
        %v2446 = vadd.f32 0.0, %v2445
        %v2447 = vpop.f32.mrb[0].mxu0
        %2448 = vmatprep.mubr.bf16.mxu0 0
        %2449 = vmatmul.mubr.bf16.gmra.mrb[0].mxu0 %v1047
        %v2450 = vpop.f32.mrb[0].mxu0
        %v2451 = vadd.f32 0.0, %v2450
        %v2452 = vpop.f32.mrb[0].mxu0
        %v2453 = vpop.f32.mrb[0].mxu0
        %v2454 = vadd.f32 0.0, %v2453
        %v2455 = vpop.f32.mrb[0].mxu0
        %2456 = vmatprep.mubr.bf16.mxu0 0
        %2457 = vmatmul.mubr.bf16.gmra.mrb[0].mxu0 %v1048
        %v2458 = vpop.f32.mrb[0].mxu0
        %v2459 = vadd.f32 0.0, %v2458
        %v2460 = vpop.f32.mrb[0].mxu0
        %v2461 = vpop.f32.mrb[0].mxu0
        %v2462 = vadd.f32 0.0, %v2461
        %v2463 = vpop.f32.mrb[0].mxu0
        %2464 = vmatprep.mubr.bf16.mxu0 0
        %2465 = vmatmul.mubr.bf16.gmra.mrb[0].mxu0 %v1049
        %v2466 = vpop.f32.mrb[0].mxu0
        %v2467 = vadd.f32 0.0, %v2466
        %v2468 = vpop.f32.mrb[0].mxu0
        %v2469 = vpop.f32.mrb[0].mxu0
        %v2470 = vadd.f32 0.0, %v2469
        %v2471 = vpop.f32.mrb[0].mxu0
        %2472 = vmatprep.mubr.bf16.mxu0 0
        %2473 = vmatmul.mubr.bf16.gmra.mrb[0].mxu0 %v1050
        %v2474 = vpop.f32.mrb[0].mxu0
        %v2475 = vadd.f32 0.0, %v2474
        %v2476 = vpop.f32.mrb[0].mxu0
        %v2477 = vpop.f32.mrb[0].mxu0
        %v2478 = vadd.f32 0.0, %v2477
        %v2479 = vpop.f32.mrb[0].mxu0
        %2480 = vmatprep.mubr.bf16.mxu0 0
        %2481 = vmatmul.mubr.bf16.gmra.mrb[0].mxu0 %v1051
        %v2482 = vpop.f32.mrb[0].mxu0
        %v2483 = vadd.f32 0.0, %v2482
        %v2484 = vpop.f32.mrb[0].mxu0
        %v2485 = vpop.f32.mrb[0].mxu0
        %v2486 = vadd.f32 0.0, %v2485
        %v2487 = vpop.f32.mrb[0].mxu0
        %2488 = vmatprep.mubr.bf16.mxu0 0
        %2489 = vmatmul.mubr.bf16.gmra.mrb[0].mxu0 %v1052
        %v2490 = vpop.f32.mrb[0].mxu0
        %v2491 = vadd.f32 0.0, %v2490
        %v2492 = vpop.f32.mrb[0].mxu0
        %v2493 = vpop.f32.mrb[0].mxu0
        %v2494 = vadd.f32 0.0, %v2493
        %v2495 = vpop.f32.mrb[0].mxu0
        %2496 = vmatprep.mubr.bf16.mxu0 0
        %2497 = vmatmul.mubr.bf16.gmra.mrb[0].mxu0 %v1053
        %v2498 = vpop.f32.mrb[0].mxu0
        %v2499 = vadd.f32 0.0, %v2498
        %v2500 = vpop.f32.mrb[0].mxu0
        %v2501 = vpop.f32.mrb[0].mxu0
        %v2502 = vadd.f32 0.0, %v2501
        %v2503 = vpop.f32.mrb[0].mxu0
        %2504 = vmatprep.mubr.bf16.mxu0 0
        %2505 = vmatmul.mubr.bf16.gmra.mrb[0].mxu0 %v1054
        %v2506 = vpop.f32.mrb[0].mxu0
        %v2507 = vadd.f32 0.0, %v2506
        %v2508 = vpop.f32.mrb[0].mxu0
        %v2509 = vpop.f32.mrb[0].mxu0
        %v2510 = vadd.f32 0.0, %v2509
        %v2511 = vpop.f32.mrb[0].mxu0
        %2512 = vmatprep.mubr.bf16.mxu0 0
        %2513 = vmatmul.mubr.bf16.gmra.mrb[0].mxu0 %v1055
        %v2514 = vpop.f32.mrb[0].mxu0
        %v2515 = vadd.f32 0.0, %v2514
        %v2516 = vpop.f32.mrb[0].mxu0
        %v2517 = vpop.f32.mrb[0].mxu0
        %v2518 = vadd.f32 0.0, %v2517
        %v2519 = vpop.f32.mrb[0].mxu0
        %2520 = vmatprep.mubr.bf16.mxu0 0
        %2521 = vmatmul.mubr.bf16.gmra.mrb[0].mxu0 %v1056
        %v2522 = vpop.f32.mrb[0].mxu0
        %v2523 = vadd.f32 0.0, %v2522
        %v2524 = vpop.f32.mrb[0].mxu0
        %v2525 = vpop.f32.mrb[0].mxu0
        %v2526 = vadd.f32 0.0, %v2525
        %v2527 = vpop.f32.mrb[0].mxu0
        %2528 = vmatprep.mubr.bf16.mxu0 0
        %2529 = vmatmul.mubr.bf16.gmra.mrb[0].mxu0 %v1057
        %v2530 = vpop.f32.mrb[0].mxu0
        %v2531 = vadd.f32 0.0, %v2530
        %v2532 = vpop.f32.mrb[0].mxu0
        %v2533 = vpop.f32.mrb[0].mxu0
        %v2534 = vadd.f32 0.0, %v2533
        %v2535 = vpop.f32.mrb[0].mxu0
        %2536 = vmatprep.mubr.bf16.mxu0 0
        %2537 = vmatmul.mubr.bf16.gmra.mrb[0].mxu0 %v1058
        %v2538 = vpop.f32.mrb[0].mxu0
        %v2539 = vadd.f32 0.0, %v2538
        %v2540 = vpop.f32.mrb[0].mxu0
        %v2541 = vpop.f32.mrb[0].mxu0
        %v2542 = vadd.f32 0.0, %v2541
        %v2543 = vpop.f32.mrb[0].mxu0
        %2544 = vmatprep.mubr.bf16.mxu0 0
        %2545 = vmatmul.mubr.bf16.gmra.mrb[0].mxu0 %v1059
        %v2546 = vpop.f32.mrb[0].mxu0
        %v2547 = vadd.f32 0.0, %v2546
        %v2548 = vpop.f32.mrb[0].mxu0
        %v2549 = vpop.f32.mrb[0].mxu0
        %v2550 = vadd.f32 0.0, %v2549
        %v2551 = vpop.f32.mrb[0].mxu0
        %2552 = vmatprep.mubr.bf16.mxu0 0
        %2553 = vmatmul.mubr.bf16.gmra.mrb[0].mxu0 %v1060
        %v2554 = vpop.f32.mrb[0].mxu0
        %v2555 = vadd.f32 0.0, %v2554
        %v2556 = vpop.f32.mrb[0].mxu0
        %v2557 = vpop.f32.mrb[0].mxu0
        %v2558 = vadd.f32 0.0, %v2557
        %v2559 = vpop.f32.mrb[0].mxu0
        %2560 = vmatprep.mubr.bf16.mxu0 0
        %2561 = vmatmul.mubr.bf16.gmra.mrb[0].mxu0 %v1061
        %v2562 = vpop.f32.mrb[0].mxu0
        %v2563 = vadd.f32 0.0, %v2562
        %v2564 = vpop.f32.mrb[0].mxu0
        %v2565 = vpop.f32.mrb[0].mxu0
        %v2566 = vadd.f32 0.0, %v2565
        %v2567 = vpop.f32.mrb[0].mxu0
        %2568 = vmatprep.mubr.bf16.mxu0 0
        %2569 = vmatmul.mubr.bf16.gmra.mrb[0].mxu0 %v1062
        %v2570 = vpop.f32.mrb[0].mxu0
        %v2571 = vadd.f32 0.0, %v2570
        %v2572 = vpop.f32.mrb[0].mxu0
        %v2573 = vpop.f32.mrb[0].mxu0
        %v2574 = vadd.f32 0.0, %v2573
        %v2575 = vpop.f32.mrb[0].mxu0
        %2576 = vmatprep.mubr.bf16.mxu0 0
        %2577 = vmatmul.mubr.bf16.gmra.mrb[0].mxu0 %v1063
        %v2578 = vpop.f32.mrb[0].mxu0
        %v2579 = vadd.f32 0.0, %v2578
        %v2580 = vpop.f32.mrb[0].mxu0
        %v2581 = vpop.f32.mrb[0].mxu0
        %v2582 = vadd.f32 0.0, %v2581
        %v2583 = vpop.f32.mrb[0].mxu0
        %2584 = vmatprep.mubr.bf16.mxu0 0
        %2585 = vmatmul.mubr.bf16.gmra.mrb[0].mxu0 %v1064
        %v2586 = vpop.f32.mrb[0].mxu0
        %v2587 = vadd.f32 0.0, %v2586
        %v2588 = vpop.f32.mrb[0].mxu0
        %v2589 = vpop.f32.mrb[0].mxu0
        %v2590 = vadd.f32 0.0, %v2589
        %v2591 = vpop.f32.mrb[0].mxu0
        %2592 = vmatprep.mubr.bf16.mxu0 0
        %2593 = vmatmul.mubr.bf16.gmra.mrb[0].mxu0 %v1065
        %v2594 = vpop.f32.mrb[0].mxu0
        %v2595 = vadd.f32 0.0, %v2594
        %v2596 = vpop.f32.mrb[0].mxu0
        %v2597 = vpop.f32.mrb[0].mxu0
        %v2598 = vadd.f32 0.0, %v2597
        %v2599 = vpop.f32.mrb[0].mxu0
        %2600 = vmatprep.mubr.bf16.mxu0 0
        %2601 = vmatmul.mubr.bf16.gmra.mrb[0].mxu0 %v1066
        %v2602 = vpop.f32.mrb[0].mxu0
        %v2603 = vadd.f32 0.0, %v2602
        %v2604 = vpop.f32.mrb[0].mxu0
        %v2605 = vpop.f32.mrb[0].mxu0
        %v2606 = vadd.f32 0.0, %v2605
        %v2607 = vpop.f32.mrb[0].mxu0
        %2608 = vmatprep.mubr.bf16.mxu0 0
        %2609 = vmatmul.mubr.bf16.gmra.mrb[0].mxu0 %v1067
        %v2610 = vpop.f32.mrb[0].mxu0
        %v2611 = vadd.f32 0.0, %v2610
        %v2612 = vpop.f32.mrb[0].mxu0
        %v2613 = vpop.f32.mrb[0].mxu0
        %v2614 = vadd.f32 0.0, %v2613
        %v2615 = vpop.f32.mrb[0].mxu0
        %2616 = vmatprep.mubr.bf16.mxu0 0
        %2617 = vmatmul.mubr.bf16.gmra.mrb[0].mxu0 %v1068
        %v2618 = vpop.f32.mrb[0].mxu0
        %v2619 = vadd.f32 0.0, %v2618
        %v2620 = vpop.f32.mrb[0].mxu0
        %v2621 = vpop.f32.mrb[0].mxu0
        %v2622 = vadd.f32 0.0, %v2621
        %v2623 = vpop.f32.mrb[0].mxu0
        %2624 = vmatprep.mubr.bf16.mxu0 0
        %2625 = vmatmul.mubr.bf16.gmra.mrb[0].mxu0 %v1069
        %v2626 = vpop.f32.mrb[0].mxu0
        %v2627 = vadd.f32 0.0, %v2626
        %v2628 = vpop.f32.mrb[0].mxu0
        %v2629 = vpop.f32.mrb[0].mxu0
        %v2630 = vadd.f32 0.0, %v2629
        %v2631 = vpop.f32.mrb[0].mxu0
        %2632 = vmatprep.mubr.bf16.mxu0 0
        %2633 = vmatmul.mubr.bf16.gmra.mrb[0].mxu0 %v1070
        %v2634 = vpop.f32.mrb[0].mxu0
        %v2635 = vadd.f32 0.0, %v2634
        %v2636 = vpop.f32.mrb[0].mxu0
        %v2637 = vpop.f32.mrb[0].mxu0
        %v2638 = vadd.f32 0.0, %v2637
        %v2639 = vpop.f32.mrb[0].mxu0
        %2640 = vmatprep.mubr.bf16.mxu0 0
        %2641 = vmatmul.mubr.bf16.gmra.mrb[0].mxu0 %v1071
        %v2642 = vpop.f32.mrb[0].mxu0
        %v2643 = vadd.f32 0.0, %v2642
        %v2644 = vpop.f32.mrb[0].mxu0
        %v2645 = vpop.f32.mrb[0].mxu0
        %v2646 = vadd.f32 0.0, %v2645
        %v2647 = vpop.f32.mrb[0].mxu0
        %2648 = vmatprep.mubr.bf16.mxu0 0
        %2649 = vmatmul.mubr.bf16.gmra.mrb[0].mxu0 %v1072
        %v2650 = vpop.f32.mrb[0].mxu0
        %v2651 = vadd.f32 0.0, %v2650
        %v2652 = vpop.f32.mrb[0].mxu0
        %v2653 = vpop.f32.mrb[0].mxu0
        %v2654 = vadd.f32 0.0, %v2653
        %v2655 = vpop.f32.mrb[0].mxu0
        %2656 = vmatprep.mubr.bf16.mxu0 0
        %2657 = vmatmul.mubr.bf16.gmra.mrb[0].mxu0 %v1073
        %v2658 = vpop.f32.mrb[0].mxu0
        %v2659 = vadd.f32 0.0, %v2658
        %v2660 = vpop.f32.mrb[0].mxu0
        %v2661 = vpop.f32.mrb[0].mxu0
        %v2662 = vadd.f32 0.0, %v2661
        %v2663 = vpop.f32.mrb[0].mxu0
        %2664 = vmatprep.mubr.bf16.mxu0 0
        %2665 = vmatmul.mubr.bf16.gmra.mrb[0].mxu0 %v1074
        %v2666 = vpop.f32.mrb[0].mxu0
        %v2667 = vadd.f32 0.0, %v2666
        %v2668 = vpop.f32.mrb[0].mxu0
        %v2669 = vpop.f32.mrb[0].mxu0
        %v2670 = vadd.f32 0.0, %v2669
        %v2671 = vpop.f32.mrb[0].mxu0
        %2672 = vmatprep.mubr.bf16.mxu0 0
        %2673 = vmatmul.mubr.bf16.gmra.mrb[0].mxu0 %v1075
        %v2674 = vpop.f32.mrb[0].mxu0
        %v2675 = vadd.f32 0.0, %v2674
        %v2676 = vpop.f32.mrb[0].mxu0
        %v2677 = vpop.f32.mrb[0].mxu0
        %v2678 = vadd.f32 0.0, %v2677
        %v2679 = vpop.f32.mrb[0].mxu0
        %2680 = vmatprep.mubr.bf16.mxu0 0
        %2681 = vmatmul.mubr.bf16.gmra.mrb[0].mxu0 %v1076
        %v2682 = vpop.f32.mrb[0].mxu0
        %v2683 = vadd.f32 0.0, %v2682
        %v2684 = vpop.f32.mrb[0].mxu0
        %v2685 = vpop.f32.mrb[0].mxu0
        %v2686 = vadd.f32 0.0, %v2685
        %v2687 = vpop.f32.mrb[0].mxu0
        %2688 = vmatprep.mubr.bf16.mxu0 0
        %2689 = vmatmul.mubr.bf16.gmra.mrb[0].mxu0 %v1077
        %v2690 = vpop.f32.mrb[0].mxu0
        %v2691 = vadd.f32 0.0, %v2690
        %v2692 = vpop.f32.mrb[0].mxu0
        %v2693 = vpop.f32.mrb[0].mxu0
        %v2694 = vadd.f32 0.0, %v2693
        %v2695 = vpop.f32.mrb[0].mxu0
        %2696 = vmatprep.mubr.bf16.mxu0 0
        %2697 = vmatmul.mubr.bf16.gmra.mrb[0].mxu0 %v1078
        %v2698 = vpop.f32.mrb[0].mxu0
        %v2699 = vadd.f32 0.0, %v2698
        %v2700 = vpop.f32.mrb[0].mxu0
        %v2701 = vpop.f32.mrb[0].mxu0
        %v2702 = vadd.f32 0.0, %v2701
        %v2703 = vpop.f32.mrb[0].mxu0
        %2704 = vmatprep.mubr.bf16.mxu0 0
        %2705 = vmatmul.mubr.bf16.gmra.mrb[0].mxu0 %v1079
        %v2706 = vpop.f32.mrb[0].mxu0
        %v2707 = vadd.f32 0.0, %v2706
        %v2708 = vpop.f32.mrb[0].mxu0
        %v2709 = vpop.f32.mrb[0].mxu0
        %v2710 = vadd.f32 0.0, %v2709
        %v2711 = vpop.f32.mrb[0].mxu0
        %2712 = vmatprep.mubr.bf16.mxu0 0
        %2713 = vmatmul.mubr.bf16.gmra.mrb[0].mxu0 %v1080
        %v2714 = vpop.f32.mrb[0].mxu0
        %v2715 = vadd.f32 0.0, %v2714
        %v2716 = vpop.f32.mrb[0].mxu0
        %v2717 = vpop.f32.mrb[0].mxu0
        %v2718 = vadd.f32 0.0, %v2717
        %v2719 = vpop.f32.mrb[0].mxu0
        %2720 = vmatprep.mubr.bf16.mxu0 0
        %2721 = vmatmul.mubr.bf16.gmra.mrb[0].mxu0 %v1081
        %v2722 = vpop.f32.mrb[0].mxu0
        %v2723 = vadd.f32 0.0, %v2722
        %v2724 = vpop.f32.mrb[0].mxu0
        %v2725 = vpop.f32.mrb[0].mxu0
        %v2726 = vadd.f32 0.0, %v2725
        %v2727 = vpop.f32.mrb[0].mxu0
        %2728 = vmatprep.mubr.bf16.mxu0 0
        %2729 = vmatmul.mubr.bf16.gmra.mrb[0].mxu0 %v1082
        %v2730 = vpop.f32.mrb[0].mxu0
        %v2731 = vadd.f32 0.0, %v2730
        %v2732 = vpop.f32.mrb[0].mxu0
        %v2733 = vpop.f32.mrb[0].mxu0
        %v2734 = vadd.f32 0.0, %v2733
        %v2735 = vpop.f32.mrb[0].mxu0
        %2736 = vmatprep.mubr.bf16.mxu0 0
        %2737 = vmatmul.mubr.bf16.gmra.mrb[0].mxu0 %v1083
        %v2738 = vpop.f32.mrb[0].mxu0
        %v2739 = vadd.f32 0.0, %v2738
        %v2740 = vpop.f32.mrb[0].mxu0
        %v2741 = vpop.f32.mrb[0].mxu0
        %v2742 = vadd.f32 0.0, %v2741
        %v2743 = vpop.f32.mrb[0].mxu0
        %2744 = vmatprep.mubr.bf16.mxu0 0
        %2745 = vmatmul.mubr.bf16.gmra.mrb[0].mxu0 %v1084
        %v2746 = vpop.f32.mrb[0].mxu0
        %v2747 = vadd.f32 0.0, %v2746
        %v2748 = vpop.f32.mrb[0].mxu0
        %v2749 = vpop.f32.mrb[0].mxu0
        %v2750 = vadd.f32 0.0, %v2749
        %v2751 = vpop.f32.mrb[0].mxu0
        %2752 = vmatprep.mubr.bf16.mxu0 0
        %2753 = vmatmul.mubr.bf16.gmra.mrb[0].mxu0 %v1085
        %v2754 = vpop.f32.mrb[0].mxu0
        %v2755 = vadd.f32 0.0, %v2754
        %v2756 = vpop.f32.mrb[0].mxu0
        %v2757 = vpop.f32.mrb[0].mxu0
        %v2758 = vadd.f32 0.0, %v2757
        %v2759 = vpop.f32.mrb[0].mxu0
        %2760 = vmatprep.mubr.bf16.mxu0 0
        %2761 = vmatmul.mubr.bf16.gmra.mrb[0].mxu0 %v1086
        %v2762 = vpop.f32.mrb[0].mxu0
        %v2763 = vadd.f32 0.0, %v2762
        %v2764 = vpop.f32.mrb[0].mxu0
        %v2765 = vpop.f32.mrb[0].mxu0
        %v2766 = vadd.f32 0.0, %v2765
        %v2767 = vpop.f32.mrb[0].mxu0
        %2768 = vmatprep.mubr.bf16.mxu0 0
        %2769 = vmatmul.mubr.bf16.gmra.mrb[0].mxu0 %v1087
        %v2770 = vpop.f32.mrb[0].mxu0
        %v2771 = vadd.f32 0.0, %v2770
        %v2772 = vpop.f32.mrb[0].mxu0
        %v2773 = vpop.f32.mrb[0].mxu0
        %v2774 = vadd.f32 0.0, %v2773
        %v2775 = vpop.f32.mrb[0].mxu0
        %2776 = vmatprep.mubr.bf16.mxu0 0
        %2777 = vmatmul.mubr.bf16.gmra.mrb[0].mxu0 %v1088
        %v2778 = vpop.f32.mrb[0].mxu0
        %v2779 = vadd.f32 0.0, %v2778
        %v2780 = vpop.f32.mrb[0].mxu0
        %v2781 = vpop.f32.mrb[0].mxu0
        %v2782 = vadd.f32 0.0, %v2781
        %v2783 = vpop.f32.mrb[0].mxu0
        %2784 = vmatprep.mubr.bf16.mxu0 0
        %2785 = vmatmul.mubr.bf16.gmra.mrb[0].mxu0 %v1089
        %v2786 = vpop.f32.mrb[0].mxu0
        %v2787 = vadd.f32 0.0, %v2786
        %v2788 = vpop.f32.mrb[0].mxu0
        %v2789 = vpop.f32.mrb[0].mxu0
        %v2790 = vadd.f32 0.0, %v2789
        %v2791 = vpop.f32.mrb[0].mxu0
        %2792 = vmatprep.mubr.bf16.mxu0 0
        %2793 = vmatmul.mubr.bf16.gmra.mrb[0].mxu0 %v1090
        %v2794 = vpop.f32.mrb[0].mxu0
        %v2795 = vadd.f32 0.0, %v2794
        %v2796 = vpop.f32.mrb[0].mxu0
        %v2797 = vpop.f32.mrb[0].mxu0
        %v2798 = vadd.f32 0.0, %v2797
        %v2799 = vpop.f32.mrb[0].mxu0
        %2800 = vmatprep.mubr.bf16.mxu0 0
        %2801 = vmatmul.mubr.bf16.gmra.mrb[0].mxu0 %v1091
        %v2802 = vpop.f32.mrb[0].mxu0
        %v2803 = vadd.f32 0.0, %v2802
        %v2804 = vpop.f32.mrb[0].mxu0
        %v2805 = vpop.f32.mrb[0].mxu0
        %v2806 = vadd.f32 0.0, %v2805
        %v2807 = vpop.f32.mrb[0].mxu0
        %2808 = vmatprep.mubr.bf16.mxu0 0
        %2809 = vmatmul.mubr.bf16.gmra.mrb[0].mxu0 %v1092
        %v2810 = vpop.f32.mrb[0].mxu0
        %v2811 = vadd.f32 0.0, %v2810
        %v2812 = vpop.f32.mrb[0].mxu0
        %v2813 = vpop.f32.mrb[0].mxu0
        %v2814 = vadd.f32 0.0, %v2813
        %v2815 = vpop.f32.mrb[0].mxu0
        %2816 = vmatprep.mubr.bf16.mxu0 0
        %2817 = vmatmul.mubr.bf16.gmra.mrb[0].mxu0 %v1093
        %v2818 = vpop.f32.mrb[0].mxu0
        %v2819 = vadd.f32 0.0, %v2818
        %v2820 = vpop.f32.mrb[0].mxu0
        %v2821 = vpop.f32.mrb[0].mxu0
        %v2822 = vadd.f32 0.0, %v2821
        %v2823 = vpop.f32.mrb[0].mxu0
        %2824 = vmatprep.mubr.bf16.mxu0 0
        %2825 = vmatmul.mubr.bf16.gmra.mrb[0].mxu0 %v1094
        %v2826 = vpop.f32.mrb[0].mxu0
        %v2827 = vadd.f32 0.0, %v2826
        %v2828 = vpop.f32.mrb[0].mxu0
        %v2829 = vpop.f32.mrb[0].mxu0
        %v2830 = vadd.f32 0.0, %v2829
        %v2831 = vpop.f32.mrb[0].mxu0
        %2832 = vmatprep.mubr.bf16.mxu0 0
        %2833 = vmatmul.mubr.bf16.gmra.mrb[0].mxu0 %v1095
        %v2834 = vpop.f32.mrb[0].mxu0
        %v2835 = vadd.f32 0.0, %v2834
        %v2836 = vpop.f32.mrb[0].mxu0
        %v2837 = vpop.f32.mrb[0].mxu0
        %v2838 = vadd.f32 0.0, %v2837
        %v2839 = vpop.f32.mrb[0].mxu0
        %2840 = vmatprep.mubr.bf16.mxu0 0
        %2841 = vmatmul.mubr.bf16.gmra.mrb[0].mxu0 %v1096
        %v2842 = vpop.f32.mrb[0].mxu0
        %v2843 = vadd.f32 0.0, %v2842
        %v2844 = vpop.f32.mrb[0].mxu0
        %v2845 = vpop.f32.mrb[0].mxu0
        %v2846 = vadd.f32 0.0, %v2845
        %v2847 = vpop.f32.mrb[0].mxu0
        %2848 = vmatprep.mubr.bf16.mxu0 0
        %2849 = vmatmul.mubr.bf16.gmra.mrb[0].mxu0 %v1097
        %v2850 = vpop.f32.mrb[0].mxu0
        %v2851 = vadd.f32 0.0, %v2850
        %v2852 = vpop.f32.mrb[0].mxu0
        %v2853 = vpop.f32.mrb[0].mxu0
        %v2854 = vadd.f32 0.0, %v2853
        %v2855 = vpop.f32.mrb[0].mxu0
        %2856 = vmatprep.mubr.bf16.mxu0 0
        %2857 = vmatmul.mubr.bf16.gmra.mrb[0].mxu0 %v1098
        %v2858 = vpop.f32.mrb[0].mxu0
        %v2859 = vadd.f32 0.0, %v2858
        %v2860 = vpop.f32.mrb[0].mxu0
        %v2861 = vpop.f32.mrb[0].mxu0
        %v2862 = vadd.f32 0.0, %v2861
        %v2863 = vpop.f32.mrb[0].mxu0
        %2864 = vmatprep.mubr.bf16.mxu0 0
        %2865 = vmatmul.mubr.bf16.gmra.mrb[0].mxu0 %v1099
        %v2866 = vpop.f32.mrb[0].mxu0
        %v2867 = vadd.f32 0.0, %v2866
        %v2868 = vpop.f32.mrb[0].mxu0
        %v2869 = vpop.f32.mrb[0].mxu0
        %v2870 = vadd.f32 0.0, %v2869
        %v2871 = vpop.f32.mrb[0].mxu0
        %2872 = vmatprep.mubr.bf16.mxu0 0
        %2873 = vmatmul.mubr.bf16.gmra.mrb[0].mxu0 %v1100
        %v2874 = vpop.f32.mrb[0].mxu0
        %v2875 = vadd.f32 0.0, %v2874
        %v2876 = vpop.f32.mrb[0].mxu0
        %v2877 = vpop.f32.mrb[0].mxu0
        %v2878 = vadd.f32 0.0, %v2877
        %v2879 = vpop.f32.mrb[0].mxu0
        %2880 = vmatprep.mubr.bf16.mxu0 0
        %2881 = vmatmul.mubr.bf16.gmra.mrb[0].mxu0 %v1101
        %v2882 = vpop.f32.mrb[0].mxu0
        %v2883 = vadd.f32 0.0, %v2882
        %v2884 = vpop.f32.mrb[0].mxu0
        %v2885 = vpop.f32.mrb[0].mxu0
        %v2886 = vadd.f32 0.0, %v2885
        %v2887 = vpop.f32.mrb[0].mxu0
        %2888 = vmatprep.mubr.bf16.mxu0 0
        %2889 = vmatmul.mubr.bf16.gmra.mrb[0].mxu0 %v1102
        %v2890 = vpop.f32.mrb[0].mxu0
        %v2891 = vadd.f32 0.0, %v2890
        %v2892 = vpop.f32.mrb[0].mxu0
        %v2893 = vpop.f32.mrb[0].mxu0
        %v2894 = vadd.f32 0.0, %v2893
        %v2895 = vpop.f32.mrb[0].mxu0
        %2896 = vmatprep.mubr.bf16.mxu0 0
        %2897 = vmatmul.mubr.bf16.gmra.mrb[0].mxu0 %v1103
        %v2898 = vpop.f32.mrb[0].mxu0
        %v2899 = vadd.f32 0.0, %v2898
        %v2900 = vpop.f32.mrb[0].mxu0
        %v2901 = vpop.f32.mrb[0].mxu0
        %v2902 = vadd.f32 0.0, %v2901
        %v2903 = vpop.f32.mrb[0].mxu0
        %2904 = vmatprep.mubr.bf16.mxu0 0
        %2905 = vmatmul.mubr.bf16.gmra.mrb[0].mxu0 %v1104
        %v2906 = vpop.f32.mrb[0].mxu0
        %v2907 = vadd.f32 0.0, %v2906
        %v2908 = vpop.f32.mrb[0].mxu0
        %v2909 = vpop.f32.mrb[0].mxu0
        %v2910 = vadd.f32 0.0, %v2909
        %v2911 = vpop.f32.mrb[0].mxu0
        %2912 = vmatprep.mubr.bf16.mxu0 0
        %2913 = vmatmul.mubr.bf16.gmra.mrb[0].mxu0 %v1105
        %v2914 = vpop.f32.mrb[0].mxu0
        %v2915 = vadd.f32 0.0, %v2914
        %v2916 = vpop.f32.mrb[0].mxu0
        %v2917 = vpop.f32.mrb[0].mxu0
        %v2918 = vadd.f32 0.0, %v2917
        %v2919 = vpop.f32.mrb[0].mxu0
        %2920 = vmatprep.mubr.bf16.mxu0 0
        %2921 = vmatmul.mubr.bf16.gmra.mrb[0].mxu0 %v1106
        %v2922 = vpop.f32.mrb[0].mxu0
        %v2923 = vadd.f32 0.0, %v2922
        %v2924 = vpop.f32.mrb[0].mxu0
        %v2925 = vpop.f32.mrb[0].mxu0
        %v2926 = vadd.f32 0.0, %v2925
        %v2927 = vpop.f32.mrb[0].mxu0
        %2928 = vmatprep.mubr.bf16.mxu0 0
        %2929 = vmatmul.mubr.bf16.gmra.mrb[0].mxu0 %v1107
        %v2930 = vpop.f32.mrb[0].mxu0
        %v2931 = vadd.f32 0.0, %v2930
        %v2932 = vpop.f32.mrb[0].mxu0
        %v2933 = vpop.f32.mrb[0].mxu0
        %v2934 = vadd.f32 0.0, %v2933
        %v2935 = vpop.f32.mrb[0].mxu0
        %2936 = vdwg.mxu0
        %v2937 = vadd.f32 %v1817, %v2427
        %v2938 = vadd.f32 %v1820, %v2430
        %v2939 = vadd.f32 %v1825, %v2435
        %v2940 = vadd.f32 %v1828, %v2438
        %v2941 = vadd.f32 %v1833, %v2443
        %v2942 = vadd.f32 %v1836, %v2446
        %v2943 = vadd.f32 %v1841, %v2451
        %v2944 = vadd.f32 %v1844, %v2454
        %v2945 = vadd.f32 %v1849, %v2459
        %v2946 = vadd.f32 %v1852, %v2462
        %v2947 = vadd.f32 %v1857, %v2467
        %v2948 = vadd.f32 %v1860, %v2470
        %v2949 = vadd.f32 %v1865, %v2475
        %v2950 = vadd.f32 %v1868, %v2478
        %v2951 = vadd.f32 %v1873, %v2483
        %v2952 = vadd.f32 %v1876, %v2486
        %v2953 = vadd.f32 %v1881, %v2491
        %v2954 = vadd.f32 %v1884, %v2494
        %v2955 = vadd.f32 %v1889, %v2499
        %v2956 = vadd.f32 %v1892, %v2502
        %v2957 = vadd.f32 %v1897, %v2507
        %v2958 = vadd.f32 %v1900, %v2510
        %v2959 = vadd.f32 %v1905, %v2515
        %v2960 = vadd.f32 %v1908, %v2518
        %v2961 = vadd.f32 %v1913, %v2523
        %v2962 = vadd.f32 %v1916, %v2526
        %v2963 = vadd.f32 %v1921, %v2531
        %v2964 = vadd.f32 %v1924, %v2534
        %v2965 = vadd.f32 %v1929, %v2539
        %v2966 = vadd.f32 %v1932, %v2542
        %v2967 = vadd.f32 %v1937, %v2547
        %v2968 = vadd.f32 %v1940, %v2550
        %v2969 = vadd.f32 %v1945, %v2555
        %v2970 = vadd.f32 %v1948, %v2558
        %v2971 = vadd.f32 %v1953, %v2563
        %v2972 = vadd.f32 %v1956, %v2566
        %v2973 = vadd.f32 %v1961, %v2571
        %v2974 = vadd.f32 %v1964, %v2574
        %v2975 = vadd.f32 %v1969, %v2579
        %v2976 = vadd.f32 %v1972, %v2582
        %v2977 = vadd.f32 %v1977, %v2587
        %v2978 = vadd.f32 %v1980, %v2590
        %v2979 = vadd.f32 %v1985, %v2595
        %v2980 = vadd.f32 %v1988, %v2598
        %v2981 = vadd.f32 %v1993, %v2603
        %v2982 = vadd.f32 %v1996, %v2606
        %v2983 = vadd.f32 %v2001, %v2611
        %v2984 = vadd.f32 %v2004, %v2614
        %v2985 = vadd.f32 %v2009, %v2619
        %v2986 = vadd.f32 %v2012, %v2622
        %v2987 = vadd.f32 %v2017, %v2627
        %v2988 = vadd.f32 %v2020, %v2630
        %v2989 = vadd.f32 %v2025, %v2635
        %v2990 = vadd.f32 %v2028, %v2638
        %v2991 = vadd.f32 %v2033, %v2643
        %v2992 = vadd.f32 %v2036, %v2646
        %v2993 = vadd.f32 %v2041, %v2651
        %v2994 = vadd.f32 %v2044, %v2654
        %v2995 = vadd.f32 %v2049, %v2659
        %v2996 = vadd.f32 %v2052, %v2662
        %v2997 = vadd.f32 %v2057, %v2667
        %v2998 = vadd.f32 %v2060, %v2670
        %v2999 = vadd.f32 %v2065, %v2675
        %v3000 = vadd.f32 %v2068, %v2678
        %v3001 = vadd.f32 %v2073, %v2683
        %v3002 = vadd.f32 %v2076, %v2686
        %v3003 = vadd.f32 %v2081, %v2691
        %v3004 = vadd.f32 %v2084, %v2694
        %v3005 = vadd.f32 %v2089, %v2699
        %v3006 = vadd.f32 %v2092, %v2702
        %v3007 = vadd.f32 %v2097, %v2707
        %v3008 = vadd.f32 %v2100, %v2710
        %v3009 = vadd.f32 %v2105, %v2715
        %v3010 = vadd.f32 %v2108, %v2718
        %v3011 = vadd.f32 %v2113, %v2723
        %v3012 = vadd.f32 %v2116, %v2726
        %v3013 = vadd.f32 %v2121, %v2731
        %v3014 = vadd.f32 %v2124, %v2734
        %v3015 = vadd.f32 %v2129, %v2739
        %v3016 = vadd.f32 %v2132, %v2742
        %v3017 = vadd.f32 %v2137, %v2747
        %v3018 = vadd.f32 %v2140, %v2750
        %v3019 = vadd.f32 %v2145, %v2755
        %v3020 = vadd.f32 %v2148, %v2758
        %v3021 = vadd.f32 %v2153, %v2763
        %v3022 = vadd.f32 %v2156, %v2766
        %v3023 = vadd.f32 %v2161, %v2771
        %v3024 = vadd.f32 %v2164, %v2774
        %v3025 = vadd.f32 %v2169, %v2779
        %v3026 = vadd.f32 %v2172, %v2782
        %v3027 = vadd.f32 %v2177, %v2787
        %v3028 = vadd.f32 %v2180, %v2790
        %v3029 = vadd.f32 %v2185, %v2795
        %v3030 = vadd.f32 %v2188, %v2798
        %v3031 = vadd.f32 %v2193, %v2803
        %v3032 = vadd.f32 %v2196, %v2806
        %v3033 = vadd.f32 %v2201, %v2811
        %v3034 = vadd.f32 %v2204, %v2814
        %v3035 = vadd.f32 %v2209, %v2819
        %v3036 = vadd.f32 %v2212, %v2822
        %v3037 = vadd.f32 %v2217, %v2827
        %v3038 = vadd.f32 %v2220, %v2830
        %v3039 = vadd.f32 %v2225, %v2835
        %v3040 = vadd.f32 %v2228, %v2838
        %v3041 = vadd.f32 %v2233, %v2843
        %v3042 = vadd.f32 %v2236, %v2846
        %v3043 = vadd.f32 %v2241, %v2851
        %v3044 = vadd.f32 %v2244, %v2854
        %v3045 = vadd.f32 %v2249, %v2859
        %v3046 = vadd.f32 %v2252, %v2862
        %v3047 = vadd.f32 %v2257, %v2867
        %v3048 = vadd.f32 %v2260, %v2870
        %v3049 = vadd.f32 %v2265, %v2875
        %v3050 = vadd.f32 %v2268, %v2878
        %v3051 = vadd.f32 %v2273, %v2883
        %v3052 = vadd.f32 %v2276, %v2886
        %v3053 = vadd.f32 %v2281, %v2891
        %v3054 = vadd.f32 %v2284, %v2894
        %v3055 = vadd.f32 %v2289, %v2899
        %v3056 = vadd.f32 %v2292, %v2902
        %v3057 = vadd.f32 %v2297, %v2907
        %v3058 = vadd.f32 %v2300, %v2910
        %v3059 = vadd.f32 %v2305, %v2915
        %v3060 = vadd.f32 %v2308, %v2918
        %v3061 = vadd.f32 %v2313, %v2923
        %v3062 = vadd.f32 %v2316, %v2926
        %v3063 = vadd.f32 %v2321, %v2931
        %v3064 = vadd.f32 %v2324, %v2934
        %3065 = vst [vmem:[%s137] sm:$0xff] %v2937
        %3066 = vst [vmem:[%s137 + $0x8] sm:$0xff] %v2938
        %3067 = vst [vmem:[%s137 + $0x10] sm:$0xff] %v2939
        %3068 = vst [vmem:[%s137 + $0x18] sm:$0xff] %v2940
        %3069 = vst [vmem:[%s137 + $0x20] sm:$0xff] %v2941
        %3070 = vst [vmem:[%s137 + $0x28] sm:$0xff] %v2942
        %3071 = vst [vmem:[%s137 + $0x30] sm:$0xff] %v2943
        %3072 = vst [vmem:[%s137 + $0x38] sm:$0xff] %v2944
        %3073 = vst [vmem:[%s137 + $0x40] sm:$0xff] %v2945
        %3074 = vst [vmem:[%s137 + $0x48] sm:$0xff] %v2946
        %3075 = vst [vmem:[%s137 + $0x50] sm:$0xff] %v2947
        %3076 = vst [vmem:[%s137 + $0x58] sm:$0xff] %v2948
        %3077 = vst [vmem:[%s137 + $0x60] sm:$0xff] %v2949
        %3078 = vst [vmem:[%s137 + $0x68] sm:$0xff] %v2950
        %3079 = vst [vmem:[%s137 + $0x70] sm:$0xff] %v2951
        %3080 = vst [vmem:[%s137 + $0x78] sm:$0xff] %v2952
        %3081 = vst [vmem:[%s137 + $0x80] sm:$0xff] %v2953
        %3082 = vst [vmem:[%s137 + $0x88] sm:$0xff] %v2954
        %3083 = vst [vmem:[%s137 + $0x90] sm:$0xff] %v2955
        %3084 = vst [vmem:[%s137 + $0x98] sm:$0xff] %v2956
        %3085 = vst [vmem:[%s137 + $0xa0] sm:$0xff] %v2957
        %3086 = vst [vmem:[%s137 + $0xa8] sm:$0xff] %v2958
        %3087 = vst [vmem:[%s137 + $0xb0] sm:$0xff] %v2959
        %3088 = vst [vmem:[%s137 + $0xb8] sm:$0xff] %v2960
        %3089 = vst [vmem:[%s137 + $0xc0] sm:$0xff] %v2961
        %3090 = vst [vmem:[%s137 + $0xc8] sm:$0xff] %v2962
        %3091 = vst [vmem:[%s137 + $0xd0] sm:$0xff] %v2963
        %3092 = vst [vmem:[%s137 + $0xd8] sm:$0xff] %v2964
        %3093 = vst [vmem:[%s137 + $0xe0] sm:$0xff] %v2965
        %3094 = vst [vmem:[%s137 + $0xe8] sm:$0xff] %v2966
        %3095 = vst [vmem:[%s137 + $0xf0] sm:$0xff] %v2967
        %3096 = vst [vmem:[%s137 + $0xf8] sm:$0xff] %v2968
        %3097 = vst [vmem:[%s137 + $0x100] sm:$0xff] %v2969
        %3098 = vst [vmem:[%s137 + $0x108] sm:$0xff] %v2970
        %3099 = vst [vmem:[%s137 + $0x110] sm:$0xff] %v2971
        %3100 = vst [vmem:[%s137 + $0x118] sm:$0xff] %v2972
        %3101 = vst [vmem:[%s137 + $0x120] sm:$0xff] %v2973
        %3102 = vst [vmem:[%s137 + $0x128] sm:$0xff] %v2974
        %3103 = vst [vmem:[%s137 + $0x130] sm:$0xff] %v2975
        %3104 = vst [vmem:[%s137 + $0x138] sm:$0xff] %v2976
        %3105 = vst [vmem:[%s137 + $0x140] sm:$0xff] %v2977
        %3106 = vst [vmem:[%s137 + $0x148] sm:$0xff] %v2978
        %3107 = vst [vmem:[%s137 + $0x150] sm:$0xff] %v2979
        %3108 = vst [vmem:[%s137 + $0x158] sm:$0xff] %v2980
        %3109 = vst [vmem:[%s137 + $0x160] sm:$0xff] %v2981
        %3110 = vst [vmem:[%s137 + $0x168] sm:$0xff] %v2982
        %3111 = vst [vmem:[%s137 + $0x170] sm:$0xff] %v2983
        %3112 = vst [vmem:[%s137 + $0x178] sm:$0xff] %v2984
        %3113 = vst [vmem:[%s137 + $0x180] sm:$0xff] %v2985
        %3114 = vst [vmem:[%s137 + $0x188] sm:$0xff] %v2986
        %3115 = vst [vmem:[%s137 + $0x190] sm:$0xff] %v2987
        %3116 = vst [vmem:[%s137 + $0x198] sm:$0xff] %v2988
        %3117 = vst [vmem:[%s137 + $0x1a0] sm:$0xff] %v2989
        %3118 = vst [vmem:[%s137 + $0x1a8] sm:$0xff] %v2990
        %3119 = vst [vmem:[%s137 + $0x1b0] sm:$0xff] %v2991
        %3120 = vst [vmem:[%s137 + $0x1b8] sm:$0xff] %v2992
        %3121 = vst [vmem:[%s137 + $0x1c0] sm:$0xff] %v2993
        %3122 = vst [vmem:[%s137 + $0x1c8] sm:$0xff] %v2994
        %3123 = vst [vmem:[%s137 + $0x1d0] sm:$0xff] %v2995
        %3124 = vst [vmem:[%s137 + $0x1d8] sm:$0xff] %v2996
        %3125 = vst [vmem:[%s137 + $0x1e0] sm:$0xff] %v2997
        %3126 = vst [vmem:[%s137 + $0x1e8] sm:$0xff] %v2998
        %3127 = vst [vmem:[%s137 + $0x1f0] sm:$0xff] %v2999
        %3128 = vst [vmem:[%s137 + $0x1f8] sm:$0xff] %v3000
        %3129 = vst [vmem:[%s137 + $0x200] sm:$0xff] %v3001
        %3130 = vst [vmem:[%s137 + $0x208] sm:$0xff] %v3002
        %3131 = vst [vmem:[%s137 + $0x210] sm:$0xff] %v3003
        %3132 = vst [vmem:[%s137 + $0x218] sm:$0xff] %v3004
        %3133 = vst [vmem:[%s137 + $0x220] sm:$0xff] %v3005
        %3134 = vst [vmem:[%s137 + $0x228] sm:$0xff] %v3006
        %3135 = vst [vmem:[%s137 + $0x230] sm:$0xff] %v3007
        %3136 = vst [vmem:[%s137 + $0x238] sm:$0xff] %v3008
        %3137 = vst [vmem:[%s137 + $0x240] sm:$0xff] %v3009
        %3138 = vst [vmem:[%s137 + $0x248] sm:$0xff] %v3010
        %3139 = vst [vmem:[%s137 + $0x250] sm:$0xff] %v3011
        %3140 = vst [vmem:[%s137 + $0x258] sm:$0xff] %v3012
        %3141 = vst [vmem:[%s137 + $0x260] sm:$0xff] %v3013
        %3142 = vst [vmem:[%s137 + $0x268] sm:$0xff] %v3014
        %3143 = vst [vmem:[%s137 + $0x270] sm:$0xff] %v3015
        %3144 = vst [vmem:[%s137 + $0x278] sm:$0xff] %v3016
        %3145 = vst [vmem:[%s137 + $0x280] sm:$0xff] %v3017
        %3146 = vst [vmem:[%s137 + $0x288] sm:$0xff] %v3018
        %3147 = vst [vmem:[%s137 + $0x290] sm:$0xff] %v3019
        %3148 = vst [vmem:[%s137 + $0x298] sm:$0xff] %v3020
        %3149 = vst [vmem:[%s137 + $0x2a0] sm:$0xff] %v3021
        %3150 = vst [vmem:[%s137 + $0x2a8] sm:$0xff] %v3022
        %3151 = vst [vmem:[%s137 + $0x2b0] sm:$0xff] %v3023
        %3152 = vst [vmem:[%s137 + $0x2b8] sm:$0xff] %v3024
        %3153 = vst [vmem:[%s137 + $0x2c0] sm:$0xff] %v3025
        %3154 = vst [vmem:[%s137 + $0x2c8] sm:$0xff] %v3026
        %3155 = vst [vmem:[%s137 + $0x2d0] sm:$0xff] %v3027
        %3156 = vst [vmem:[%s137 + $0x2d8] sm:$0xff] %v3028
        %3157 = vst [vmem:[%s137 + $0x2e0] sm:$0xff] %v3029
        %3158 = vst [vmem:[%s137 + $0x2e8] sm:$0xff] %v3030
        %3159 = vst [vmem:[%s137 + $0x2f0] sm:$0xff] %v3031
        %3160 = vst [vmem:[%s137 + $0x2f8] sm:$0xff] %v3032
        %3161 = vst [vmem:[%s137 + $0x300] sm:$0xff] %v3033
        %3162 = vst [vmem:[%s137 + $0x308] sm:$0xff] %v3034
        %3163 = vst [vmem:[%s137 + $0x310] sm:$0xff] %v3035
        %3164 = vst [vmem:[%s137 + $0x318] sm:$0xff] %v3036
        %3165 = vst [vmem:[%s137 + $0x320] sm:$0xff] %v3037
        %3166 = vst [vmem:[%s137 + $0x328] sm:$0xff] %v3038
        %3167 = vst [vmem:[%s137 + $0x330] sm:$0xff] %v3039
        %3168 = vst [vmem:[%s137 + $0x338] sm:$0xff] %v3040
        %3169 = vst [vmem:[%s137 + $0x340] sm:$0xff] %v3041
        %3170 = vst [vmem:[%s137 + $0x348] sm:$0xff] %v3042
        %3171 = vst [vmem:[%s137 + $0x350] sm:$0xff] %v3043
        %3172 = vst [vmem:[%s137 + $0x358] sm:$0xff] %v3044
        %3173 = vst [vmem:[%s137 + $0x360] sm:$0xff] %v3045
        %3174 = vst [vmem:[%s137 + $0x368] sm:$0xff] %v3046
        %3175 = vst [vmem:[%s137 + $0x370] sm:$0xff] %v3047
        %3176 = vst [vmem:[%s137 + $0x378] sm:$0xff] %v3048
        %3177 = vst [vmem:[%s137 + $0x380] sm:$0xff] %v3049
        %3178 = vst [vmem:[%s137 + $0x388] sm:$0xff] %v3050
        %3179 = vst [vmem:[%s137 + $0x390] sm:$0xff] %v3051
        %3180 = vst [vmem:[%s137 + $0x398] sm:$0xff] %v3052
        %3181 = vst [vmem:[%s137 + $0x3a0] sm:$0xff] %v3053
        %3182 = vst [vmem:[%s137 + $0x3a8] sm:$0xff] %v3054
        %3183 = vst [vmem:[%s137 + $0x3b0] sm:$0xff] %v3055
        %3184 = vst [vmem:[%s137 + $0x3b8] sm:$0xff] %v3056
        %3185 = vst [vmem:[%s137 + $0x3c0] sm:$0xff] %v3057
        %3186 = vst [vmem:[%s137 + $0x3c8] sm:$0xff] %v3058
        %3187 = vst [vmem:[%s137 + $0x3d0] sm:$0xff] %v3059
        %3188 = vst [vmem:[%s137 + $0x3d8] sm:$0xff] %v3060
        %3189 = vst [vmem:[%s137 + $0x3e0] sm:$0xff] %v3061
        %3190 = vst [vmem:[%s137 + $0x3e8] sm:$0xff] %v3062
        %3191 = vst [vmem:[%s137 + $0x3f0] sm:$0xff] %v3063
        %3192 = vst [vmem:[%s137 + $0x3f8] sm:$0xff] %v3064
        %s3193 = sand.u32 %s71, 1
        %s3194 = scalar_lea.sflag [#allocation3], %s3193
        %s3195 = sand.u32 %s71, 1
        %s3196 = smul.addr %s3195, 1024
        %s3197 = scalar_lea.vmem [#allocation2], %s3196
        // Predicated region
        $region29: #{tpu_custom_call.1} parent=27 // pred_check
          %p3198 = pneg %p81
        $region30: #{tpu_custom_call.1} parent=27 // pred_check_branch
          %3200 = sbr.rel (%p3198) target = $region32
        $region31: #{tpu_custom_call.1} parent=27 // pred_region
          %s3201 = smul.u32 128, %s16
          %s3203 = ssub.s32 16384, 16384
          %3204 = vsyncadd %s3194, %s3203
          %s3205 = smul.addr %s3201, 128
          %s3206 = scalar_lea.hbm %s2, %s3205
          %s3207 = sshll.u32 %s3197, 4
          %s3208 = int_to_ptr.vmem [resolvable:$true] %s3207
          %3213 = dma.vmem_to_hbm [thread:$0]  %s3208, 16384, %s3206, %s3194, 128, 128, 8
        $region32: #{tpu_custom_call.1} parent=27 // pred_fallthru
          _
      $region28: #{tpu_custom_call.1} parent=5 // pred_fallthru
        _
      %p3214 = scmp.le.s32.totalorder 2, %s11
      // Predicated region
      $region33: #{tpu_custom_call.1} parent=5 // pred_check
        %p3215 = pneg %p3214
      $region34: #{tpu_custom_call.1} parent=5 // pred_check_branch
        %3217 = sbr.rel (%p3215) target = $region36
      $region35: #{tpu_custom_call.1} parent=5 // pred_region
        %s3218 = ssub.s32 %s11, 2
        // Predicated region
        $region37: #{tpu_custom_call.1} parent=35 // pred_check
          %p3219 = pneg %p87
        $region38: #{tpu_custom_call.1} parent=35 // pred_check_branch
          %3221 = sbr.rel (%p3219) target = $region40
        $region39: #{tpu_custom_call.1} parent=35 // pred_region
          %s3222 = sand.u32 %s72, 1
          %s3223 = scalar_lea.sflag [#allocation3], %s3222
          %s3224 = sand.u32 %s72, 1
          %s3225 = smul.addr %s3224, 1024
          %s3226 = scalar_lea.vmem [#allocation2], %s3225
          %3227 = dma.done %s3223, 16384
        $region40: #{tpu_custom_call.1} parent=35 // pred_fallthru
          _
      $region36: #{tpu_custom_call.1} parent=5 // pred_fallthru
        _
    $region6: #{tpu_custom_call.1} parent=1 // loop_footer
      %s15 = sadd.s32 1, %s11
    $region7: #{tpu_custom_call.1} parent=1 // loop_footer_branch
      %10 = sbr.rel target = $region3
    $region8: #{tpu_custom_call.1} parent=1 // loop_exit
      _
    %3228 = vsyncpa [#allocation3], 1
    %s3229 = scalar_lea.sflag [#allocation3], 1
    %3230 = vsyncpa %s3229, 1

</llo_original>
